<compile_context>
chip_gen: v7x
topology: tpu7x:2x2x1
jax: 0.10.0
libtpu: 0.0.40
codegen_flags: <defaults>
</compile_context>

<pallas_src>
import functools

import jax
import jax.numpy as jnp
import numpy as np
from jax import lax
from jax.experimental import pallas as pl
from jax.experimental.pallas import tpu as pltpu

EMBEDDING_DIM = 128
BLOCK_SIZE = 128
NUM_HEADS = 4
HEAD_SIZE = EMBEDDING_DIM // NUM_HEADS
NEG_INF = -1e30  # stand-in for -inf; masked exp underflows to exactly 0.0


def mhsa_kernel(
    x_ref, mask_ref,
    wq_ref, wk_ref, wv_ref, wo_ref, bo_ref,
    o_ref,
    *, num_heads, head_size, rows,
):
    R = rows
    T = x_ref.shape[1]
    D = x_ref.shape[2]

    # Flatten the R batch rows into one (R*T, D) slab so the QKV projections
    # run with M = R*T (fills the 256-wide MXU on v6e/v7x). Layout-preserving.
    xb = x_ref[...].reshape(R * T, D).astype(jnp.bfloat16)

    wq = wq_ref[...]   # bf16 (D, D)
    wk = wk_ref[...]
    wv = wv_ref[...]
    wo = wo_ref[...]
    bo = bo_ref[...]   # f32 (1, D)

    scale = float(head_size) ** -0.5
    q = jnp.dot(xb, wq, preferred_element_type=jnp.float32) * scale   # (R*T, D) f32
    k = jnp.dot(xb, wk, preferred_element_type=jnp.float32)
    v = jnp.dot(xb, wv, preferred_element_type=jnp.float32)
    qb = q.astype(jnp.bfloat16)
    kb = k.astype(jnp.bfloat16)
    vb = v.astype(jnp.bfloat16)

    # Causal mask, shared by all rows/heads (key j <= query i).
    row_ids = lax.broadcasted_iota(jnp.int32, (T, T), 0)
    col_ids = lax.broadcasted_iota(jnp.int32, (T, T), 1)
    causal = col_ids <= row_ids

    dn = (((1,), (1,)), ((), ()))  # contract last dims of both operands (q k^T)

    for r in range(R):
        # Combined key-padding + causal additive bias, computed once per row.
        pad_row = mask_ref[r]                                   # (1, T), 1.0 = valid
        bias = jnp.where((pad_row > 0.0) & causal, 0.0, NEG_INF)  # (T, T) f32

        q_r = qb[r * T:(r + 1) * T, :]
        k_r = kb[r * T:(r + 1) * T, :]
        v_r = vb[r * T:(r + 1) * T, :]

        # Phase 1: all head score matrices back-to-back (dense MXU work).
        scores = []
        for h in range(num_heads):
            lo, hi = h * head_size, (h + 1) * head_size
            s = lax.dot_general(q_r[:, lo:hi], k_r[:, lo:hi], dn,
                                preferred_element_type=jnp.float32)
            scores.append(s + bias)

        # Phase 2: softmax numerators / reciprocals (VPU + EUP, overlaps MXU).
        probs, inv_ls = [], []
        for h in range(num_heads):
            s = scores[h]
            m = jnp.max(s, axis=-1, keepdims=True)
            p = jnp.exp(s - m)
            l = jnp.sum(p, axis=-1, keepdims=True)
            probs.append(p.astype(jnp.bfloat16))
            inv_ls.append(pl.reciprocal(l, approx=True))

        # Phase 3: PV matmuls + per-head output-projection accumulation
        # (no lane-axis concat of the heads).
        acc = None
        for h in range(num_heads):
            lo, hi = h * head_size, (h + 1) * head_size
            out_h = jnp.dot(probs[h], v_r[:, lo:hi],
                            preferred_element_type=jnp.float32)        # (T, hs)
            out_h = (out_h * inv_ls[h]).astype(jnp.bfloat16)
            contrib = jnp.dot(out_h, wo[lo:hi, :],
                              preferred_element_type=jnp.float32)      # (T, D)
            acc = contrib if acc is None else acc + contrib

        o_ref[r] = (acc + bo).astype(o_ref.dtype)


def causal_mhsa(x, pad_mask, params, *, rows_per_step=None):
    """x: (B, T, D) f32, pad_mask: (B, T) bool (True = valid token)."""
    B, T, D = x.shape
    assert T == BLOCK_SIZE and D == EMBEDDING_DIM
    if rows_per_step is None:
        rows_per_step = 2 if B % 2 == 0 else 1
    R = rows_per_step
    assert B % R == 0

    mask3 = pad_mask.astype(jnp.float32).reshape(B, 1, T)
    wq = params["wq"].astype(jnp.bfloat16)
    wk = params["wk"].astype(jnp.bfloat16)
    wv = params["wv"].astype(jnp.bfloat16)
    wo = params["wo"].astype(jnp.bfloat16)
    bo = params["bo"]  # keep bias in f32 (added after f32 accumulation)

    kernel = functools.partial(
        mhsa_kernel, num_heads=NUM_HEADS, head_size=HEAD_SIZE, rows=R
    )

    qkv_flops = 3 * 2 * T * D * D
    attn_flops = NUM_HEADS * 2 * (2 * T * T * HEAD_SIZE)   # QK^T and PV
    proj_flops = 2 * T * D * D
    cost = pl.CostEstimate(
        flops=B * (qkv_flops + attn_flops + proj_flops),
        transcendentals=B * NUM_HEADS * (T * T + T),        # exp + reciprocal
        bytes_accessed=2 * B * T * D * 4 + B * T * 4 + 4 * D * D * 2 + D * 4,
    )

    return pl.pallas_call(
        kernel,
        out_shape=jax.ShapeDtypeStruct((B, T, D), x.dtype),
        grid_spec=pltpu.PrefetchScalarGridSpec(
            num_scalar_prefetch=0,
            grid=(B // R,),
            in_specs=[
                pl.BlockSpec((R, T, D), lambda b: (b, 0, 0)),   # x
                pl.BlockSpec((R, 1, T), lambda b: (b, 0, 0)),   # pad mask
                pl.BlockSpec((D, D), lambda b: (0, 0)),         # Wq
                pl.BlockSpec((D, D), lambda b: (0, 0)),         # Wk
                pl.BlockSpec((D, D), lambda b: (0, 0)),         # Wv
                pl.BlockSpec((D, D), lambda b: (0, 0)),         # Wo
                pl.BlockSpec((1, D), lambda b: (0, 0)),         # bo
            ],
            out_specs=pl.BlockSpec((R, T, D), lambda b: (b, 0, 0)),
        ),
        compiler_params=pltpu.CompilerParams(dimension_semantics=("parallel",)),
        cost_estimate=cost,
    )(x, mask3, wq, wk, wv, wo, bo)


def reference_forward(x, pad_mask, params):
    """Pure-JAX f32 mirror of CausalMultiHeadSelfAttention (eval mode)."""
    x = x.astype(jnp.float32)
    T = x.shape[1]
    q = x @ params["wq"]
    k = x @ params["wk"]
    v = x @ params["wv"]
    causal = jnp.tril(jnp.ones((T, T), bool))
    key_ok = pad_mask[:, None, :] & causal[None]     # (B, T, T)
    scale = HEAD_SIZE ** -0.5
    outs = []
    for h in range(NUM_HEADS):
        lo, hi = h * HEAD_SIZE, (h + 1) * HEAD_SIZE
        wei = jnp.einsum("btd,bsd->bts", q[..., lo:hi], k[..., lo:hi]) * scale
        wei = jnp.where(key_ok, wei, NEG_INF)
        wei = jax.nn.softmax(wei, axis=-1)
        outs.append(jnp.einsum("bts,bsd->btd", wei, v[..., lo:hi]))
    att = jnp.concatenate(outs, axis=-1)
    return att @ params["wo"] + params["bo"]


def make_params(key):
    D = EMBEDDING_DIM
    ks = jax.random.split(key, 5)
    scl = 0.02
    return {
        "wq": scl * jax.random.normal(ks[0], (D, D), jnp.float32),
        "wk": scl * jax.random.normal(ks[1], (D, D), jnp.float32),
        "wv": scl * jax.random.normal(ks[2], (D, D), jnp.float32),
        "wo": scl * jax.random.normal(ks[3], (D, D), jnp.float32),
        "bo": scl * jax.random.normal(ks[4], (1, D), jnp.float32),
    }


if __name__ == "__main__":
    B, T, D = 2, BLOCK_SIZE, EMBEDDING_DIM
    key = jax.random.PRNGKey(0)
    kx, kp = jax.random.split(key)

    x = jax.random.normal(kx, (B, T, D), jnp.float32)
    # batch 0: all tokens valid; batch 1: last 28 tokens are padding
    pad_mask = jnp.stack(
        [jnp.ones((T,), bool), jnp.arange(T) < 100], axis=0
    )
    params = make_params(kp)

    # TODO(synk): nn.Dropout (attention probs + output) is treated as identity
    # (eval-mode semantics); no stochastic dropout is implemented in-kernel.
    out = causal_mhsa(x, pad_mask, params)
    out = jax.block_until_ready(out)

    ref = reference_forward(x, pad_mask, params)
    # bf16 matmul operands with f32 accumulation -> loosened tolerance vs f32 ref.
    np.testing.assert_allclose(np.asarray(out), np.asarray(ref), rtol=2e-2, atol=2e-2)

    print("KERNEL_OK")
</pallas_src>

<mosaic_0001>
module attributes {stable_mosaic.version = 11 : i64} {
  func.func @mhsa_kernel(%arg0: i32, %arg1: memref<2x128x128xf32, #tpu.memory_space<vmem>>, %arg2: memref<2x1x128xf32, #tpu.memory_space<vmem>>, %arg3: memref<128x128xbf16, #tpu.memory_space<vmem>>, %arg4: memref<128x128xbf16, #tpu.memory_space<vmem>>, %arg5: memref<128x128xbf16, #tpu.memory_space<vmem>>, %arg6: memref<128x128xbf16, #tpu.memory_space<vmem>>, %arg7: memref<1x128xf32, #tpu.memory_space<vmem>>, %arg8: memref<2x128x128xf32, #tpu.memory_space<vmem>>) attributes {dimension_semantics = [#tpu.dimension_semantics<parallel>], iteration_bounds = array<i64: 1>, scalar_prefetch = 0 : i64, scratch_operands = 0 : i64, tpu.core_type = #tpu.core_type<tc>, window_params = [{transform_indices = @transform_0, window_bounds = array<i64: 2, 128, 128>}, {transform_indices = @transform_1, window_bounds = array<i64: 2, 1, 128>}, {pipeline_mode = #tpu.pipeline_mode<synchronous>, transform_indices = @transform_2, window_bounds = array<i64: 128, 128>}, {pipeline_mode = #tpu.pipeline_mode<synchronous>, transform_indices = @transform_3, window_bounds = array<i64: 128, 128>}, {pipeline_mode = #tpu.pipeline_mode<synchronous>, transform_indices = @transform_4, window_bounds = array<i64: 128, 128>}, {pipeline_mode = #tpu.pipeline_mode<synchronous>, transform_indices = @transform_5, window_bounds = array<i64: 128, 128>}, {pipeline_mode = #tpu.pipeline_mode<synchronous>, transform_indices = @transform_6, window_bounds = array<i64: 1, 128>}, {transform_indices = @transform_7, window_bounds = array<i64: 2, 128, 128>}]} {
    %c0 = arith.constant 0 : index
    %c0_0 = arith.constant 0 : index
    %c0_1 = arith.constant 0 : index
    %0 = vector.load %arg1[%c0, %c0_0, %c0_1] : memref<2x128x128xf32, #tpu.memory_space<vmem>>, vector<2x128x128xf32>
    %1 = vector.shape_cast %0 : vector<2x128x128xf32> to vector<256x128xf32>
    %2 = arith.truncf %1 : vector<256x128xf32> to vector<256x128xbf16>
    %c0_2 = arith.constant 0 : index
    %c0_3 = arith.constant 0 : index
    %3 = vector.load %arg3[%c0_2, %c0_3] : memref<128x128xbf16, #tpu.memory_space<vmem>>, vector<128x128xbf16>
    %c0_4 = arith.constant 0 : index
    %c0_5 = arith.constant 0 : index
    %4 = vector.load %arg4[%c0_4, %c0_5] : memref<128x128xbf16, #tpu.memory_space<vmem>>, vector<128x128xbf16>
    %c0_6 = arith.constant 0 : index
    %c0_7 = arith.constant 0 : index
    %5 = vector.load %arg5[%c0_6, %c0_7] : memref<128x128xbf16, #tpu.memory_space<vmem>>, vector<128x128xbf16>
    %c0_8 = arith.constant 0 : index
    %c0_9 = arith.constant 0 : index
    %6 = vector.load %arg6[%c0_8, %c0_9] : memref<128x128xbf16, #tpu.memory_space<vmem>>, vector<128x128xbf16>
    %c0_10 = arith.constant 0 : index
    %c0_11 = arith.constant 0 : index
    %7 = vector.load %arg7[%c0_10, %c0_11] : memref<1x128xf32, #tpu.memory_space<vmem>>, vector<1x128xf32>
    %cst = arith.constant dense<0.000000e+00> : vector<256x128xf32>
    %8 = tpu.matmul %2, %3, %cst {dimension_numbers = #tpu.dot_dimension_numbers<[1], [0], [0], [1], [0, 0, 1, 1], [], []>} : vector<256x128xbf16>, vector<128x128xbf16>, vector<256x128xf32> -> vector<256x128xf32>
    %cst_12 = arith.constant 0.176776692 : f32
    %9 = vector.broadcast %cst_12 : f32 to vector<256x128xf32>
    %10 = arith.mulf %8, %9 : vector<256x128xf32>
    %cst_13 = arith.constant dense<0.000000e+00> : vector<256x128xf32>
    %11 = tpu.matmul %2, %4, %cst_13 {dimension_numbers = #tpu.dot_dimension_numbers<[1], [0], [0], [1], [0, 0, 1, 1], [], []>} : vector<256x128xbf16>, vector<128x128xbf16>, vector<256x128xf32> -> vector<256x128xf32>
    %cst_14 = arith.constant dense<0.000000e+00> : vector<256x128xf32>
    %12 = tpu.matmul %2, %5, %cst_14 {dimension_numbers = #tpu.dot_dimension_numbers<[1], [0], [0], [1], [0, 0, 1, 1], [], []>} : vector<256x128xbf16>, vector<128x128xbf16>, vector<256x128xf32> -> vector<256x128xf32>
    %13 = arith.truncf %10 : vector<256x128xf32> to vector<256x128xbf16>
    %14 = arith.truncf %11 : vector<256x128xf32> to vector<256x128xbf16>
    %15 = arith.truncf %12 : vector<256x128xf32> to vector<256x128xbf16>
    %16 = tpu.iota {dimensions = array<i32: 0>} : vector<128x128xi32>
    %17 = tpu.iota {dimensions = array<i32: 1>} : vector<128x128xi32>
    %18 = arith.cmpi sle, %17, %16 : vector<128x128xi32>
    %c0_15 = arith.constant 0 : index
    %c0_16 = arith.constant 0 : index
    %c0_17 = arith.constant 0 : index
    %19 = vector.load %arg2[%c0_15, %c0_16, %c0_17] : memref<2x1x128xf32, #tpu.memory_space<vmem>>, vector<1x1x128xf32>
    %20 = vector.shape_cast %19 : vector<1x1x128xf32> to vector<1x128xf32>
    %cst_18 = arith.constant 0.000000e+00 : f32
    %21 = vector.broadcast %cst_18 : f32 to vector<1x128xf32>
    %22 = arith.cmpf ogt, %20, %21 : vector<1x128xf32>
    %23 = vector.broadcast %22 : vector<1x128xi1> to vector<128x128xi1>
    %24 = arith.andi %23, %18 : vector<128x128xi1>
    %cst_19 = arith.constant 0.000000e+00 : f32
    %cst_20 = arith.constant -1.000000e+30 : f32
    %25 = vector.broadcast %cst_19 : f32 to vector<128x128xf32>
    %26 = vector.broadcast %cst_20 : f32 to vector<128x128xf32>
    %27 = arith.select %24, %25, %26 : vector<128x128xi1>, vector<128x128xf32>
    %28 = vector.extract_strided_slice %13 {offsets = [0, 0], sizes = [128, 128], strides = [1, 1]} : vector<256x128xbf16> to vector<128x128xbf16>
    %29 = vector.extract_strided_slice %14 {offsets = [0, 0], sizes = [128, 128], strides = [1, 1]} : vector<256x128xbf16> to vector<128x128xbf16>
    %30 = vector.extract_strided_slice %15 {offsets = [0, 0], sizes = [128, 128], strides = [1, 1]} : vector<256x128xbf16> to vector<128x128xbf16>
    %31 = vector.extract_strided_slice %28 {offsets = [0, 0], sizes = [128, 32], strides = [1, 1]} : vector<128x128xbf16> to vector<128x32xbf16>
    %32 = vector.extract_strided_slice %29 {offsets = [0, 0], sizes = [128, 32], strides = [1, 1]} : vector<128x128xbf16> to vector<128x32xbf16>
    %cst_21 = arith.constant dense<0.000000e+00> : vector<128x128xf32>
    %33 = tpu.matmul %31, %32, %cst_21 {dimension_numbers = #tpu.dot_dimension_numbers<[1], [1], [0], [0], [0, 0, 1, 0], [], []>} : vector<128x32xbf16>, vector<128x32xbf16>, vector<128x128xf32> -> vector<128x128xf32>
    %34 = arith.addf %33, %27 : vector<128x128xf32>
    %35 = vector.extract_strided_slice %28 {offsets = [0, 32], sizes = [128, 32], strides = [1, 1]} : vector<128x128xbf16> to vector<128x32xbf16>
    %36 = vector.extract_strided_slice %29 {offsets = [0, 32], sizes = [128, 32], strides = [1, 1]} : vector<128x128xbf16> to vector<128x32xbf16>
    %cst_22 = arith.constant dense<0.000000e+00> : vector<128x128xf32>
    %37 = tpu.matmul %35, %36, %cst_22 {dimension_numbers = #tpu.dot_dimension_numbers<[1], [1], [0], [0], [0, 0, 1, 0], [], []>} : vector<128x32xbf16>, vector<128x32xbf16>, vector<128x128xf32> -> vector<128x128xf32>
    %38 = arith.addf %37, %27 : vector<128x128xf32>
    %39 = vector.extract_strided_slice %28 {offsets = [0, 64], sizes = [128, 32], strides = [1, 1]} : vector<128x128xbf16> to vector<128x32xbf16>
    %40 = vector.extract_strided_slice %29 {offsets = [0, 64], sizes = [128, 32], strides = [1, 1]} : vector<128x128xbf16> to vector<128x32xbf16>
    %cst_23 = arith.constant dense<0.000000e+00> : vector<128x128xf32>
    %41 = tpu.matmul %39, %40, %cst_23 {dimension_numbers = #tpu.dot_dimension_numbers<[1], [1], [0], [0], [0, 0, 1, 0], [], []>} : vector<128x32xbf16>, vector<128x32xbf16>, vector<128x128xf32> -> vector<128x128xf32>
    %42 = arith.addf %41, %27 : vector<128x128xf32>
    %43 = vector.extract_strided_slice %28 {offsets = [0, 96], sizes = [128, 32], strides = [1, 1]} : vector<128x128xbf16> to vector<128x32xbf16>
    %44 = vector.extract_strided_slice %29 {offsets = [0, 96], sizes = [128, 32], strides = [1, 1]} : vector<128x128xbf16> to vector<128x32xbf16>
    %cst_24 = arith.constant dense<0.000000e+00> : vector<128x128xf32>
    %45 = tpu.matmul %43, %44, %cst_24 {dimension_numbers = #tpu.dot_dimension_numbers<[1], [1], [0], [0], [0, 0, 1, 0], [], []>} : vector<128x32xbf16>, vector<128x32xbf16>, vector<128x128xf32> -> vector<128x128xf32>
    %46 = arith.addf %45, %27 : vector<128x128xf32>
    %cst_25 = arith.constant dense<0xFF800000> : vector<128xf32>
    %47 = vector.multi_reduction <maximumf>, %34, %cst_25 [1] : vector<128x128xf32> to vector<128xf32>
    %48 = vector.shape_cast %47 : vector<128xf32> to vector<128x1xf32>
    %49 = vector.broadcast %48 : vector<128x1xf32> to vector<128x128xf32>
    %50 = arith.subf %34, %49 : vector<128x128xf32>
    %51 = math.exp %50 : vector<128x128xf32>
    %cst_26 = arith.constant dense<0.000000e+00> : vector<128xf32>
    %52 = vector.multi_reduction <add>, %51, %cst_26 [1] : vector<128x128xf32> to vector<128xf32>
    %53 = vector.shape_cast %52 : vector<128xf32> to vector<128x1xf32>
    %54 = arith.truncf %51 : vector<128x128xf32> to vector<128x128xbf16>
    %55 = tpu.reciprocal %53 {approx = true} : vector<128x1xf32> -> vector<128x1xf32>
    %cst_27 = arith.constant dense<0xFF800000> : vector<128xf32>
    %56 = vector.multi_reduction <maximumf>, %38, %cst_27 [1] : vector<128x128xf32> to vector<128xf32>
    %57 = vector.shape_cast %56 : vector<128xf32> to vector<128x1xf32>
    %58 = vector.broadcast %57 : vector<128x1xf32> to vector<128x128xf32>
    %59 = arith.subf %38, %58 : vector<128x128xf32>
    %60 = math.exp %59 : vector<128x128xf32>
    %cst_28 = arith.constant dense<0.000000e+00> : vector<128xf32>
    %61 = vector.multi_reduction <add>, %60, %cst_28 [1] : vector<128x128xf32> to vector<128xf32>
    %62 = vector.shape_cast %61 : vector<128xf32> to vector<128x1xf32>
    %63 = arith.truncf %60 : vector<128x128xf32> to vector<128x128xbf16>
    %64 = tpu.reciprocal %62 {approx = true} : vector<128x1xf32> -> vector<128x1xf32>
    %cst_29 = arith.constant dense<0xFF800000> : vector<128xf32>
    %65 = vector.multi_reduction <maximumf>, %42, %cst_29 [1] : vector<128x128xf32> to vector<128xf32>
    %66 = vector.shape_cast %65 : vector<128xf32> to vector<128x1xf32>
    %67 = vector.broadcast %66 : vector<128x1xf32> to vector<128x128xf32>
    %68 = arith.subf %42, %67 : vector<128x128xf32>
    %69 = math.exp %68 : vector<128x128xf32>
    %cst_30 = arith.constant dense<0.000000e+00> : vector<128xf32>
    %70 = vector.multi_reduction <add>, %69, %cst_30 [1] : vector<128x128xf32> to vector<128xf32>
    %71 = vector.shape_cast %70 : vector<128xf32> to vector<128x1xf32>
    %72 = arith.truncf %69 : vector<128x128xf32> to vector<128x128xbf16>
    %73 = tpu.reciprocal %71 {approx = true} : vector<128x1xf32> -> vector<128x1xf32>
    %cst_31 = arith.constant dense<0xFF800000> : vector<128xf32>
    %74 = vector.multi_reduction <maximumf>, %46, %cst_31 [1] : vector<128x128xf32> to vector<128xf32>
    %75 = vector.shape_cast %74 : vector<128xf32> to vector<128x1xf32>
    %76 = vector.broadcast %75 : vector<128x1xf32> to vector<128x128xf32>
    %77 = arith.subf %46, %76 : vector<128x128xf32>
    %78 = math.exp %77 : vector<128x128xf32>
    %cst_32 = arith.constant dense<0.000000e+00> : vector<128xf32>
    %79 = vector.multi_reduction <add>, %78, %cst_32 [1] : vector<128x128xf32> to vector<128xf32>
    %80 = vector.shape_cast %79 : vector<128xf32> to vector<128x1xf32>
    %81 = arith.truncf %78 : vector<128x128xf32> to vector<128x128xbf16>
    %82 = tpu.reciprocal %80 {approx = true} : vector<128x1xf32> -> vector<128x1xf32>
    %83 = vector.extract_strided_slice %30 {offsets = [0, 0], sizes = [128, 32], strides = [1, 1]} : vector<128x128xbf16> to vector<128x32xbf16>
    %cst_33 = arith.constant dense<0.000000e+00> : vector<128x32xf32>
    %84 = tpu.matmul %54, %83, %cst_33 {dimension_numbers = #tpu.dot_dimension_numbers<[1], [0], [0], [1], [0, 0, 1, 1], [], []>} : vector<128x128xbf16>, vector<128x32xbf16>, vector<128x32xf32> -> vector<128x32xf32>
    %85 = vector.broadcast %55 : vector<128x1xf32> to vector<128x32xf32>
    %86 = arith.mulf %84, %85 : vector<128x32xf32>
    %87 = arith.truncf %86 : vector<128x32xf32> to vector<128x32xbf16>
    %88 = vector.extract_strided_slice %6 {offsets = [0, 0], sizes = [32, 128], strides = [1, 1]} : vector<128x128xbf16> to vector<32x128xbf16>
    %cst_34 = arith.constant dense<0.000000e+00> : vector<128x128xf32>
    %89 = tpu.matmul %87, %88, %cst_34 {dimension_numbers = #tpu.dot_dimension_numbers<[1], [0], [0], [1], [0, 0, 1, 1], [], []>} : vector<128x32xbf16>, vector<32x128xbf16>, vector<128x128xf32> -> vector<128x128xf32>
    %90 = vector.extract_strided_slice %30 {offsets = [0, 32], sizes = [128, 32], strides = [1, 1]} : vector<128x128xbf16> to vector<128x32xbf16>
    %cst_35 = arith.constant dense<0.000000e+00> : vector<128x32xf32>
    %91 = tpu.matmul %63, %90, %cst_35 {dimension_numbers = #tpu.dot_dimension_numbers<[1], [0], [0], [1], [0, 0, 1, 1], [], []>} : vector<128x128xbf16>, vector<128x32xbf16>, vector<128x32xf32> -> vector<128x32xf32>
    %92 = vector.broadcast %64 : vector<128x1xf32> to vector<128x32xf32>
    %93 = arith.mulf %91, %92 : vector<128x32xf32>
    %94 = arith.truncf %93 : vector<128x32xf32> to vector<128x32xbf16>
    %95 = vector.extract_strided_slice %6 {offsets = [32, 0], sizes = [32, 128], strides = [1, 1]} : vector<128x128xbf16> to vector<32x128xbf16>
    %cst_36 = arith.constant dense<0.000000e+00> : vector<128x128xf32>
    %96 = tpu.matmul %94, %95, %cst_36 {dimension_numbers = #tpu.dot_dimension_numbers<[1], [0], [0], [1], [0, 0, 1, 1], [], []>} : vector<128x32xbf16>, vector<32x128xbf16>, vector<128x128xf32> -> vector<128x128xf32>
    %97 = arith.addf %89, %96 : vector<128x128xf32>
    %98 = vector.extract_strided_slice %30 {offsets = [0, 64], sizes = [128, 32], strides = [1, 1]} : vector<128x128xbf16> to vector<128x32xbf16>
    %cst_37 = arith.constant dense<0.000000e+00> : vector<128x32xf32>
    %99 = tpu.matmul %72, %98, %cst_37 {dimension_numbers = #tpu.dot_dimension_numbers<[1], [0], [0], [1], [0, 0, 1, 1], [], []>} : vector<128x128xbf16>, vector<128x32xbf16>, vector<128x32xf32> -> vector<128x32xf32>
    %100 = vector.broadcast %73 : vector<128x1xf32> to vector<128x32xf32>
    %101 = arith.mulf %99, %100 : vector<128x32xf32>
    %102 = arith.truncf %101 : vector<128x32xf32> to vector<128x32xbf16>
    %103 = vector.extract_strided_slice %6 {offsets = [64, 0], sizes = [32, 128], strides = [1, 1]} : vector<128x128xbf16> to vector<32x128xbf16>
    %cst_38 = arith.constant dense<0.000000e+00> : vector<128x128xf32>
    %104 = tpu.matmul %102, %103, %cst_38 {dimension_numbers = #tpu.dot_dimension_numbers<[1], [0], [0], [1], [0, 0, 1, 1], [], []>} : vector<128x32xbf16>, vector<32x128xbf16>, vector<128x128xf32> -> vector<128x128xf32>
    %105 = arith.addf %97, %104 : vector<128x128xf32>
    %106 = vector.extract_strided_slice %30 {offsets = [0, 96], sizes = [128, 32], strides = [1, 1]} : vector<128x128xbf16> to vector<128x32xbf16>
    %cst_39 = arith.constant dense<0.000000e+00> : vector<128x32xf32>
    %107 = tpu.matmul %81, %106, %cst_39 {dimension_numbers = #tpu.dot_dimension_numbers<[1], [0], [0], [1], [0, 0, 1, 1], [], []>} : vector<128x128xbf16>, vector<128x32xbf16>, vector<128x32xf32> -> vector<128x32xf32>
    %108 = vector.broadcast %82 : vector<128x1xf32> to vector<128x32xf32>
    %109 = arith.mulf %107, %108 : vector<128x32xf32>
    %110 = arith.truncf %109 : vector<128x32xf32> to vector<128x32xbf16>
    %111 = vector.extract_strided_slice %6 {offsets = [96, 0], sizes = [32, 128], strides = [1, 1]} : vector<128x128xbf16> to vector<32x128xbf16>
    %cst_40 = arith.constant dense<0.000000e+00> : vector<128x128xf32>
    %112 = tpu.matmul %110, %111, %cst_40 {dimension_numbers = #tpu.dot_dimension_numbers<[1], [0], [0], [1], [0, 0, 1, 1], [], []>} : vector<128x32xbf16>, vector<32x128xbf16>, vector<128x128xf32> -> vector<128x128xf32>
    %113 = arith.addf %105, %112 : vector<128x128xf32>
    %114 = vector.broadcast %7 : vector<1x128xf32> to vector<128x128xf32>
    %115 = arith.addf %113, %114 : vector<128x128xf32>
    %c0_41 = arith.constant 0 : index
    %c0_42 = arith.constant 0 : index
    %c0_43 = arith.constant 0 : index
    %116 = vector.load %arg8[%c0_41, %c0_42, %c0_43] : memref<2x128x128xf32, #tpu.memory_space<vmem>>, vector<1x128x128xf32>
    %117 = vector.shape_cast %116 : vector<1x128x128xf32> to vector<128x128xf32>
    %118 = vector.shape_cast %115 : vector<128x128xf32> to vector<1x128x128xf32>
    tpu.vector_store %arg8[%c0_41, %c0_42, %c0_43], %118 {strides = array<i32>} : memref<2x128x128xf32, #tpu.memory_space<vmem>>, vector<1x128x128xf32>,
    %c1 = arith.constant 1 : index
    %c0_44 = arith.constant 0 : index
    %c0_45 = arith.constant 0 : index
    %119 = vector.load %arg2[%c1, %c0_44, %c0_45] : memref<2x1x128xf32, #tpu.memory_space<vmem>>, vector<1x1x128xf32>
    %120 = vector.shape_cast %119 : vector<1x1x128xf32> to vector<1x128xf32>
    %cst_46 = arith.constant 0.000000e+00 : f32
    %121 = vector.broadcast %cst_46 : f32 to vector<1x128xf32>
    %122 = arith.cmpf ogt, %120, %121 : vector<1x128xf32>
    %123 = vector.broadcast %122 : vector<1x128xi1> to vector<128x128xi1>
    %124 = arith.andi %123, %18 : vector<128x128xi1>
    %cst_47 = arith.constant 0.000000e+00 : f32
    %cst_48 = arith.constant -1.000000e+30 : f32
    %125 = vector.broadcast %cst_47 : f32 to vector<128x128xf32>
    %126 = vector.broadcast %cst_48 : f32 to vector<128x128xf32>
    %127 = arith.select %124, %125, %126 : vector<128x128xi1>, vector<128x128xf32>
    %128 = vector.extract_strided_slice %13 {offsets = [128, 0], sizes = [128, 128], strides = [1, 1]} : vector<256x128xbf16> to vector<128x128xbf16>
    %129 = vector.extract_strided_slice %14 {offsets = [128, 0], sizes = [128, 128], strides = [1, 1]} : vector<256x128xbf16> to vector<128x128xbf16>
    %130 = vector.extract_strided_slice %15 {offsets = [128, 0], sizes = [128, 128], strides = [1, 1]} : vector<256x128xbf16> to vector<128x128xbf16>
    %131 = vector.extract_strided_slice %128 {offsets = [0, 0], sizes = [128, 32], strides = [1, 1]} : vector<128x128xbf16> to vector<128x32xbf16>
    %132 = vector.extract_strided_slice %129 {offsets = [0, 0], sizes = [128, 32], strides = [1, 1]} : vector<128x128xbf16> to vector<128x32xbf16>
    %cst_49 = arith.constant dense<0.000000e+00> : vector<128x128xf32>
    %133 = tpu.matmul %131, %132, %cst_49 {dimension_numbers = #tpu.dot_dimension_numbers<[1], [1], [0], [0], [0, 0, 1, 0], [], []>} : vector<128x32xbf16>, vector<128x32xbf16>, vector<128x128xf32> -> vector<128x128xf32>
    %134 = arith.addf %133, %127 : vector<128x128xf32>
    %135 = vector.extract_strided_slice %128 {offsets = [0, 32], sizes = [128, 32], strides = [1, 1]} : vector<128x128xbf16> to vector<128x32xbf16>
    %136 = vector.extract_strided_slice %129 {offsets = [0, 32], sizes = [128, 32], strides = [1, 1]} : vector<128x128xbf16> to vector<128x32xbf16>
    %cst_50 = arith.constant dense<0.000000e+00> : vector<128x128xf32>
    %137 = tpu.matmul %135, %136, %cst_50 {dimension_numbers = #tpu.dot_dimension_numbers<[1], [1], [0], [0], [0, 0, 1, 0], [], []>} : vector<128x32xbf16>, vector<128x32xbf16>, vector<128x128xf32> -> vector<128x128xf32>
    %138 = arith.addf %137, %127 : vector<128x128xf32>
    %139 = vector.extract_strided_slice %128 {offsets = [0, 64], sizes = [128, 32], strides = [1, 1]} : vector<128x128xbf16> to vector<128x32xbf16>
    %140 = vector.extract_strided_slice %129 {offsets = [0, 64], sizes = [128, 32], strides = [1, 1]} : vector<128x128xbf16> to vector<128x32xbf16>
    %cst_51 = arith.constant dense<0.000000e+00> : vector<128x128xf32>
    %141 = tpu.matmul %139, %140, %cst_51 {dimension_numbers = #tpu.dot_dimension_numbers<[1], [1], [0], [0], [0, 0, 1, 0], [], []>} : vector<128x32xbf16>, vector<128x32xbf16>, vector<128x128xf32> -> vector<128x128xf32>
    %142 = arith.addf %141, %127 : vector<128x128xf32>
    %143 = vector.extract_strided_slice %128 {offsets = [0, 96], sizes = [128, 32], strides = [1, 1]} : vector<128x128xbf16> to vector<128x32xbf16>
    %144 = vector.extract_strided_slice %129 {offsets = [0, 96], sizes = [128, 32], strides = [1, 1]} : vector<128x128xbf16> to vector<128x32xbf16>
    %cst_52 = arith.constant dense<0.000000e+00> : vector<128x128xf32>
    %145 = tpu.matmul %143, %144, %cst_52 {dimension_numbers = #tpu.dot_dimension_numbers<[1], [1], [0], [0], [0, 0, 1, 0], [], []>} : vector<128x32xbf16>, vector<128x32xbf16>, vector<128x128xf32> -> vector<128x128xf32>
    %146 = arith.addf %145, %127 : vector<128x128xf32>
    %cst_53 = arith.constant dense<0xFF800000> : vector<128xf32>
    %147 = vector.multi_reduction <maximumf>, %134, %cst_53 [1] : vector<128x128xf32> to vector<128xf32>
    %148 = vector.shape_cast %147 : vector<128xf32> to vector<128x1xf32>
    %149 = vector.broadcast %148 : vector<128x1xf32> to vector<128x128xf32>
    %150 = arith.subf %134, %149 : vector<128x128xf32>
    %151 = math.exp %150 : vector<128x128xf32>
    %cst_54 = arith.constant dense<0.000000e+00> : vector<128xf32>
    %152 = vector.multi_reduction <add>, %151, %cst_54 [1] : vector<128x128xf32> to vector<128xf32>
    %153 = vector.shape_cast %152 : vector<128xf32> to vector<128x1xf32>
    %154 = arith.truncf %151 : vector<128x128xf32> to vector<128x128xbf16>
    %155 = tpu.reciprocal %153 {approx = true} : vector<128x1xf32> -> vector<128x1xf32>
    %cst_55 = arith.constant dense<0xFF800000> : vector<128xf32>
    %156 = vector.multi_reduction <maximumf>, %138, %cst_55 [1] : vector<128x128xf32> to vector<128xf32>
    %157 = vector.shape_cast %156 : vector<128xf32> to vector<128x1xf32>
    %158 = vector.broadcast %157 : vector<128x1xf32> to vector<128x128xf32>
    %159 = arith.subf %138, %158 : vector<128x128xf32>
    %160 = math.exp %159 : vector<128x128xf32>
    %cst_56 = arith.constant dense<0.000000e+00> : vector<128xf32>
    %161 = vector.multi_reduction <add>, %160, %cst_56 [1] : vector<128x128xf32> to vector<128xf32>
    %162 = vector.shape_cast %161 : vector<128xf32> to vector<128x1xf32>
    %163 = arith.truncf %160 : vector<128x128xf32> to vector<128x128xbf16>
    %164 = tpu.reciprocal %162 {approx = true} : vector<128x1xf32> -> vector<128x1xf32>
    %cst_57 = arith.constant dense<0xFF800000> : vector<128xf32>
    %165 = vector.multi_reduction <maximumf>, %142, %cst_57 [1] : vector<128x128xf32> to vector<128xf32>
    %166 = vector.shape_cast %165 : vector<128xf32> to vector<128x1xf32>
    %167 = vector.broadcast %166 : vector<128x1xf32> to vector<128x128xf32>
    %168 = arith.subf %142, %167 : vector<128x128xf32>
    %169 = math.exp %168 : vector<128x128xf32>
    %cst_58 = arith.constant dense<0.000000e+00> : vector<128xf32>
    %170 = vector.multi_reduction <add>, %169, %cst_58 [1] : vector<128x128xf32> to vector<128xf32>
    %171 = vector.shape_cast %170 : vector<128xf32> to vector<128x1xf32>
    %172 = arith.truncf %169 : vector<128x128xf32> to vector<128x128xbf16>
    %173 = tpu.reciprocal %171 {approx = true} : vector<128x1xf32> -> vector<128x1xf32>
    %cst_59 = arith.constant dense<0xFF800000> : vector<128xf32>
    %174 = vector.multi_reduction <maximumf>, %146, %cst_59 [1] : vector<128x128xf32> to vector<128xf32>
    %175 = vector.shape_cast %174 : vector<128xf32> to vector<128x1xf32>
    %176 = vector.broadcast %175 : vector<128x1xf32> to vector<128x128xf32>
    %177 = arith.subf %146, %176 : vector<128x128xf32>
    %178 = math.exp %177 : vector<128x128xf32>
    %cst_60 = arith.constant dense<0.000000e+00> : vector<128xf32>
    %179 = vector.multi_reduction <add>, %178, %cst_60 [1] : vector<128x128xf32> to vector<128xf32>
    %180 = vector.shape_cast %179 : vector<128xf32> to vector<128x1xf32>
    %181 = arith.truncf %178 : vector<128x128xf32> to vector<128x128xbf16>
    %182 = tpu.reciprocal %180 {approx = true} : vector<128x1xf32> -> vector<128x1xf32>
    %183 = vector.extract_strided_slice %130 {offsets = [0, 0], sizes = [128, 32], strides = [1, 1]} : vector<128x128xbf16> to vector<128x32xbf16>
    %cst_61 = arith.constant dense<0.000000e+00> : vector<128x32xf32>
    %184 = tpu.matmul %154, %183, %cst_61 {dimension_numbers = #tpu.dot_dimension_numbers<[1], [0], [0], [1], [0, 0, 1, 1], [], []>} : vector<128x128xbf16>, vector<128x32xbf16>, vector<128x32xf32> -> vector<128x32xf32>
    %185 = vector.broadcast %155 : vector<128x1xf32> to vector<128x32xf32>
    %186 = arith.mulf %184, %185 : vector<128x32xf32>
    %187 = arith.truncf %186 : vector<128x32xf32> to vector<128x32xbf16>
    %188 = vector.extract_strided_slice %6 {offsets = [0, 0], sizes = [32, 128], strides = [1, 1]} : vector<128x128xbf16> to vector<32x128xbf16>
    %cst_62 = arith.constant dense<0.000000e+00> : vector<128x128xf32>
    %189 = tpu.matmul %187, %188, %cst_62 {dimension_numbers = #tpu.dot_dimension_numbers<[1], [0], [0], [1], [0, 0, 1, 1], [], []>} : vector<128x32xbf16>, vector<32x128xbf16>, vector<128x128xf32> -> vector<128x128xf32>
    %190 = vector.extract_strided_slice %130 {offsets = [0, 32], sizes = [128, 32], strides = [1, 1]} : vector<128x128xbf16> to vector<128x32xbf16>
    %cst_63 = arith.constant dense<0.000000e+00> : vector<128x32xf32>
    %191 = tpu.matmul %163, %190, %cst_63 {dimension_numbers = #tpu.dot_dimension_numbers<[1], [0], [0], [1], [0, 0, 1, 1], [], []>} : vector<128x128xbf16>, vector<128x32xbf16>, vector<128x32xf32> -> vector<128x32xf32>
    %192 = vector.broadcast %164 : vector<128x1xf32> to vector<128x32xf32>
    %193 = arith.mulf %191, %192 : vector<128x32xf32>
    %194 = arith.truncf %193 : vector<128x32xf32> to vector<128x32xbf16>
    %195 = vector.extract_strided_slice %6 {offsets = [32, 0], sizes = [32, 128], strides = [1, 1]} : vector<128x128xbf16> to vector<32x128xbf16>
    %cst_64 = arith.constant dense<0.000000e+00> : vector<128x128xf32>
    %196 = tpu.matmul %194, %195, %cst_64 {dimension_numbers = #tpu.dot_dimension_numbers<[1], [0], [0], [1], [0, 0, 1, 1], [], []>} : vector<128x32xbf16>, vector<32x128xbf16>, vector<128x128xf32> -> vector<128x128xf32>
    %197 = arith.addf %189, %196 : vector<128x128xf32>
    %198 = vector.extract_strided_slice %130 {offsets = [0, 64], sizes = [128, 32], strides = [1, 1]} : vector<128x128xbf16> to vector<128x32xbf16>
    %cst_65 = arith.constant dense<0.000000e+00> : vector<128x32xf32>
    %199 = tpu.matmul %172, %198, %cst_65 {dimension_numbers = #tpu.dot_dimension_numbers<[1], [0], [0], [1], [0, 0, 1, 1], [], []>} : vector<128x128xbf16>, vector<128x32xbf16>, vector<128x32xf32> -> vector<128x32xf32>
    %200 = vector.broadcast %173 : vector<128x1xf32> to vector<128x32xf32>
    %201 = arith.mulf %199, %200 : vector<128x32xf32>
    %202 = arith.truncf %201 : vector<128x32xf32> to vector<128x32xbf16>
    %203 = vector.extract_strided_slice %6 {offsets = [64, 0], sizes = [32, 128], strides = [1, 1]} : vector<128x128xbf16> to vector<32x128xbf16>
    %cst_66 = arith.constant dense<0.000000e+00> : vector<128x128xf32>
    %204 = tpu.matmul %202, %203, %cst_66 {dimension_numbers = #tpu.dot_dimension_numbers<[1], [0], [0], [1], [0, 0, 1, 1], [], []>} : vector<128x32xbf16>, vector<32x128xbf16>, vector<128x128xf32> -> vector<128x128xf32>
    %205 = arith.addf %197, %204 : vector<128x128xf32>
    %206 = vector.extract_strided_slice %130 {offsets = [0, 96], sizes = [128, 32], strides = [1, 1]} : vector<128x128xbf16> to vector<128x32xbf16>
    %cst_67 = arith.constant dense<0.000000e+00> : vector<128x32xf32>
    %207 = tpu.matmul %181, %206, %cst_67 {dimension_numbers = #tpu.dot_dimension_numbers<[1], [0], [0], [1], [0, 0, 1, 1], [], []>} : vector<128x128xbf16>, vector<128x32xbf16>, vector<128x32xf32> -> vector<128x32xf32>
    %208 = vector.broadcast %182 : vector<128x1xf32> to vector<128x32xf32>
    %209 = arith.mulf %207, %208 : vector<128x32xf32>
    %210 = arith.truncf %209 : vector<128x32xf32> to vector<128x32xbf16>
    %211 = vector.extract_strided_slice %6 {offsets = [96, 0], sizes = [32, 128], strides = [1, 1]} : vector<128x128xbf16> to vector<32x128xbf16>
    %cst_68 = arith.constant dense<0.000000e+00> : vector<128x128xf32>
    %212 = tpu.matmul %210, %211, %cst_68 {dimension_numbers = #tpu.dot_dimension_numbers<[1], [0], [0], [1], [0, 0, 1, 1], [], []>} : vector<128x32xbf16>, vector<32x128xbf16>, vector<128x128xf32> -> vector<128x128xf32>
    %213 = arith.addf %205, %212 : vector<128x128xf32>
    %214 = vector.broadcast %7 : vector<1x128xf32> to vector<128x128xf32>
    %215 = arith.addf %213, %214 : vector<128x128xf32>
    %c1_69 = arith.constant 1 : index
    %c0_70 = arith.constant 0 : index
    %c0_71 = arith.constant 0 : index
    %216 = vector.load %arg8[%c1_69, %c0_70, %c0_71] : memref<2x128x128xf32, #tpu.memory_space<vmem>>, vector<1x128x128xf32>
    %217 = vector.shape_cast %216 : vector<1x128x128xf32> to vector<128x128xf32>
    %218 = vector.shape_cast %215 : vector<128x128xf32> to vector<1x128x128xf32>
    tpu.vector_store %arg8[%c1_69, %c0_70, %c0_71], %218 {strides = array<i32>} : memref<2x128x128xf32, #tpu.memory_space<vmem>>, vector<1x128x128xf32>,
    return
  }
  func.func @transform_0(%arg0: i32) -> (i32, i32, i32) {
    %c0_i32 = arith.constant 0 : i32
    %c0_i32_0 = arith.constant 0 : i32
    %c0_i32_1 = arith.constant 0 : i32
    return %arg0, %c0_i32, %c0_i32_0 : i32, i32, i32
  }
  func.func @transform_1(%arg0: i32) -> (i32, i32, i32) {
    %c0_i32 = arith.constant 0 : i32
    %c0_i32_0 = arith.constant 0 : i32
    %c0_i32_1 = arith.constant 0 : i32
    return %arg0, %c0_i32, %c0_i32_0 : i32, i32, i32
  }
  func.func @transform_2(%arg0: i32) -> (i32, i32) {
    %c0_i32 = arith.constant 0 : i32
    %c0_i32_0 = arith.constant 0 : i32
    %c0_i32_1 = arith.constant 0 : i32
    return %c0_i32, %c0_i32_0 : i32, i32
  }
  func.func @transform_3(%arg0: i32) -> (i32, i32) {
    %c0_i32 = arith.constant 0 : i32
    %c0_i32_0 = arith.constant 0 : i32
    %c0_i32_1 = arith.constant 0 : i32
    return %c0_i32, %c0_i32_0 : i32, i32
  }
  func.func @transform_4(%arg0: i32) -> (i32, i32) {
    %c0_i32 = arith.constant 0 : i32
    %c0_i32_0 = arith.constant 0 : i32
    %c0_i32_1 = arith.constant 0 : i32
    return %c0_i32, %c0_i32_0 : i32, i32
  }
  func.func @transform_5(%arg0: i32) -> (i32, i32) {
    %c0_i32 = arith.constant 0 : i32
    %c0_i32_0 = arith.constant 0 : i32
    %c0_i32_1 = arith.constant 0 : i32
    return %c0_i32, %c0_i32_0 : i32, i32
  }
  func.func @transform_6(%arg0: i32) -> (i32, i32) {
    %c0_i32 = arith.constant 0 : i32
    %c0_i32_0 = arith.constant 0 : i32
    %c0_i32_1 = arith.constant 0 : i32
    return %c0_i32, %c0_i32_0 : i32, i32
  }
  func.func @transform_7(%arg0: i32) -> (i32, i32, i32) {
    %c0_i32 = arith.constant 0 : i32
    %c0_i32_0 = arith.constant 0 : i32
    %c0_i32_1 = arith.constant 0 : i32
    return %arg0, %c0_i32, %c0_i32_0 : i32, i32, i32
  }
}

</mosaic_0001>

<llo_original>
// kernel: tpu_custom_call.1
$region0: #{tpu_custom_call.1}
  #allocation0 [shape = 'u32[]', space=smem, size = 0x4, offset = 0x4, fixed_abs, tag = 'smem constant byte address 0x4 - core index']
  #allocation1 [shape = 'u32[144,128]{1,0:T(1,128)}', space=vmem, size = 0x12000, scoped, tag = 'internal scratch']
  %s0 = inlined_call_operand.hbm [shape: f32[2,128,128], index: 0, kind: input, shape index: {}]
  %s1 = inlined_call_operand.vmem [shape: f32[2,1,128], index: 1, kind: input, shape index: {}]
  %s2 = inlined_call_operand.hbm [shape: bf16[128,128], index: 2, kind: input, shape index: {}]
  %s3 = inlined_call_operand.hbm [shape: bf16[128,128], index: 3, kind: input, shape index: {}]
  %s4 = inlined_call_operand.hbm [shape: bf16[128,128], index: 4, kind: input, shape index: {}]
  %s5 = inlined_call_operand.hbm [shape: bf16[128,128], index: 5, kind: input, shape index: {}]
  %s6 = inlined_call_operand.vmem [shape: f32[1,128], index: 6, kind: input, shape index: {}]
  %s7 = inlined_call_operand.hbm [shape: f32[2,128,128], index: 7, kind: output, shape index: {}]
  %s8 = sld [smem:[#allocation0]]
  $region58: #{tpu_custom_call.1} parent=0
    _
  %s10 = ssub.s32 1, %s8
  %s11 = scalar_select 0, %s10, %s8
  $region1: #{tpu_custom_call.1} parent=0
    #allocation2 [shape = 'u8[131072]{0}', space=vmem, size = 0x20000, scoped, tag = 'input window, operand 0, single buffered']
    #allocation3 [shape = 's32[1]{0}', space=sflag, size = 0x4, scoped, tag = 'scoped memory for tpu_custom_call.1']
    #allocation4 [shape = 's32[1]{0}', space=sflag, size = 0x4, scoped, tag = 'scoped memory for tpu_custom_call.1']
    #allocation5 [shape = 'u8[32768]{0}', space=vmem, size = 0x8000, scoped, tag = 'input window, operand 2, single buffered']
    #allocation6 [shape = 's32[1]{0}', space=sflag, size = 0x4, scoped, tag = 'scoped memory for tpu_custom_call.1']
    #allocation7 [shape = 'u8[32768]{0}', space=vmem, size = 0x8000, scoped, tag = 'input window, operand 3, single buffered']
    #allocation8 [shape = 'u8[32768]{0}', space=vmem, size = 0x8000, scoped, tag = 'input window, operand 4, single buffered']
    #allocation9 [shape = 's32[1]{0}', space=sflag, size = 0x4, scoped, tag = 'scoped memory for tpu_custom_call.1']
    #allocation10 [shape = 'u8[32768]{0}', space=vmem, size = 0x8000, scoped, tag = 'input window, operand 5, single buffered']
    #allocation11 [shape = 'u8[131072]{0}', space=vmem, size = 0x20000, scoped, tag = 'output window, operand 0, single buffered']
    %12 = vsyncpa [#allocation3], 0
    %13 = vsyncpa [#allocation6], 0
    %14 = vsyncpa [#allocation9], 0
    %15 = vsyncpa [#allocation4], 0
    // Predicated region
    $region2: #{tpu_custom_call.1} parent=1 // pred_check
      _
    $region3: #{tpu_custom_call.1} parent=1 // pred_check_branch
      %17 = sbr.rel (0) target = $region5
    $region4: #{tpu_custom_call.1} parent=1 // pred_region
      %s19 = ssub.s32 4096, 4096
      %20 = vsyncadd [#allocation3], %s19
      %s21 = sshll.u32 [#allocation2], 4
      %s22 = int_to_ptr.vmem [resolvable:$true] %s21
      %27 = dma.hbm_to_vmem [thread:$0]  %s0, 4096, %s22, [#allocation3], 128, 128, 8
    $region5: #{tpu_custom_call.1} parent=1 // pred_fallthru
      _
    // Predicated region
    $region6: #{tpu_custom_call.1} parent=1 // pred_check
      _
    $region7: #{tpu_custom_call.1} parent=1 // pred_check_branch
      %29 = sbr.rel (0) target = $region9
    $region8: #{tpu_custom_call.1} parent=1 // pred_region
      _
    $region9: #{tpu_custom_call.1} parent=1 // pred_fallthru
      _
    // Predicated region
    $region10: #{tpu_custom_call.1} parent=1 // pred_check
      _
    $region11: #{tpu_custom_call.1} parent=1 // pred_check_branch
      %31 = sbr.rel (0) target = $region13
    $region12: #{tpu_custom_call.1} parent=1 // pred_region
      %s33 = ssub.s32 1024, 1024
      %34 = vsyncadd [#allocation6], %s33
      %s35 = sshll.u32 [#allocation5], 4
      %s36 = int_to_ptr.vmem [resolvable:$true] %s35
      %41 = dma.hbm_to_vmem [thread:$0]  %s2, 1024, %s36, [#allocation6], 64, 64, 4
    $region13: #{tpu_custom_call.1} parent=1 // pred_fallthru
      _
    // Predicated region
    $region14: #{tpu_custom_call.1} parent=1 // pred_check
      _
    $region15: #{tpu_custom_call.1} parent=1 // pred_check_branch
      %43 = sbr.rel (0) target = $region17
    $region16: #{tpu_custom_call.1} parent=1 // pred_region
      %s45 = ssub.s32 1024, 1024
      %46 = vsyncadd [#allocation6], %s45
      %s47 = sshll.u32 [#allocation7], 4
      %s48 = int_to_ptr.vmem [resolvable:$true] %s47
      %53 = dma.hbm_to_vmem [thread:$0]  %s3, 1024, %s48, [#allocation6], 64, 64, 4
    $region17: #{tpu_custom_call.1} parent=1 // pred_fallthru
      _
    // Predicated region
    $region18: #{tpu_custom_call.1} parent=1 // pred_check
      _
    $region19: #{tpu_custom_call.1} parent=1 // pred_check_branch
      %55 = sbr.rel (0) target = $region21
    $region20: #{tpu_custom_call.1} parent=1 // pred_region
      %s57 = ssub.s32 1024, 1024
      %58 = vsyncadd [#allocation9], %s57
      %s59 = sshll.u32 [#allocation8], 4
      %s60 = int_to_ptr.vmem [resolvable:$true] %s59
      %65 = dma.hbm_to_vmem [thread:$0]  %s4, 1024, %s60, [#allocation9], 64, 64, 4
    $region21: #{tpu_custom_call.1} parent=1 // pred_fallthru
      _
    // Predicated region
    $region22: #{tpu_custom_call.1} parent=1 // pred_check
      _
    $region23: #{tpu_custom_call.1} parent=1 // pred_check_branch
      %67 = sbr.rel (0) target = $region25
    $region24: #{tpu_custom_call.1} parent=1 // pred_region
      %s69 = ssub.s32 1024, 1024
      %70 = vsyncadd [#allocation9], %s69
      %s71 = sshll.u32 [#allocation10], 4
      %s72 = int_to_ptr.vmem [resolvable:$true] %s71
      %77 = dma.hbm_to_vmem [thread:$0]  %s5, 1024, %s72, [#allocation9], 64, 64, 4
    $region25: #{tpu_custom_call.1} parent=1 // pred_fallthru
      _
    // Predicated region
    $region26: #{tpu_custom_call.1} parent=1 // pred_check
      _
    $region27: #{tpu_custom_call.1} parent=1 // pred_check_branch
      %79 = sbr.rel (0) target = $region29
    $region28: #{tpu_custom_call.1} parent=1 // pred_region
      _
    $region29: #{tpu_custom_call.1} parent=1 // pred_fallthru
      _
    // Predicated region
    $region30: #{tpu_custom_call.1} parent=1 // pred_check
      _
    $region31: #{tpu_custom_call.1} parent=1 // pred_check_branch
      %81 = sbr.rel (0) target = $region33
    $region32: #{tpu_custom_call.1} parent=1 // pred_region
      %82 = dma.done [#allocation3], 4096
    $region33: #{tpu_custom_call.1} parent=1 // pred_fallthru
      _
    // Predicated region
    $region34: #{tpu_custom_call.1} parent=1 // pred_check
      _
    $region35: #{tpu_custom_call.1} parent=1 // pred_check_branch
      %84 = sbr.rel (0) target = $region37
    $region36: #{tpu_custom_call.1} parent=1 // pred_region
      %85 = dma.done [#allocation6], 1024
    $region37: #{tpu_custom_call.1} parent=1 // pred_fallthru
      _
    // Predicated region
    $region38: #{tpu_custom_call.1} parent=1 // pred_check
      _
    $region39: #{tpu_custom_call.1} parent=1 // pred_check_branch
      %87 = sbr.rel (0) target = $region41
    $region40: #{tpu_custom_call.1} parent=1 // pred_region
      %88 = dma.done [#allocation6], 1024
    $region41: #{tpu_custom_call.1} parent=1 // pred_fallthru
      _
    // Predicated region
    $region42: #{tpu_custom_call.1} parent=1 // pred_check
      _
    $region43: #{tpu_custom_call.1} parent=1 // pred_check_branch
      %90 = sbr.rel (0) target = $region45
    $region44: #{tpu_custom_call.1} parent=1 // pred_region
      %91 = dma.done [#allocation9], 1024
    $region45: #{tpu_custom_call.1} parent=1 // pred_fallthru
      _
    // Predicated region
    $region46: #{tpu_custom_call.1} parent=1 // pred_check
      _
    $region47: #{tpu_custom_call.1} parent=1 // pred_check_branch
      %93 = sbr.rel (0) target = $region49
    $region48: #{tpu_custom_call.1} parent=1 // pred_region
      %94 = dma.done [#allocation9], 1024
    $region49: #{tpu_custom_call.1} parent=1 // pred_fallthru
      _
    %v96 = vld [vmem:[#allocation2] sm:$0xff]
    %v97 = vld [vmem:[#allocation2 + $0x8] sm:$0xff]
    %v98 = vld [vmem:[#allocation2 + $0x10] sm:$0xff]
    %v99 = vld [vmem:[#allocation2 + $0x18] sm:$0xff]
    %v100 = vld [vmem:[#allocation2 + $0x20] sm:$0xff]
    %v101 = vld [vmem:[#allocation2 + $0x28] sm:$0xff]
    %v102 = vld [vmem:[#allocation2 + $0x30] sm:$0xff]
    %v103 = vld [vmem:[#allocation2 + $0x38] sm:$0xff]
    %v104 = vld [vmem:[#allocation2 + $0x40] sm:$0xff]
    %v105 = vld [vmem:[#allocation2 + $0x48] sm:$0xff]
    %v106 = vld [vmem:[#allocation2 + $0x50] sm:$0xff]
    %v107 = vld [vmem:[#allocation2 + $0x58] sm:$0xff]
    %v108 = vld [vmem:[#allocation2 + $0x60] sm:$0xff]
    %v109 = vld [vmem:[#allocation2 + $0x68] sm:$0xff]
    %v110 = vld [vmem:[#allocation2 + $0x70] sm:$0xff]
    %v111 = vld [vmem:[#allocation2 + $0x78] sm:$0xff]
    %v112 = vld [vmem:[#allocation2 + $0x80] sm:$0xff]
    %v113 = vld [vmem:[#allocation2 + $0x88] sm:$0xff]
    %v114 = vld [vmem:[#allocation2 + $0x90] sm:$0xff]
    %v115 = vld [vmem:[#allocation2 + $0x98] sm:$0xff]
    %v116 = vld [vmem:[#allocation2 + $0xa0] sm:$0xff]
    %v117 = vld [vmem:[#allocation2 + $0xa8] sm:$0xff]
    %v118 = vld [vmem:[#allocation2 + $0xb0] sm:$0xff]
    %v119 = vld [vmem:[#allocation2 + $0xb8] sm:$0xff]
    %v120 = vld [vmem:[#allocation2 + $0xc0] sm:$0xff]
    %v121 = vld [vmem:[#allocation2 + $0xc8] sm:$0xff]
    %v122 = vld [vmem:[#allocation2 + $0xd0] sm:$0xff]
    %v123 = vld [vmem:[#allocation2 + $0xd8] sm:$0xff]
    %v124 = vld [vmem:[#allocation2 + $0xe0] sm:$0xff]
    %v125 = vld [vmem:[#allocation2 + $0xe8] sm:$0xff]
    %v126 = vld [vmem:[#allocation2 + $0xf0] sm:$0xff]
    %v127 = vld [vmem:[#allocation2 + $0xf8] sm:$0xff]
    %v128 = vpack.c.bf16 %v97, %v96
    %v129 = vpack.c.bf16 %v99, %v98
    %v130 = vpack.c.bf16 %v101, %v100
    %v131 = vpack.c.bf16 %v103, %v102
    %v132 = vpack.c.bf16 %v105, %v104
    %v133 = vpack.c.bf16 %v107, %v106
    %v134 = vpack.c.bf16 %v109, %v108
    %v135 = vpack.c.bf16 %v111, %v110
    %v136 = vpack.c.bf16 %v113, %v112
    %v137 = vpack.c.bf16 %v115, %v114
    %v138 = vpack.c.bf16 %v117, %v116
    %v139 = vpack.c.bf16 %v119, %v118
    %v140 = vpack.c.bf16 %v121, %v120
    %v141 = vpack.c.bf16 %v123, %v122
    %v142 = vpack.c.bf16 %v125, %v124
    %v143 = vpack.c.bf16 %v127, %v126
    %v144 = vld [vmem:[#allocation5] sm:$0xf]
    %v145 = vld [vmem:[#allocation5 + $0x4] sm:$0xf]
    %v146 = vld [vmem:[#allocation5 + $0x8] sm:$0xf]
    %v147 = vld [vmem:[#allocation5 + $0xc] sm:$0xf]
    %v148 = vld [vmem:[#allocation5 + $0x10] sm:$0xf]
    %v149 = vld [vmem:[#allocation5 + $0x14] sm:$0xf]
    %v150 = vld [vmem:[#allocation5 + $0x18] sm:$0xf]
    %v151 = vld [vmem:[#allocation5 + $0x1c] sm:$0xf]
    %v152 = vld [vmem:[#allocation5 + $0x20] sm:$0xf]
    %v153 = vld [vmem:[#allocation5 + $0x24] sm:$0xf]
    %v154 = vld [vmem:[#allocation5 + $0x28] sm:$0xf]
    %v155 = vld [vmem:[#allocation5 + $0x2c] sm:$0xf]
    %v156 = vld [vmem:[#allocation5 + $0x30] sm:$0xf]
    %v157 = vld [vmem:[#allocation5 + $0x34] sm:$0xf]
    %v158 = vld [vmem:[#allocation5 + $0x38] sm:$0xf]
    %v159 = vld [vmem:[#allocation5 + $0x3c] sm:$0xf]
    %v160 = vld [vmem:[#allocation7] sm:$0xf]
    %v161 = vld [vmem:[#allocation7 + $0x4] sm:$0xf]
    %v162 = vld [vmem:[#allocation7 + $0x8] sm:$0xf]
    %v163 = vld [vmem:[#allocation7 + $0xc] sm:$0xf]
    %v164 = vld [vmem:[#allocation7 + $0x10] sm:$0xf]
    %v165 = vld [vmem:[#allocation7 + $0x14] sm:$0xf]
    %v166 = vld [vmem:[#allocation7 + $0x18] sm:$0xf]
    %v167 = vld [vmem:[#allocation7 + $0x1c] sm:$0xf]
    %v168 = vld [vmem:[#allocation7 + $0x20] sm:$0xf]
    %v169 = vld [vmem:[#allocation7 + $0x24] sm:$0xf]
    %v170 = vld [vmem:[#allocation7 + $0x28] sm:$0xf]
    %v171 = vld [vmem:[#allocation7 + $0x2c] sm:$0xf]
    %v172 = vld [vmem:[#allocation7 + $0x30] sm:$0xf]
    %v173 = vld [vmem:[#allocation7 + $0x34] sm:$0xf]
    %v174 = vld [vmem:[#allocation7 + $0x38] sm:$0xf]
    %v175 = vld [vmem:[#allocation7 + $0x3c] sm:$0xf]
    %v176 = vld [vmem:[#allocation8] sm:$0xf]
    %v177 = vld [vmem:[#allocation8 + $0x4] sm:$0xf]
    %v178 = vld [vmem:[#allocation8 + $0x8] sm:$0xf]
    %v179 = vld [vmem:[#allocation8 + $0xc] sm:$0xf]
    %v180 = vld [vmem:[#allocation8 + $0x10] sm:$0xf]
    %v181 = vld [vmem:[#allocation8 + $0x14] sm:$0xf]
    %v182 = vld [vmem:[#allocation8 + $0x18] sm:$0xf]
    %v183 = vld [vmem:[#allocation8 + $0x1c] sm:$0xf]
    %v184 = vld [vmem:[#allocation8 + $0x20] sm:$0xf]
    %v185 = vld [vmem:[#allocation8 + $0x24] sm:$0xf]
    %v186 = vld [vmem:[#allocation8 + $0x28] sm:$0xf]
    %v187 = vld [vmem:[#allocation8 + $0x2c] sm:$0xf]
    %v188 = vld [vmem:[#allocation8 + $0x30] sm:$0xf]
    %v189 = vld [vmem:[#allocation8 + $0x34] sm:$0xf]
    %v190 = vld [vmem:[#allocation8 + $0x38] sm:$0xf]
    %v191 = vld [vmem:[#allocation8 + $0x3c] sm:$0xf]
    %v192 = vld [vmem:[#allocation10] sm:$0xf]
    %v193 = vld [vmem:[#allocation10 + $0x4] sm:$0xf]
    %v194 = vld [vmem:[#allocation10 + $0x8] sm:$0xf]
    %v195 = vld [vmem:[#allocation10 + $0xc] sm:$0xf]
    %v196 = vld [vmem:[#allocation10 + $0x10] sm:$0xf]
    %v197 = vld [vmem:[#allocation10 + $0x14] sm:$0xf]
    %v198 = vld [vmem:[#allocation10 + $0x18] sm:$0xf]
    %v199 = vld [vmem:[#allocation10 + $0x1c] sm:$0xf]
    %v200 = vld [vmem:[#allocation10 + $0x20] sm:$0xf]
    %v201 = vld [vmem:[#allocation10 + $0x24] sm:$0xf]
    %v202 = vld [vmem:[#allocation10 + $0x28] sm:$0xf]
    %v203 = vld [vmem:[#allocation10 + $0x2c] sm:$0xf]
    %v204 = vld [vmem:[#allocation10 + $0x30] sm:$0xf]
    %v205 = vld [vmem:[#allocation10 + $0x34] sm:$0xf]
    %v206 = vld [vmem:[#allocation10 + $0x38] sm:$0xf]
    %v207 = vld [vmem:[#allocation10 + $0x3c] sm:$0xf]
    %v208 = vld [vmem:[%s6] sm:$0x1]
    %v225 = vunpack.c.l.b16 %v144
    %v226 = vunpack.c.l.b16 %v145
    %v227 = vunpack.c.l.b16 %v146
    %v228 = vunpack.c.l.b16 %v147
    %v229 = vunpack.c.l.b16 %v148
    %v230 = vunpack.c.l.b16 %v149
    %v231 = vunpack.c.l.b16 %v150
    %v232 = vunpack.c.l.b16 %v151
    %v233 = vunpack.c.l.b16 %v152
    %v234 = vunpack.c.l.b16 %v153
    %v235 = vunpack.c.l.b16 %v154
    %v236 = vunpack.c.l.b16 %v155
    %v237 = vunpack.c.l.b16 %v156
    %v238 = vunpack.c.l.b16 %v157
    %v239 = vunpack.c.l.b16 %v158
    %v240 = vunpack.c.l.b16 %v159
    %v241 = vpack.c.b16 %v226, %v225
    %v242 = vpack.c.b16 %v228, %v227
    %v243 = vpack.c.b16 %v230, %v229
    %v244 = vpack.c.b16 %v232, %v231
    %v245 = vpack.c.b16 %v234, %v233
    %v246 = vpack.c.b16 %v236, %v235
    %v247 = vpack.c.b16 %v238, %v237
    %v248 = vpack.c.b16 %v240, %v239
    %257 = vmatprep.subr.bf16.mxu0 0
    %258 = vmatpush1.bf16.msra.mxu0 %v241
    %259 = vmatprep.subr.bf16.mxu0 0
    %260 = vmatpush1.bf16.msra.mxu0 %v242
    %261 = vmatprep.subr.bf16.mxu0 0
    %262 = vmatpush1.bf16.msra.mxu0 %v243
    %263 = vmatprep.subr.bf16.mxu0 0
    %264 = vmatpush1.bf16.msra.mxu0 %v244
    %265 = vmatprep.subr.bf16.mxu0 0
    %266 = vmatpush1.bf16.msra.mxu0 %v245
    %267 = vmatprep.subr.bf16.mxu0 0
    %268 = vmatpush1.bf16.msra.mxu0 %v246
    %269 = vmatprep.subr.bf16.mxu0 0
    %270 = vmatpush1.bf16.msra.mxu0 %v247
    %271 = vmatprep.subr.bf16.mxu0 0
    %272 = vmatpush1.bf16.msra.mxu0 %v248
    %273 = vmatprep.subr.bf16.mxu0 0
    %274 = vmatpush1.bf16.msra.mxu0 0
    %275 = vmatprep.subr.bf16.mxu0 0
    %276 = vmatpush1.bf16.msra.mxu0 0
    %277 = vmatprep.subr.bf16.mxu0 0
    %278 = vmatpush1.bf16.msra.mxu0 0
    %279 = vmatprep.subr.bf16.mxu0 0
    %280 = vmatpush1.bf16.msra.mxu0 0
    %281 = vmatprep.subr.bf16.mxu0 0
    %282 = vmatpush1.bf16.msra.mxu0 0
    %283 = vmatprep.subr.bf16.mxu0 0
    %284 = vmatpush1.bf16.msra.mxu0 0
    %285 = vmatprep.subr.bf16.mxu0 0
    %286 = vmatpush1.bf16.msra.mxu0 0
    %287 = vmatprep.subr.bf16.mxu0 0
    %288 = vmatpush1.bf16.msra.mxu0 0
    %289 = vmatprep.mubr.bf16.mxu0 0
    %290 = vmatmul.mubr.bf16.gmra.mrb[0].mxu0 %v128
    %v291 = vpop.f32.mrb[0].mxu0
    %v292 = vadd.f32 0.0, %v291
    %v293 = vpop.f32.mrb[0].mxu0
    %v294 = vpop.f32.mrb[0].mxu0
    %v295 = vadd.f32 0.0, %v294
    %v296 = vpop.f32.mrb[0].mxu0
    %297 = vmatprep.mubr.bf16.mxu0 0
    %298 = vmatmul.mubr.bf16.gmra.mrb[0].mxu0 %v129
    %v299 = vpop.f32.mrb[0].mxu0
    %v300 = vadd.f32 0.0, %v299
    %v301 = vpop.f32.mrb[0].mxu0
    %v302 = vpop.f32.mrb[0].mxu0
    %v303 = vadd.f32 0.0, %v302
    %v304 = vpop.f32.mrb[0].mxu0
    %305 = vmatprep.mubr.bf16.mxu0 0
    %306 = vmatmul.mubr.bf16.gmra.mrb[0].mxu0 %v130
    %v307 = vpop.f32.mrb[0].mxu0
    %v308 = vadd.f32 0.0, %v307
    %v309 = vpop.f32.mrb[0].mxu0
    %v310 = vpop.f32.mrb[0].mxu0
    %v311 = vadd.f32 0.0, %v310
    %v312 = vpop.f32.mrb[0].mxu0
    %313 = vmatprep.mubr.bf16.mxu0 0
    %314 = vmatmul.mubr.bf16.gmra.mrb[0].mxu0 %v131
    %v315 = vpop.f32.mrb[0].mxu0
    %v316 = vadd.f32 0.0, %v315
    %v317 = vpop.f32.mrb[0].mxu0
    %v318 = vpop.f32.mrb[0].mxu0
    %v319 = vadd.f32 0.0, %v318
    %v320 = vpop.f32.mrb[0].mxu0
    %321 = vmatprep.mubr.bf16.mxu0 0
    %322 = vmatmul.mubr.bf16.gmra.mrb[0].mxu0 %v132
    %v323 = vpop.f32.mrb[0].mxu0
    %v324 = vadd.f32 0.0, %v323
    %v325 = vpop.f32.mrb[0].mxu0
    %v326 = vpop.f32.mrb[0].mxu0
    %v327 = vadd.f32 0.0, %v326
    %v328 = vpop.f32.mrb[0].mxu0
    %329 = vmatprep.mubr.bf16.mxu0 0
    %330 = vmatmul.mubr.bf16.gmra.mrb[0].mxu0 %v133
    %v331 = vpop.f32.mrb[0].mxu0
    %v332 = vadd.f32 0.0, %v331
    %v333 = vpop.f32.mrb[0].mxu0
    %v334 = vpop.f32.mrb[0].mxu0
    %v335 = vadd.f32 0.0, %v334
    %v336 = vpop.f32.mrb[0].mxu0
    %337 = vmatprep.mubr.bf16.mxu0 0
    %338 = vmatmul.mubr.bf16.gmra.mrb[0].mxu0 %v134
    %v339 = vpop.f32.mrb[0].mxu0
    %v340 = vadd.f32 0.0, %v339
    %v341 = vpop.f32.mrb[0].mxu0
    %v342 = vpop.f32.mrb[0].mxu0
    %v343 = vadd.f32 0.0, %v342
    %v344 = vpop.f32.mrb[0].mxu0
    %345 = vmatprep.mubr.bf16.mxu0 0
    %346 = vmatmul.mubr.bf16.gmra.mrb[0].mxu0 %v135
    %v347 = vpop.f32.mrb[0].mxu0
    %v348 = vadd.f32 0.0, %v347
    %v349 = vpop.f32.mrb[0].mxu0
    %v350 = vpop.f32.mrb[0].mxu0
    %v351 = vadd.f32 0.0, %v350
    %v352 = vpop.f32.mrb[0].mxu0
    %353 = vmatprep.mubr.bf16.mxu0 0
    %354 = vmatmul.mubr.bf16.gmra.mrb[0].mxu0 %v136
    %v355 = vpop.f32.mrb[0].mxu0
    %v356 = vadd.f32 0.0, %v355
    %v357 = vpop.f32.mrb[0].mxu0
    %v358 = vpop.f32.mrb[0].mxu0
    %v359 = vadd.f32 0.0, %v358
    %v360 = vpop.f32.mrb[0].mxu0
    %361 = vmatprep.mubr.bf16.mxu0 0
    %362 = vmatmul.mubr.bf16.gmra.mrb[0].mxu0 %v137
    %v363 = vpop.f32.mrb[0].mxu0
    %v364 = vadd.f32 0.0, %v363
    %v365 = vpop.f32.mrb[0].mxu0
    %v366 = vpop.f32.mrb[0].mxu0
    %v367 = vadd.f32 0.0, %v366
    %v368 = vpop.f32.mrb[0].mxu0
    %369 = vmatprep.mubr.bf16.mxu0 0
    %370 = vmatmul.mubr.bf16.gmra.mrb[0].mxu0 %v138
    %v371 = vpop.f32.mrb[0].mxu0
    %v372 = vadd.f32 0.0, %v371
    %v373 = vpop.f32.mrb[0].mxu0
    %v374 = vpop.f32.mrb[0].mxu0
    %v375 = vadd.f32 0.0, %v374
    %v376 = vpop.f32.mrb[0].mxu0
    %377 = vmatprep.mubr.bf16.mxu0 0
    %378 = vmatmul.mubr.bf16.gmra.mrb[0].mxu0 %v139
    %v379 = vpop.f32.mrb[0].mxu0
    %v380 = vadd.f32 0.0, %v379
    %v381 = vpop.f32.mrb[0].mxu0
    %v382 = vpop.f32.mrb[0].mxu0
    %v383 = vadd.f32 0.0, %v382
    %v384 = vpop.f32.mrb[0].mxu0
    %385 = vmatprep.mubr.bf16.mxu0 0
    %386 = vmatmul.mubr.bf16.gmra.mrb[0].mxu0 %v140
    %v387 = vpop.f32.mrb[0].mxu0
    %v388 = vadd.f32 0.0, %v387
    %v389 = vpop.f32.mrb[0].mxu0
    %v390 = vpop.f32.mrb[0].mxu0
    %v391 = vadd.f32 0.0, %v390
    %v392 = vpop.f32.mrb[0].mxu0
    %393 = vmatprep.mubr.bf16.mxu0 0
    %394 = vmatmul.mubr.bf16.gmra.mrb[0].mxu0 %v141
    %v395 = vpop.f32.mrb[0].mxu0
    %v396 = vadd.f32 0.0, %v395
    %v397 = vpop.f32.mrb[0].mxu0
    %v398 = vpop.f32.mrb[0].mxu0
    %v399 = vadd.f32 0.0, %v398
    %v400 = vpop.f32.mrb[0].mxu0
    %401 = vmatprep.mubr.bf16.mxu0 0
    %402 = vmatmul.mubr.bf16.gmra.mrb[0].mxu0 %v142
    %v403 = vpop.f32.mrb[0].mxu0
    %v404 = vadd.f32 0.0, %v403
    %v405 = vpop.f32.mrb[0].mxu0
    %v406 = vpop.f32.mrb[0].mxu0
    %v407 = vadd.f32 0.0, %v406
    %v408 = vpop.f32.mrb[0].mxu0
    %409 = vmatprep.mubr.bf16.mxu0 0
    %410 = vmatmul.mubr.bf16.gmra.mrb[0].mxu0 %v143
    %v411 = vpop.f32.mrb[0].mxu0
    %v412 = vadd.f32 0.0, %v411
    %v413 = vpop.f32.mrb[0].mxu0
    %v414 = vpop.f32.mrb[0].mxu0
    %v415 = vadd.f32 0.0, %v414
    %v416 = vpop.f32.mrb[0].mxu0
    %417 = vdwg.mxu0
    %v418 = vmul.f32 %v292, 0.17677669
    %v419 = vmul.f32 %v295, 0.17677669
    %v420 = vmul.f32 %v300, 0.17677669
    %v421 = vmul.f32 %v303, 0.17677669
    %v422 = vmul.f32 %v308, 0.17677669
    %v423 = vmul.f32 %v311, 0.17677669
    %v424 = vmul.f32 %v316, 0.17677669
    %v425 = vmul.f32 %v319, 0.17677669
    %v426 = vmul.f32 %v324, 0.17677669
    %v427 = vmul.f32 %v327, 0.17677669
    %v428 = vmul.f32 %v332, 0.17677669
    %v429 = vmul.f32 %v335, 0.17677669
    %v430 = vmul.f32 %v340, 0.17677669
    %v431 = vmul.f32 %v343, 0.17677669
    %v432 = vmul.f32 %v348, 0.17677669
    %v433 = vmul.f32 %v351, 0.17677669
    %v434 = vmul.f32 %v356, 0.17677669
    %v435 = vmul.f32 %v359, 0.17677669
    %v436 = vmul.f32 %v364, 0.17677669
    %v437 = vmul.f32 %v367, 0.17677669
    %v438 = vmul.f32 %v372, 0.17677669
    %v439 = vmul.f32 %v375, 0.17677669
    %v440 = vmul.f32 %v380, 0.17677669
    %v441 = vmul.f32 %v383, 0.17677669
    %v442 = vmul.f32 %v388, 0.17677669
    %v443 = vmul.f32 %v391, 0.17677669
    %v444 = vmul.f32 %v396, 0.17677669
    %v445 = vmul.f32 %v399, 0.17677669
    %v446 = vmul.f32 %v404, 0.17677669
    %v447 = vmul.f32 %v407, 0.17677669
    %v448 = vmul.f32 %v412, 0.17677669
    %v449 = vmul.f32 %v415, 0.17677669
    %v466 = vunpack.c.l.b16 %v160
    %v467 = vunpack.c.l.b16 %v161
    %v468 = vunpack.c.l.b16 %v162
    %v469 = vunpack.c.l.b16 %v163
    %v470 = vunpack.c.l.b16 %v164
    %v471 = vunpack.c.l.b16 %v165
    %v472 = vunpack.c.l.b16 %v166
    %v473 = vunpack.c.l.b16 %v167
    %v474 = vunpack.c.l.b16 %v168
    %v475 = vunpack.c.l.b16 %v169
    %v476 = vunpack.c.l.b16 %v170
    %v477 = vunpack.c.l.b16 %v171
    %v478 = vunpack.c.l.b16 %v172
    %v479 = vunpack.c.l.b16 %v173
    %v480 = vunpack.c.l.b16 %v174
    %v481 = vunpack.c.l.b16 %v175
    %v482 = vpack.c.b16 %v467, %v466
    %v483 = vpack.c.b16 %v469, %v468
    %v484 = vpack.c.b16 %v471, %v470
    %v485 = vpack.c.b16 %v473, %v472
    %v486 = vpack.c.b16 %v475, %v474
    %v487 = vpack.c.b16 %v477, %v476
    %v488 = vpack.c.b16 %v479, %v478
    %v489 = vpack.c.b16 %v481, %v480
    %498 = vmatprep.subr.bf16.mxu0 0
    %499 = vmatpush1.bf16.msra.mxu0 %v482
    %500 = vmatprep.subr.bf16.mxu0 0
    %501 = vmatpush1.bf16.msra.mxu0 %v483
    %502 = vmatprep.subr.bf16.mxu0 0
    %503 = vmatpush1.bf16.msra.mxu0 %v484
    %504 = vmatprep.subr.bf16.mxu0 0
    %505 = vmatpush1.bf16.msra.mxu0 %v485
    %506 = vmatprep.subr.bf16.mxu0 0
    %507 = vmatpush1.bf16.msra.mxu0 %v486
    %508 = vmatprep.subr.bf16.mxu0 0
    %509 = vmatpush1.bf16.msra.mxu0 %v487
    %510 = vmatprep.subr.bf16.mxu0 0
    %511 = vmatpush1.bf16.msra.mxu0 %v488
    %512 = vmatprep.subr.bf16.mxu0 0
    %513 = vmatpush1.bf16.msra.mxu0 %v489
    %514 = vmatprep.subr.bf16.mxu0 0
    %515 = vmatpush1.bf16.msra.mxu0 0
    %516 = vmatprep.subr.bf16.mxu0 0
    %517 = vmatpush1.bf16.msra.mxu0 0
    %518 = vmatprep.subr.bf16.mxu0 0
    %519 = vmatpush1.bf16.msra.mxu0 0
    %520 = vmatprep.subr.bf16.mxu0 0
    %521 = vmatpush1.bf16.msra.mxu0 0
    %522 = vmatprep.subr.bf16.mxu0 0
    %523 = vmatpush1.bf16.msra.mxu0 0
    %524 = vmatprep.subr.bf16.mxu0 0
    %525 = vmatpush1.bf16.msra.mxu0 0
    %526 = vmatprep.subr.bf16.mxu0 0
    %527 = vmatpush1.bf16.msra.mxu0 0
    %528 = vmatprep.subr.bf16.mxu0 0
    %529 = vmatpush1.bf16.msra.mxu0 0
    %530 = vmatprep.mubr.bf16.mxu0 0
    %531 = vmatmul.mubr.bf16.gmra.mrb[0].mxu0 %v128
    %v532 = vpop.f32.mrb[0].mxu0
    %v533 = vadd.f32 0.0, %v532
    %v534 = vpop.f32.mrb[0].mxu0
    %v535 = vpop.f32.mrb[0].mxu0
    %v536 = vadd.f32 0.0, %v535
    %v537 = vpop.f32.mrb[0].mxu0
    %538 = vmatprep.mubr.bf16.mxu0 0
    %539 = vmatmul.mubr.bf16.gmra.mrb[0].mxu0 %v129
    %v540 = vpop.f32.mrb[0].mxu0
    %v541 = vadd.f32 0.0, %v540
    %v542 = vpop.f32.mrb[0].mxu0
    %v543 = vpop.f32.mrb[0].mxu0
    %v544 = vadd.f32 0.0, %v543
    %v545 = vpop.f32.mrb[0].mxu0
    %546 = vmatprep.mubr.bf16.mxu0 0
    %547 = vmatmul.mubr.bf16.gmra.mrb[0].mxu0 %v130
    %v548 = vpop.f32.mrb[0].mxu0
    %v549 = vadd.f32 0.0, %v548
    %v550 = vpop.f32.mrb[0].mxu0
    %v551 = vpop.f32.mrb[0].mxu0
    %v552 = vadd.f32 0.0, %v551
    %v553 = vpop.f32.mrb[0].mxu0
    %554 = vmatprep.mubr.bf16.mxu0 0
    %555 = vmatmul.mubr.bf16.gmra.mrb[0].mxu0 %v131
    %v556 = vpop.f32.mrb[0].mxu0
    %v557 = vadd.f32 0.0, %v556
    %v558 = vpop.f32.mrb[0].mxu0
    %v559 = vpop.f32.mrb[0].mxu0
    %v560 = vadd.f32 0.0, %v559
    %v561 = vpop.f32.mrb[0].mxu0
    %562 = vmatprep.mubr.bf16.mxu0 0
    %563 = vmatmul.mubr.bf16.gmra.mrb[0].mxu0 %v132
    %v564 = vpop.f32.mrb[0].mxu0
    %v565 = vadd.f32 0.0, %v564
    %v566 = vpop.f32.mrb[0].mxu0
    %v567 = vpop.f32.mrb[0].mxu0
    %v568 = vadd.f32 0.0, %v567
    %v569 = vpop.f32.mrb[0].mxu0
    %570 = vmatprep.mubr.bf16.mxu0 0
    %571 = vmatmul.mubr.bf16.gmra.mrb[0].mxu0 %v133
    %v572 = vpop.f32.mrb[0].mxu0
    %v573 = vadd.f32 0.0, %v572
    %v574 = vpop.f32.mrb[0].mxu0
    %v575 = vpop.f32.mrb[0].mxu0
    %v576 = vadd.f32 0.0, %v575
    %v577 = vpop.f32.mrb[0].mxu0
    %578 = vmatprep.mubr.bf16.mxu0 0
    %579 = vmatmul.mubr.bf16.gmra.mrb[0].mxu0 %v134
    %v580 = vpop.f32.mrb[0].mxu0
    %v581 = vadd.f32 0.0, %v580
    %v582 = vpop.f32.mrb[0].mxu0
    %v583 = vpop.f32.mrb[0].mxu0
    %v584 = vadd.f32 0.0, %v583
    %v585 = vpop.f32.mrb[0].mxu0
    %586 = vmatprep.mubr.bf16.mxu0 0
    %587 = vmatmul.mubr.bf16.gmra.mrb[0].mxu0 %v135
    %v588 = vpop.f32.mrb[0].mxu0
    %v589 = vadd.f32 0.0, %v588
    %v590 = vpop.f32.mrb[0].mxu0
    %v591 = vpop.f32.mrb[0].mxu0
    %v592 = vadd.f32 0.0, %v591
    %v593 = vpop.f32.mrb[0].mxu0
    %594 = vmatprep.mubr.bf16.mxu0 0
    %595 = vmatmul.mubr.bf16.gmra.mrb[0].mxu0 %v136
    %v596 = vpop.f32.mrb[0].mxu0
    %v597 = vadd.f32 0.0, %v596
    %v598 = vpop.f32.mrb[0].mxu0
    %v599 = vpop.f32.mrb[0].mxu0
    %v600 = vadd.f32 0.0, %v599
    %v601 = vpop.f32.mrb[0].mxu0
    %602 = vmatprep.mubr.bf16.mxu0 0
    %603 = vmatmul.mubr.bf16.gmra.mrb[0].mxu0 %v137
    %v604 = vpop.f32.mrb[0].mxu0
    %v605 = vadd.f32 0.0, %v604
    %v606 = vpop.f32.mrb[0].mxu0
    %v607 = vpop.f32.mrb[0].mxu0
    %v608 = vadd.f32 0.0, %v607
    %v609 = vpop.f32.mrb[0].mxu0
    %610 = vmatprep.mubr.bf16.mxu0 0
    %611 = vmatmul.mubr.bf16.gmra.mrb[0].mxu0 %v138
    %v612 = vpop.f32.mrb[0].mxu0
    %v613 = vadd.f32 0.0, %v612
    %v614 = vpop.f32.mrb[0].mxu0
    %v615 = vpop.f32.mrb[0].mxu0
    %v616 = vadd.f32 0.0, %v615
    %v617 = vpop.f32.mrb[0].mxu0
    %618 = vmatprep.mubr.bf16.mxu0 0
    %619 = vmatmul.mubr.bf16.gmra.mrb[0].mxu0 %v139
    %v620 = vpop.f32.mrb[0].mxu0
    %v621 = vadd.f32 0.0, %v620
    %v622 = vpop.f32.mrb[0].mxu0
    %v623 = vpop.f32.mrb[0].mxu0
    %v624 = vadd.f32 0.0, %v623
    %v625 = vpop.f32.mrb[0].mxu0
    %626 = vmatprep.mubr.bf16.mxu0 0
    %627 = vmatmul.mubr.bf16.gmra.mrb[0].mxu0 %v140
    %v628 = vpop.f32.mrb[0].mxu0
    %v629 = vadd.f32 0.0, %v628
    %v630 = vpop.f32.mrb[0].mxu0
    %v631 = vpop.f32.mrb[0].mxu0
    %v632 = vadd.f32 0.0, %v631
    %v633 = vpop.f32.mrb[0].mxu0
    %634 = vmatprep.mubr.bf16.mxu0 0
    %635 = vmatmul.mubr.bf16.gmra.mrb[0].mxu0 %v141
    %v636 = vpop.f32.mrb[0].mxu0
    %v637 = vadd.f32 0.0, %v636
    %v638 = vpop.f32.mrb[0].mxu0
    %v639 = vpop.f32.mrb[0].mxu0
    %v640 = vadd.f32 0.0, %v639
    %v641 = vpop.f32.mrb[0].mxu0
    %642 = vmatprep.mubr.bf16.mxu0 0
    %643 = vmatmul.mubr.bf16.gmra.mrb[0].mxu0 %v142
    %v644 = vpop.f32.mrb[0].mxu0
    %v645 = vadd.f32 0.0, %v644
    %v646 = vpop.f32.mrb[0].mxu0
    %v647 = vpop.f32.mrb[0].mxu0
    %v648 = vadd.f32 0.0, %v647
    %v649 = vpop.f32.mrb[0].mxu0
    %650 = vmatprep.mubr.bf16.mxu0 0
    %651 = vmatmul.mubr.bf16.gmra.mrb[0].mxu0 %v143
    %v652 = vpop.f32.mrb[0].mxu0
    %v653 = vadd.f32 0.0, %v652
    %v654 = vpop.f32.mrb[0].mxu0
    %v655 = vpop.f32.mrb[0].mxu0
    %v656 = vadd.f32 0.0, %v655
    %v657 = vpop.f32.mrb[0].mxu0
    %658 = vdwg.mxu0
    %v675 = vunpack.c.l.b16 %v176
    %v676 = vunpack.c.l.b16 %v177
    %v677 = vunpack.c.l.b16 %v178
    %v678 = vunpack.c.l.b16 %v179
    %v679 = vunpack.c.l.b16 %v180
    %v680 = vunpack.c.l.b16 %v181
    %v681 = vunpack.c.l.b16 %v182
    %v682 = vunpack.c.l.b16 %v183
    %v683 = vunpack.c.l.b16 %v184
    %v684 = vunpack.c.l.b16 %v185
    %v685 = vunpack.c.l.b16 %v186
    %v686 = vunpack.c.l.b16 %v187
    %v687 = vunpack.c.l.b16 %v188
    %v688 = vunpack.c.l.b16 %v189
    %v689 = vunpack.c.l.b16 %v190
    %v690 = vunpack.c.l.b16 %v191
    %v691 = vpack.c.b16 %v676, %v675
    %v692 = vpack.c.b16 %v678, %v677
    %v693 = vpack.c.b16 %v680, %v679
    %v694 = vpack.c.b16 %v682, %v681
    %v695 = vpack.c.b16 %v684, %v683
    %v696 = vpack.c.b16 %v686, %v685
    %v697 = vpack.c.b16 %v688, %v687
    %v698 = vpack.c.b16 %v690, %v689
    %707 = vmatprep.subr.bf16.mxu0 0
    %708 = vmatpush1.bf16.msra.mxu0 %v691
    %709 = vmatprep.subr.bf16.mxu0 0
    %710 = vmatpush1.bf16.msra.mxu0 %v692
    %711 = vmatprep.subr.bf16.mxu0 0
    %712 = vmatpush1.bf16.msra.mxu0 %v693
    %713 = vmatprep.subr.bf16.mxu0 0
    %714 = vmatpush1.bf16.msra.mxu0 %v694
    %715 = vmatprep.subr.bf16.mxu0 0
    %716 = vmatpush1.bf16.msra.mxu0 %v695
    %717 = vmatprep.subr.bf16.mxu0 0
    %718 = vmatpush1.bf16.msra.mxu0 %v696
    %719 = vmatprep.subr.bf16.mxu0 0
    %720 = vmatpush1.bf16.msra.mxu0 %v697
    %721 = vmatprep.subr.bf16.mxu0 0
    %722 = vmatpush1.bf16.msra.mxu0 %v698
    %723 = vmatprep.subr.bf16.mxu0 0
    %724 = vmatpush1.bf16.msra.mxu0 0
    %725 = vmatprep.subr.bf16.mxu0 0
    %726 = vmatpush1.bf16.msra.mxu0 0
    %727 = vmatprep.subr.bf16.mxu0 0
    %728 = vmatpush1.bf16.msra.mxu0 0
    %729 = vmatprep.subr.bf16.mxu0 0
    %730 = vmatpush1.bf16.msra.mxu0 0
    %731 = vmatprep.subr.bf16.mxu0 0
    %732 = vmatpush1.bf16.msra.mxu0 0
    %733 = vmatprep.subr.bf16.mxu0 0
    %734 = vmatpush1.bf16.msra.mxu0 0
    %735 = vmatprep.subr.bf16.mxu0 0
    %736 = vmatpush1.bf16.msra.mxu0 0
    %737 = vmatprep.subr.bf16.mxu0 0
    %738 = vmatpush1.bf16.msra.mxu0 0
    %739 = vmatprep.mubr.bf16.mxu0 0
    %740 = vmatmul.mubr.bf16.gmra.mrb[0].mxu0 %v128
    %v741 = vpop.f32.mrb[0].mxu0
    %v742 = vadd.f32 0.0, %v741
    %v743 = vpop.f32.mrb[0].mxu0
    %v744 = vpop.f32.mrb[0].mxu0
    %v745 = vadd.f32 0.0, %v744
    %v746 = vpop.f32.mrb[0].mxu0
    %747 = vmatprep.mubr.bf16.mxu0 0
    %748 = vmatmul.mubr.bf16.gmra.mrb[0].mxu0 %v129
    %v749 = vpop.f32.mrb[0].mxu0
    %v750 = vadd.f32 0.0, %v749
    %v751 = vpop.f32.mrb[0].mxu0
    %v752 = vpop.f32.mrb[0].mxu0
    %v753 = vadd.f32 0.0, %v752
    %v754 = vpop.f32.mrb[0].mxu0
    %755 = vmatprep.mubr.bf16.mxu0 0
    %756 = vmatmul.mubr.bf16.gmra.mrb[0].mxu0 %v130
    %v757 = vpop.f32.mrb[0].mxu0
    %v758 = vadd.f32 0.0, %v757
    %v759 = vpop.f32.mrb[0].mxu0
    %v760 = vpop.f32.mrb[0].mxu0
    %v761 = vadd.f32 0.0, %v760
    %v762 = vpop.f32.mrb[0].mxu0
    %763 = vmatprep.mubr.bf16.mxu0 0
    %764 = vmatmul.mubr.bf16.gmra.mrb[0].mxu0 %v131
    %v765 = vpop.f32.mrb[0].mxu0
    %v766 = vadd.f32 0.0, %v765
    %v767 = vpop.f32.mrb[0].mxu0
    %v768 = vpop.f32.mrb[0].mxu0
    %v769 = vadd.f32 0.0, %v768
    %v770 = vpop.f32.mrb[0].mxu0
    %771 = vmatprep.mubr.bf16.mxu0 0
    %772 = vmatmul.mubr.bf16.gmra.mrb[0].mxu0 %v132
    %v773 = vpop.f32.mrb[0].mxu0
    %v774 = vadd.f32 0.0, %v773
    %v775 = vpop.f32.mrb[0].mxu0
    %v776 = vpop.f32.mrb[0].mxu0
    %v777 = vadd.f32 0.0, %v776
    %v778 = vpop.f32.mrb[0].mxu0
    %779 = vmatprep.mubr.bf16.mxu0 0
    %780 = vmatmul.mubr.bf16.gmra.mrb[0].mxu0 %v133
    %v781 = vpop.f32.mrb[0].mxu0
    %v782 = vadd.f32 0.0, %v781
    %v783 = vpop.f32.mrb[0].mxu0
    %v784 = vpop.f32.mrb[0].mxu0
    %v785 = vadd.f32 0.0, %v784
    %v786 = vpop.f32.mrb[0].mxu0
    %787 = vmatprep.mubr.bf16.mxu0 0
    %788 = vmatmul.mubr.bf16.gmra.mrb[0].mxu0 %v134
    %v789 = vpop.f32.mrb[0].mxu0
    %v790 = vadd.f32 0.0, %v789
    %v791 = vpop.f32.mrb[0].mxu0
    %v792 = vpop.f32.mrb[0].mxu0
    %v793 = vadd.f32 0.0, %v792
    %v794 = vpop.f32.mrb[0].mxu0
    %795 = vmatprep.mubr.bf16.mxu0 0
    %796 = vmatmul.mubr.bf16.gmra.mrb[0].mxu0 %v135
    %v797 = vpop.f32.mrb[0].mxu0
    %v798 = vadd.f32 0.0, %v797
    %v799 = vpop.f32.mrb[0].mxu0
    %v800 = vpop.f32.mrb[0].mxu0
    %v801 = vadd.f32 0.0, %v800
    %v802 = vpop.f32.mrb[0].mxu0
    %803 = vmatprep.mubr.bf16.mxu0 0
    %804 = vmatmul.mubr.bf16.gmra.mrb[0].mxu0 %v136
    %v805 = vpop.f32.mrb[0].mxu0
    %v806 = vadd.f32 0.0, %v805
    %v807 = vpop.f32.mrb[0].mxu0
    %v808 = vpop.f32.mrb[0].mxu0
    %v809 = vadd.f32 0.0, %v808
    %v810 = vpop.f32.mrb[0].mxu0
    %811 = vmatprep.mubr.bf16.mxu0 0
    %812 = vmatmul.mubr.bf16.gmra.mrb[0].mxu0 %v137
    %v813 = vpop.f32.mrb[0].mxu0
    %v814 = vadd.f32 0.0, %v813
    %v815 = vpop.f32.mrb[0].mxu0
    %v816 = vpop.f32.mrb[0].mxu0
    %v817 = vadd.f32 0.0, %v816
    %v818 = vpop.f32.mrb[0].mxu0
    %819 = vmatprep.mubr.bf16.mxu0 0
    %820 = vmatmul.mubr.bf16.gmra.mrb[0].mxu0 %v138
    %v821 = vpop.f32.mrb[0].mxu0
    %v822 = vadd.f32 0.0, %v821
    %v823 = vpop.f32.mrb[0].mxu0
    %v824 = vpop.f32.mrb[0].mxu0
    %v825 = vadd.f32 0.0, %v824
    %v826 = vpop.f32.mrb[0].mxu0
    %827 = vmatprep.mubr.bf16.mxu0 0
    %828 = vmatmul.mubr.bf16.gmra.mrb[0].mxu0 %v139
    %v829 = vpop.f32.mrb[0].mxu0
    %v830 = vadd.f32 0.0, %v829
    %v831 = vpop.f32.mrb[0].mxu0
    %v832 = vpop.f32.mrb[0].mxu0
    %v833 = vadd.f32 0.0, %v832
    %v834 = vpop.f32.mrb[0].mxu0
    %835 = vmatprep.mubr.bf16.mxu0 0
    %836 = vmatmul.mubr.bf16.gmra.mrb[0].mxu0 %v140
    %v837 = vpop.f32.mrb[0].mxu0
    %v838 = vadd.f32 0.0, %v837
    %v839 = vpop.f32.mrb[0].mxu0
    %v840 = vpop.f32.mrb[0].mxu0
    %v841 = vadd.f32 0.0, %v840
    %v842 = vpop.f32.mrb[0].mxu0
    %843 = vmatprep.mubr.bf16.mxu0 0
    %844 = vmatmul.mubr.bf16.gmra.mrb[0].mxu0 %v141
    %v845 = vpop.f32.mrb[0].mxu0
    %v846 = vadd.f32 0.0, %v845
    %v847 = vpop.f32.mrb[0].mxu0
    %v848 = vpop.f32.mrb[0].mxu0
    %v849 = vadd.f32 0.0, %v848
    %v850 = vpop.f32.mrb[0].mxu0
    %851 = vmatprep.mubr.bf16.mxu0 0
    %852 = vmatmul.mubr.bf16.gmra.mrb[0].mxu0 %v142
    %v853 = vpop.f32.mrb[0].mxu0
    %v854 = vadd.f32 0.0, %v853
    %v855 = vpop.f32.mrb[0].mxu0
    %v856 = vpop.f32.mrb[0].mxu0
    %v857 = vadd.f32 0.0, %v856
    %v858 = vpop.f32.mrb[0].mxu0
    %859 = vmatprep.mubr.bf16.mxu0 0
    %860 = vmatmul.mubr.bf16.gmra.mrb[0].mxu0 %v143
    %v861 = vpop.f32.mrb[0].mxu0
    %v862 = vadd.f32 0.0, %v861
    %v863 = vpop.f32.mrb[0].mxu0
    %v864 = vpop.f32.mrb[0].mxu0
    %v865 = vadd.f32 0.0, %v864
    %v866 = vpop.f32.mrb[0].mxu0
    %867 = vdwg.mxu0
    %v868 = vpack.c.bf16 %v419, %v418
    %v869 = vpack.c.bf16 %v421, %v420
    %v870 = vpack.c.bf16 %v423, %v422
    %v871 = vpack.c.bf16 %v425, %v424
    %v872 = vpack.c.bf16 %v427, %v426
    %v873 = vpack.c.bf16 %v429, %v428
    %v874 = vpack.c.bf16 %v431, %v430
    %v875 = vpack.c.bf16 %v433, %v432
    %v876 = vpack.c.bf16 %v435, %v434
    %v877 = vpack.c.bf16 %v437, %v436
    %v878 = vpack.c.bf16 %v439, %v438
    %v879 = vpack.c.bf16 %v441, %v440
    %v880 = vpack.c.bf16 %v443, %v442
    %v881 = vpack.c.bf16 %v445, %v444
    %v882 = vpack.c.bf16 %v447, %v446
    %v883 = vpack.c.bf16 %v449, %v448
    %v884 = vpack.c.bf16 %v536, %v533
    %v885 = vpack.c.bf16 %v544, %v541
    %v886 = vpack.c.bf16 %v552, %v549
    %v887 = vpack.c.bf16 %v560, %v557
    %v888 = vpack.c.bf16 %v568, %v565
    %v889 = vpack.c.bf16 %v576, %v573
    %v890 = vpack.c.bf16 %v584, %v581
    %v891 = vpack.c.bf16 %v592, %v589
    %v892 = vpack.c.bf16 %v600, %v597
    %v893 = vpack.c.bf16 %v608, %v605
    %v894 = vpack.c.bf16 %v616, %v613
    %v895 = vpack.c.bf16 %v624, %v621
    %v896 = vpack.c.bf16 %v632, %v629
    %v897 = vpack.c.bf16 %v640, %v637
    %v898 = vpack.c.bf16 %v648, %v645
    %v899 = vpack.c.bf16 %v656, %v653
    %v900 = vpack.c.bf16 %v745, %v742
    %v901 = vpack.c.bf16 %v753, %v750
    %v902 = vpack.c.bf16 %v761, %v758
    %v903 = vpack.c.bf16 %v769, %v766
    %v904 = vpack.c.bf16 %v777, %v774
    %v905 = vpack.c.bf16 %v785, %v782
    %v906 = vpack.c.bf16 %v793, %v790
    %v907 = vpack.c.bf16 %v801, %v798
    %v908 = vpack.c.bf16 %v809, %v806
    %v909 = vpack.c.bf16 %v817, %v814
    %v910 = vpack.c.bf16 %v825, %v822
    %v911 = vpack.c.bf16 %v833, %v830
    %v912 = vpack.c.bf16 %v841, %v838
    %v913 = vpack.c.bf16 %v849, %v846
    %v914 = vpack.c.bf16 %v857, %v854
    %v915 = vpack.c.bf16 %v865, %v862
    %v916 = vlaneseq
    %v917 = vshrl.u32 %v916, 7
    %v918 = vadd.s32 %v917, 8
    %v919 = vadd.s32 %v917, 16
    %v920 = vadd.s32 %v917, 24
    %v921 = vadd.s32 %v917, 32
    %v922 = vadd.s32 %v917, 40
    %v923 = vadd.s32 %v917, 48
    %v924 = vadd.s32 %v917, 56
    %v925 = vadd.s32 %v917, 64
    %v926 = vadd.s32 %v917, 72
    %v927 = vadd.s32 %v917, 80
    %v928 = vadd.s32 %v917, 88
    %v929 = vadd.s32 %v917, 96
    %v930 = vadd.s32 %v917, 104
    %v931 = vadd.s32 %v917, 112
    %v932 = vadd.s32 %v917, 120
    %v933 = vlaneseq
    %v934 = vand.u32 %v933, 127
    %vm935 = vcmp.le.s32.totalorder %v934, %v917
    %vm936 = vcmp.le.s32.totalorder %v934, %v918
    %vm937 = vcmp.le.s32.totalorder %v934, %v919
    %vm938 = vcmp.le.s32.totalorder %v934, %v920
    %vm939 = vcmp.le.s32.totalorder %v934, %v921
    %vm940 = vcmp.le.s32.totalorder %v934, %v922
    %vm941 = vcmp.le.s32.totalorder %v934, %v923
    %vm942 = vcmp.le.s32.totalorder %v934, %v924
    %vm943 = vcmp.le.s32.totalorder %v934, %v925
    %vm944 = vcmp.le.s32.totalorder %v934, %v926
    %vm945 = vcmp.le.s32.totalorder %v934, %v927
    %vm946 = vcmp.le.s32.totalorder %v934, %v928
    %vm947 = vcmp.le.s32.totalorder %v934, %v929
    %vm948 = vcmp.le.s32.totalorder %v934, %v930
    %vm949 = vcmp.le.s32.totalorder %v934, %v931
    %vm950 = vcmp.le.s32.totalorder %v934, %v932
    %v951 = vld [vmem:[%s1] sm:$0x1]
    %vm952 = vcmp.gt.f32.partialorder %v951, 0.0
    %v953 = vsel %vm952, 1, 0
    %v954 = vlaneseq
    %v955 = vshrl.u32 %v954, 7
    %v956 = vsub.s32 0, %v955
    %v957 = vrot.slane %v953, %v956
    %vm958 = vcmp.eq.s32.totalorder %v957, 1
    %vm959 = vmand %vm958, %vm935
    %vm960 = vmand %vm958, %vm936
    %vm961 = vmand %vm958, %vm937
    %vm962 = vmand %vm958, %vm938
    %vm963 = vmand %vm958, %vm939
    %vm964 = vmand %vm958, %vm940
    %vm965 = vmand %vm958, %vm941
    %vm966 = vmand %vm958, %vm942
    %vm967 = vmand %vm958, %vm943
    %vm968 = vmand %vm958, %vm944
    %vm969 = vmand %vm958, %vm945
    %vm970 = vmand %vm958, %vm946
    %vm971 = vmand %vm958, %vm947
    %vm972 = vmand %vm958, %vm948
    %vm973 = vmand %vm958, %vm949
    %vm974 = vmand %vm958, %vm950
    %v975 = vsel %vm959, 0.0, -1e+30
    %v976 = vsel %vm960, 0.0, -1e+30
    %v977 = vsel %vm961, 0.0, -1e+30
    %v978 = vsel %vm962, 0.0, -1e+30
    %v979 = vsel %vm963, 0.0, -1e+30
    %v980 = vsel %vm964, 0.0, -1e+30
    %v981 = vsel %vm965, 0.0, -1e+30
    %v982 = vsel %vm966, 0.0, -1e+30
    %v983 = vsel %vm967, 0.0, -1e+30
    %v984 = vsel %vm968, 0.0, -1e+30
    %v985 = vsel %vm969, 0.0, -1e+30
    %v986 = vsel %vm970, 0.0, -1e+30
    %v987 = vsel %vm971, 0.0, -1e+30
    %v988 = vsel %vm972, 0.0, -1e+30
    %v989 = vsel %vm973, 0.0, -1e+30
    %v990 = vsel %vm974, 0.0, -1e+30
    %vm991 = vcmask 261120
    %v993 = vsel %vm991, %v868, 0
    %v996 = vsel %vm991, %v869, 0
    %v999 = vsel %vm991, %v870, 0
    %v1002 = vsel %vm991, %v871, 0
    %v1005 = vsel %vm991, %v872, 0
    %v1008 = vsel %vm991, %v873, 0
    %v1011 = vsel %vm991, %v874, 0
    %v1014 = vsel %vm991, %v875, 0
    %v1017 = vsel %vm991, %v884, 0
    %v1020 = vsel %vm991, %v885, 0
    %v1023 = vsel %vm991, %v886, 0
    %v1026 = vsel %vm991, %v887, 0
    %v1029 = vsel %vm991, %v888, 0
    %v1032 = vsel %vm991, %v889, 0
    %v1035 = vsel %vm991, %v890, 0
    %v1038 = vsel %vm991, %v891, 0
    %1040 = vmatprep.subr.bf16.mxu0 0
    %1041 = vmatpush1.bf16.xpose.msra.mxu0 %v1017
    %1042 = vmatprep.subr.bf16.mxu0 0
    %1043 = vmatpush1.bf16.xpose.msra.mxu0 %v1020
    %1044 = vmatprep.subr.bf16.mxu0 0
    %1045 = vmatpush1.bf16.xpose.msra.mxu0 %v1023
    %1046 = vmatprep.subr.bf16.mxu0 0
    %1047 = vmatpush1.bf16.xpose.msra.mxu0 %v1026
    %1048 = vmatprep.subr.bf16.mxu0 0
    %1049 = vmatpush1.bf16.xpose.msra.mxu0 %v1029
    %1050 = vmatprep.subr.bf16.mxu0 0
    %1051 = vmatpush1.bf16.xpose.msra.mxu0 %v1032
    %1052 = vmatprep.subr.bf16.mxu0 0
    %1053 = vmatpush1.bf16.xpose.msra.mxu0 %v1035
    %1054 = vmatprep.subr.bf16.mxu0 0
    %1055 = vmatpush1.bf16.xpose.msra.mxu0 %v1038
    %1056 = vmatprep.subr.bf16.mxu0 0
    %1057 = vmatpush1.bf16.xpose.msra.mxu0 0
    %1058 = vmatprep.subr.bf16.mxu0 0
    %1059 = vmatpush1.bf16.xpose.msra.mxu0 0
    %1060 = vmatprep.subr.bf16.mxu0 0
    %1061 = vmatpush1.bf16.xpose.msra.mxu0 0
    %1062 = vmatprep.subr.bf16.mxu0 0
    %1063 = vmatpush1.bf16.xpose.msra.mxu0 0
    %1064 = vmatprep.subr.bf16.mxu0 0
    %1065 = vmatpush1.bf16.xpose.msra.mxu0 0
    %1066 = vmatprep.subr.bf16.mxu0 0
    %1067 = vmatpush1.bf16.xpose.msra.mxu0 0
    %1068 = vmatprep.subr.bf16.mxu0 0
    %1069 = vmatpush1.bf16.xpose.msra.mxu0 0
    %1070 = vmatprep.subr.bf16.mxu0 0
    %1071 = vmatpush1.bf16.xpose.msra.mxu0 0
    %1072 = vmatprep.mubr.bf16.mxu0 0
    %1073 = vmatmul.mubr.bf16.gmra.mrb[0].mxu0 %v993
    %v1074 = vpop.f32.mrb[0].mxu0
    %v1075 = vadd.f32 %v975, %v1074
    %v1076 = vpop.f32.mrb[0].mxu0
    %v1077 = vpop.f32.mrb[0].mxu0
    %v1078 = vadd.f32 %v976, %v1077
    %v1079 = vpop.f32.mrb[0].mxu0
    %1080 = vmatprep.mubr.bf16.mxu0 0
    %1081 = vmatmul.mubr.bf16.gmra.mrb[0].mxu0 %v996
    %v1082 = vpop.f32.mrb[0].mxu0
    %v1083 = vadd.f32 %v977, %v1082
    %v1084 = vpop.f32.mrb[0].mxu0
    %v1085 = vpop.f32.mrb[0].mxu0
    %v1086 = vadd.f32 %v978, %v1085
    %v1087 = vpop.f32.mrb[0].mxu0
    %1088 = vmatprep.mubr.bf16.mxu0 0
    %1089 = vmatmul.mubr.bf16.gmra.mrb[0].mxu0 %v999
    %v1090 = vpop.f32.mrb[0].mxu0
    %v1091 = vadd.f32 %v979, %v1090
    %v1092 = vpop.f32.mrb[0].mxu0
    %v1093 = vpop.f32.mrb[0].mxu0
    %v1094 = vadd.f32 %v980, %v1093
    %v1095 = vpop.f32.mrb[0].mxu0
    %1096 = vmatprep.mubr.bf16.mxu0 0
    %1097 = vmatmul.mubr.bf16.gmra.mrb[0].mxu0 %v1002
    %v1098 = vpop.f32.mrb[0].mxu0
    %v1099 = vadd.f32 %v981, %v1098
    %v1100 = vpop.f32.mrb[0].mxu0
    %v1101 = vpop.f32.mrb[0].mxu0
    %v1102 = vadd.f32 %v982, %v1101
    %v1103 = vpop.f32.mrb[0].mxu0
    %1104 = vmatprep.mubr.bf16.mxu0 0
    %1105 = vmatmul.mubr.bf16.gmra.mrb[0].mxu0 %v1005
    %v1106 = vpop.f32.mrb[0].mxu0
    %v1107 = vadd.f32 %v983, %v1106
    %v1108 = vpop.f32.mrb[0].mxu0
    %v1109 = vpop.f32.mrb[0].mxu0
    %v1110 = vadd.f32 %v984, %v1109
    %v1111 = vpop.f32.mrb[0].mxu0
    %1112 = vmatprep.mubr.bf16.mxu0 0
    %1113 = vmatmul.mubr.bf16.gmra.mrb[0].mxu0 %v1008
    %v1114 = vpop.f32.mrb[0].mxu0
    %v1115 = vadd.f32 %v985, %v1114
    %v1116 = vpop.f32.mrb[0].mxu0
    %v1117 = vpop.f32.mrb[0].mxu0
    %v1118 = vadd.f32 %v986, %v1117
    %v1119 = vpop.f32.mrb[0].mxu0
    %1120 = vmatprep.mubr.bf16.mxu0 0
    %1121 = vmatmul.mubr.bf16.gmra.mrb[0].mxu0 %v1011
    %v1122 = vpop.f32.mrb[0].mxu0
    %v1123 = vadd.f32 %v987, %v1122
    %v1124 = vpop.f32.mrb[0].mxu0
    %v1125 = vpop.f32.mrb[0].mxu0
    %v1126 = vadd.f32 %v988, %v1125
    %v1127 = vpop.f32.mrb[0].mxu0
    %1128 = vmatprep.mubr.bf16.mxu0 0
    %1129 = vmatmul.mubr.bf16.gmra.mrb[0].mxu0 %v1014
    %v1130 = vpop.f32.mrb[0].mxu0
    %v1131 = vadd.f32 %v989, %v1130
    %v1132 = vpop.f32.mrb[0].mxu0
    %v1133 = vpop.f32.mrb[0].mxu0
    %v1134 = vadd.f32 %v990, %v1133
    %v1135 = vpop.f32.mrb[0].mxu0
    %1136 = vdwg.mxu0
    %1145 = vrot.lane.b32.xlu0 %v868, 96
    %v1146 = vpop.permute.xlu0 %1145
    %1147 = vrot.lane.b32.xlu0 %v869, 96
    %v1148 = vpop.permute.xlu0 %1147
    %1149 = vrot.lane.b32.xlu0 %v870, 96
    %v1150 = vpop.permute.xlu0 %1149
    %1151 = vrot.lane.b32.xlu0 %v871, 96
    %v1152 = vpop.permute.xlu0 %1151
    %1153 = vrot.lane.b32.xlu0 %v872, 96
    %v1154 = vpop.permute.xlu0 %1153
    %1155 = vrot.lane.b32.xlu0 %v873, 96
    %v1156 = vpop.permute.xlu0 %1155
    %1157 = vrot.lane.b32.xlu0 %v874, 96
    %v1158 = vpop.permute.xlu0 %1157
    %1159 = vrot.lane.b32.xlu0 %v875, 96
    %v1160 = vpop.permute.xlu0 %1159
    %1169 = vrot.lane.b32.xlu0 %v884, 96
    %v1170 = vpop.permute.xlu0 %1169
    %1171 = vrot.lane.b32.xlu0 %v885, 96
    %v1172 = vpop.permute.xlu0 %1171
    %1173 = vrot.lane.b32.xlu0 %v886, 96
    %v1174 = vpop.permute.xlu0 %1173
    %1175 = vrot.lane.b32.xlu0 %v887, 96
    %v1176 = vpop.permute.xlu0 %1175
    %1177 = vrot.lane.b32.xlu0 %v888, 96
    %v1178 = vpop.permute.xlu0 %1177
    %1179 = vrot.lane.b32.xlu0 %v889, 96
    %v1180 = vpop.permute.xlu0 %1179
    %1181 = vrot.lane.b32.xlu0 %v890, 96
    %v1182 = vpop.permute.xlu0 %1181
    %1183 = vrot.lane.b32.xlu0 %v891, 96
    %v1184 = vpop.permute.xlu0 %1183
    %v1186 = vsel %vm991, %v1146, 0
    %v1189 = vsel %vm991, %v1148, 0
    %v1192 = vsel %vm991, %v1150, 0
    %v1195 = vsel %vm991, %v1152, 0
    %v1198 = vsel %vm991, %v1154, 0
    %v1201 = vsel %vm991, %v1156, 0
    %v1204 = vsel %vm991, %v1158, 0
    %v1207 = vsel %vm991, %v1160, 0
    %v1210 = vsel %vm991, %v1170, 0
    %v1213 = vsel %vm991, %v1172, 0
    %v1216 = vsel %vm991, %v1174, 0
    %v1219 = vsel %vm991, %v1176, 0
    %v1222 = vsel %vm991, %v1178, 0
    %v1225 = vsel %vm991, %v1180, 0
    %v1228 = vsel %vm991, %v1182, 0
    %v1231 = vsel %vm991, %v1184, 0
    %1233 = vmatprep.subr.bf16.mxu0 0
    %1234 = vmatpush1.bf16.xpose.msra.mxu0 %v1210
    %1235 = vmatprep.subr.bf16.mxu0 0
    %1236 = vmatpush1.bf16.xpose.msra.mxu0 %v1213
    %1237 = vmatprep.subr.bf16.mxu0 0
    %1238 = vmatpush1.bf16.xpose.msra.mxu0 %v1216
    %1239 = vmatprep.subr.bf16.mxu0 0
    %1240 = vmatpush1.bf16.xpose.msra.mxu0 %v1219
    %1241 = vmatprep.subr.bf16.mxu0 0
    %1242 = vmatpush1.bf16.xpose.msra.mxu0 %v1222
    %1243 = vmatprep.subr.bf16.mxu0 0
    %1244 = vmatpush1.bf16.xpose.msra.mxu0 %v1225
    %1245 = vmatprep.subr.bf16.mxu0 0
    %1246 = vmatpush1.bf16.xpose.msra.mxu0 %v1228
    %1247 = vmatprep.subr.bf16.mxu0 0
    %1248 = vmatpush1.bf16.xpose.msra.mxu0 %v1231
    %1249 = vmatprep.subr.bf16.mxu0 0
    %1250 = vmatpush1.bf16.xpose.msra.mxu0 0
    %1251 = vmatprep.subr.bf16.mxu0 0
    %1252 = vmatpush1.bf16.xpose.msra.mxu0 0
    %1253 = vmatprep.subr.bf16.mxu0 0
    %1254 = vmatpush1.bf16.xpose.msra.mxu0 0
    %1255 = vmatprep.subr.bf16.mxu0 0
    %1256 = vmatpush1.bf16.xpose.msra.mxu0 0
    %1257 = vmatprep.subr.bf16.mxu0 0
    %1258 = vmatpush1.bf16.xpose.msra.mxu0 0
    %1259 = vmatprep.subr.bf16.mxu0 0
    %1260 = vmatpush1.bf16.xpose.msra.mxu0 0
    %1261 = vmatprep.subr.bf16.mxu0 0
    %1262 = vmatpush1.bf16.xpose.msra.mxu0 0
    %1263 = vmatprep.subr.bf16.mxu0 0
    %1264 = vmatpush1.bf16.xpose.msra.mxu0 0
    %1265 = vmatprep.mubr.bf16.mxu0 0
    %1266 = vmatmul.mubr.bf16.gmra.mrb[0].mxu0 %v1186
    %v1267 = vpop.f32.mrb[0].mxu0
    %v1268 = vadd.f32 %v975, %v1267
    %v1269 = vpop.f32.mrb[0].mxu0
    %v1270 = vpop.f32.mrb[0].mxu0
    %v1271 = vadd.f32 %v976, %v1270
    %v1272 = vpop.f32.mrb[0].mxu0
    %1273 = vmatprep.mubr.bf16.mxu0 0
    %1274 = vmatmul.mubr.bf16.gmra.mrb[0].mxu0 %v1189
    %v1275 = vpop.f32.mrb[0].mxu0
    %v1276 = vadd.f32 %v977, %v1275
    %v1277 = vpop.f32.mrb[0].mxu0
    %v1278 = vpop.f32.mrb[0].mxu0
    %v1279 = vadd.f32 %v978, %v1278
    %v1280 = vpop.f32.mrb[0].mxu0
    %1281 = vmatprep.mubr.bf16.mxu0 0
    %1282 = vmatmul.mubr.bf16.gmra.mrb[0].mxu0 %v1192
    %v1283 = vpop.f32.mrb[0].mxu0
    %v1284 = vadd.f32 %v979, %v1283
    %v1285 = vpop.f32.mrb[0].mxu0
    %v1286 = vpop.f32.mrb[0].mxu0
    %v1287 = vadd.f32 %v980, %v1286
    %v1288 = vpop.f32.mrb[0].mxu0
    %1289 = vmatprep.mubr.bf16.mxu0 0
    %1290 = vmatmul.mubr.bf16.gmra.mrb[0].mxu0 %v1195
    %v1291 = vpop.f32.mrb[0].mxu0
    %v1292 = vadd.f32 %v981, %v1291
    %v1293 = vpop.f32.mrb[0].mxu0
    %v1294 = vpop.f32.mrb[0].mxu0
    %v1295 = vadd.f32 %v982, %v1294
    %v1296 = vpop.f32.mrb[0].mxu0
    %1297 = vmatprep.mubr.bf16.mxu0 0
    %1298 = vmatmul.mubr.bf16.gmra.mrb[0].mxu0 %v1198
    %v1299 = vpop.f32.mrb[0].mxu0
    %v1300 = vadd.f32 %v983, %v1299
    %v1301 = vpop.f32.mrb[0].mxu0
    %v1302 = vpop.f32.mrb[0].mxu0
    %v1303 = vadd.f32 %v984, %v1302
    %v1304 = vpop.f32.mrb[0].mxu0
    %1305 = vmatprep.mubr.bf16.mxu0 0
    %1306 = vmatmul.mubr.bf16.gmra.mrb[0].mxu0 %v1201
    %v1307 = vpop.f32.mrb[0].mxu0
    %v1308 = vadd.f32 %v985, %v1307
    %v1309 = vpop.f32.mrb[0].mxu0
    %v1310 = vpop.f32.mrb[0].mxu0
    %v1311 = vadd.f32 %v986, %v1310
    %v1312 = vpop.f32.mrb[0].mxu0
    %1313 = vmatprep.mubr.bf16.mxu0 0
    %1314 = vmatmul.mubr.bf16.gmra.mrb[0].mxu0 %v1204
    %v1315 = vpop.f32.mrb[0].mxu0
    %v1316 = vadd.f32 %v987, %v1315
    %v1317 = vpop.f32.mrb[0].mxu0
    %v1318 = vpop.f32.mrb[0].mxu0
    %v1319 = vadd.f32 %v988, %v1318
    %v1320 = vpop.f32.mrb[0].mxu0
    %1321 = vmatprep.mubr.bf16.mxu0 0
    %1322 = vmatmul.mubr.bf16.gmra.mrb[0].mxu0 %v1207
    %v1323 = vpop.f32.mrb[0].mxu0
    %v1324 = vadd.f32 %v989, %v1323
    %v1325 = vpop.f32.mrb[0].mxu0
    %v1326 = vpop.f32.mrb[0].mxu0
    %v1327 = vadd.f32 %v990, %v1326
    %v1328 = vpop.f32.mrb[0].mxu0
    %1329 = vdwg.mxu0
    %1330 = vrot.lane.b32.xlu0 %v868, 64
    %v1331 = vpop.permute.xlu0 %1330
    %1332 = vrot.lane.b32.xlu0 %v869, 64
    %v1333 = vpop.permute.xlu0 %1332
    %1334 = vrot.lane.b32.xlu0 %v870, 64
    %v1335 = vpop.permute.xlu0 %1334
    %1336 = vrot.lane.b32.xlu0 %v871, 64
    %v1337 = vpop.permute.xlu0 %1336
    %1338 = vrot.lane.b32.xlu0 %v872, 64
    %v1339 = vpop.permute.xlu0 %1338
    %1340 = vrot.lane.b32.xlu0 %v873, 64
    %v1341 = vpop.permute.xlu0 %1340
    %1342 = vrot.lane.b32.xlu0 %v874, 64
    %v1343 = vpop.permute.xlu0 %1342
    %1344 = vrot.lane.b32.xlu0 %v875, 64
    %v1345 = vpop.permute.xlu0 %1344
    %1346 = vrot.lane.b32.xlu0 %v884, 64
    %v1347 = vpop.permute.xlu0 %1346
    %1348 = vrot.lane.b32.xlu0 %v885, 64
    %v1349 = vpop.permute.xlu0 %1348
    %1350 = vrot.lane.b32.xlu0 %v886, 64
    %v1351 = vpop.permute.xlu0 %1350
    %1352 = vrot.lane.b32.xlu0 %v887, 64
    %v1353 = vpop.permute.xlu0 %1352
    %1354 = vrot.lane.b32.xlu0 %v888, 64
    %v1355 = vpop.permute.xlu0 %1354
    %1356 = vrot.lane.b32.xlu0 %v889, 64
    %v1357 = vpop.permute.xlu0 %1356
    %1358 = vrot.lane.b32.xlu0 %v890, 64
    %v1359 = vpop.permute.xlu0 %1358
    %1360 = vrot.lane.b32.xlu0 %v891, 64
    %v1361 = vpop.permute.xlu0 %1360
    %v1363 = vsel %vm991, %v1331, 0
    %v1366 = vsel %vm991, %v1333, 0
    %v1369 = vsel %vm991, %v1335, 0
    %v1372 = vsel %vm991, %v1337, 0
    %v1375 = vsel %vm991, %v1339, 0
    %v1378 = vsel %vm991, %v1341, 0
    %v1381 = vsel %vm991, %v1343, 0
    %v1384 = vsel %vm991, %v1345, 0
    %v1387 = vsel %vm991, %v1347, 0
    %v1390 = vsel %vm991, %v1349, 0
    %v1393 = vsel %vm991, %v1351, 0
    %v1396 = vsel %vm991, %v1353, 0
    %v1399 = vsel %vm991, %v1355, 0
    %v1402 = vsel %vm991, %v1357, 0
    %v1405 = vsel %vm991, %v1359, 0
    %v1408 = vsel %vm991, %v1361, 0
    %1410 = vmatprep.subr.bf16.mxu0 0
    %1411 = vmatpush1.bf16.xpose.msra.mxu0 %v1387
    %1412 = vmatprep.subr.bf16.mxu0 0
    %1413 = vmatpush1.bf16.xpose.msra.mxu0 %v1390
    %1414 = vmatprep.subr.bf16.mxu0 0
    %1415 = vmatpush1.bf16.xpose.msra.mxu0 %v1393
    %1416 = vmatprep.subr.bf16.mxu0 0
    %1417 = vmatpush1.bf16.xpose.msra.mxu0 %v1396
    %1418 = vmatprep.subr.bf16.mxu0 0
    %1419 = vmatpush1.bf16.xpose.msra.mxu0 %v1399
    %1420 = vmatprep.subr.bf16.mxu0 0
    %1421 = vmatpush1.bf16.xpose.msra.mxu0 %v1402
    %1422 = vmatprep.subr.bf16.mxu0 0
    %1423 = vmatpush1.bf16.xpose.msra.mxu0 %v1405
    %1424 = vmatprep.subr.bf16.mxu0 0
    %1425 = vmatpush1.bf16.xpose.msra.mxu0 %v1408
    %1426 = vmatprep.subr.bf16.mxu0 0
    %1427 = vmatpush1.bf16.xpose.msra.mxu0 0
    %1428 = vmatprep.subr.bf16.mxu0 0
    %1429 = vmatpush1.bf16.xpose.msra.mxu0 0
    %1430 = vmatprep.subr.bf16.mxu0 0
    %1431 = vmatpush1.bf16.xpose.msra.mxu0 0
    %1432 = vmatprep.subr.bf16.mxu0 0
    %1433 = vmatpush1.bf16.xpose.msra.mxu0 0
    %1434 = vmatprep.subr.bf16.mxu0 0
    %1435 = vmatpush1.bf16.xpose.msra.mxu0 0
    %1436 = vmatprep.subr.bf16.mxu0 0
    %1437 = vmatpush1.bf16.xpose.msra.mxu0 0
    %1438 = vmatprep.subr.bf16.mxu0 0
    %1439 = vmatpush1.bf16.xpose.msra.mxu0 0
    %1440 = vmatprep.subr.bf16.mxu0 0
    %1441 = vmatpush1.bf16.xpose.msra.mxu0 0
    %1442 = vmatprep.mubr.bf16.mxu0 0
    %1443 = vmatmul.mubr.bf16.gmra.mrb[0].mxu0 %v1363
    %v1444 = vpop.f32.mrb[0].mxu0
    %v1445 = vadd.f32 %v975, %v1444
    %v1446 = vpop.f32.mrb[0].mxu0
    %v1447 = vpop.f32.mrb[0].mxu0
    %v1448 = vadd.f32 %v976, %v1447
    %v1449 = vpop.f32.mrb[0].mxu0
    %1450 = vmatprep.mubr.bf16.mxu0 0
    %1451 = vmatmul.mubr.bf16.gmra.mrb[0].mxu0 %v1366
    %v1452 = vpop.f32.mrb[0].mxu0
    %v1453 = vadd.f32 %v977, %v1452
    %v1454 = vpop.f32.mrb[0].mxu0
    %v1455 = vpop.f32.mrb[0].mxu0
    %v1456 = vadd.f32 %v978, %v1455
    %v1457 = vpop.f32.mrb[0].mxu0
    %1458 = vmatprep.mubr.bf16.mxu0 0
    %1459 = vmatmul.mubr.bf16.gmra.mrb[0].mxu0 %v1369
    %v1460 = vpop.f32.mrb[0].mxu0
    %v1461 = vadd.f32 %v979, %v1460
    %v1462 = vpop.f32.mrb[0].mxu0
    %v1463 = vpop.f32.mrb[0].mxu0
    %v1464 = vadd.f32 %v980, %v1463
    %v1465 = vpop.f32.mrb[0].mxu0
    %1466 = vmatprep.mubr.bf16.mxu0 0
    %1467 = vmatmul.mubr.bf16.gmra.mrb[0].mxu0 %v1372
    %v1468 = vpop.f32.mrb[0].mxu0
    %v1469 = vadd.f32 %v981, %v1468
    %v1470 = vpop.f32.mrb[0].mxu0
    %v1471 = vpop.f32.mrb[0].mxu0
    %v1472 = vadd.f32 %v982, %v1471
    %v1473 = vpop.f32.mrb[0].mxu0
    %1474 = vmatprep.mubr.bf16.mxu0 0
    %1475 = vmatmul.mubr.bf16.gmra.mrb[0].mxu0 %v1375
    %v1476 = vpop.f32.mrb[0].mxu0
    %v1477 = vadd.f32 %v983, %v1476
    %v1478 = vpop.f32.mrb[0].mxu0
    %v1479 = vpop.f32.mrb[0].mxu0
    %v1480 = vadd.f32 %v984, %v1479
    %v1481 = vpop.f32.mrb[0].mxu0
    %1482 = vmatprep.mubr.bf16.mxu0 0
    %1483 = vmatmul.mubr.bf16.gmra.mrb[0].mxu0 %v1378
    %v1484 = vpop.f32.mrb[0].mxu0
    %v1485 = vadd.f32 %v985, %v1484
    %v1486 = vpop.f32.mrb[0].mxu0
    %v1487 = vpop.f32.mrb[0].mxu0
    %v1488 = vadd.f32 %v986, %v1487
    %v1489 = vpop.f32.mrb[0].mxu0
    %1490 = vmatprep.mubr.bf16.mxu0 0
    %1491 = vmatmul.mubr.bf16.gmra.mrb[0].mxu0 %v1381
    %v1492 = vpop.f32.mrb[0].mxu0
    %v1493 = vadd.f32 %v987, %v1492
    %v1494 = vpop.f32.mrb[0].mxu0
    %v1495 = vpop.f32.mrb[0].mxu0
    %v1496 = vadd.f32 %v988, %v1495
    %v1497 = vpop.f32.mrb[0].mxu0
    %1498 = vmatprep.mubr.bf16.mxu0 0
    %1499 = vmatmul.mubr.bf16.gmra.mrb[0].mxu0 %v1384
    %v1500 = vpop.f32.mrb[0].mxu0
    %v1501 = vadd.f32 %v989, %v1500
    %v1502 = vpop.f32.mrb[0].mxu0
    %v1503 = vpop.f32.mrb[0].mxu0
    %v1504 = vadd.f32 %v990, %v1503
    %v1505 = vpop.f32.mrb[0].mxu0
    %1506 = vdwg.mxu0
    %1507 = vrot.lane.b32.xlu0 %v868, 32
    %v1508 = vpop.permute.xlu0 %1507
    %1509 = vrot.lane.b32.xlu0 %v869, 32
    %v1510 = vpop.permute.xlu0 %1509
    %1511 = vrot.lane.b32.xlu0 %v870, 32
    %v1512 = vpop.permute.xlu0 %1511
    %1513 = vrot.lane.b32.xlu0 %v871, 32
    %v1514 = vpop.permute.xlu0 %1513
    %1515 = vrot.lane.b32.xlu0 %v872, 32
    %v1516 = vpop.permute.xlu0 %1515
    %1517 = vrot.lane.b32.xlu0 %v873, 32
    %v1518 = vpop.permute.xlu0 %1517
    %1519 = vrot.lane.b32.xlu0 %v874, 32
    %v1520 = vpop.permute.xlu0 %1519
    %1521 = vrot.lane.b32.xlu0 %v875, 32
    %v1522 = vpop.permute.xlu0 %1521
    %1523 = vrot.lane.b32.xlu0 %v884, 32
    %v1524 = vpop.permute.xlu0 %1523
    %1525 = vrot.lane.b32.xlu0 %v885, 32
    %v1526 = vpop.permute.xlu0 %1525
    %1527 = vrot.lane.b32.xlu0 %v886, 32
    %v1528 = vpop.permute.xlu0 %1527
    %1529 = vrot.lane.b32.xlu0 %v887, 32
    %v1530 = vpop.permute.xlu0 %1529
    %1531 = vrot.lane.b32.xlu0 %v888, 32
    %v1532 = vpop.permute.xlu0 %1531
    %1533 = vrot.lane.b32.xlu0 %v889, 32
    %v1534 = vpop.permute.xlu0 %1533
    %1535 = vrot.lane.b32.xlu0 %v890, 32
    %v1536 = vpop.permute.xlu0 %1535
    %1537 = vrot.lane.b32.xlu0 %v891, 32
    %v1538 = vpop.permute.xlu0 %1537
    %v1540 = vsel %vm991, %v1508, 0
    %v1543 = vsel %vm991, %v1510, 0
    %v1546 = vsel %vm991, %v1512, 0
    %v1549 = vsel %vm991, %v1514, 0
    %v1552 = vsel %vm991, %v1516, 0
    %v1555 = vsel %vm991, %v1518, 0
    %v1558 = vsel %vm991, %v1520, 0
    %v1561 = vsel %vm991, %v1522, 0
    %v1564 = vsel %vm991, %v1524, 0
    %v1567 = vsel %vm991, %v1526, 0
    %v1570 = vsel %vm991, %v1528, 0
    %v1573 = vsel %vm991, %v1530, 0
    %v1576 = vsel %vm991, %v1532, 0
    %v1579 = vsel %vm991, %v1534, 0
    %v1582 = vsel %vm991, %v1536, 0
    %v1585 = vsel %vm991, %v1538, 0
    %1587 = vmatprep.subr.bf16.mxu0 0
    %1588 = vmatpush1.bf16.xpose.msra.mxu0 %v1564
    %1589 = vmatprep.subr.bf16.mxu0 0
    %1590 = vmatpush1.bf16.xpose.msra.mxu0 %v1567
    %1591 = vmatprep.subr.bf16.mxu0 0
    %1592 = vmatpush1.bf16.xpose.msra.mxu0 %v1570
    %1593 = vmatprep.subr.bf16.mxu0 0
    %1594 = vmatpush1.bf16.xpose.msra.mxu0 %v1573
    %1595 = vmatprep.subr.bf16.mxu0 0
    %1596 = vmatpush1.bf16.xpose.msra.mxu0 %v1576
    %1597 = vmatprep.subr.bf16.mxu0 0
    %1598 = vmatpush1.bf16.xpose.msra.mxu0 %v1579
    %1599 = vmatprep.subr.bf16.mxu0 0
    %1600 = vmatpush1.bf16.xpose.msra.mxu0 %v1582
    %1601 = vmatprep.subr.bf16.mxu0 0
    %1602 = vmatpush1.bf16.xpose.msra.mxu0 %v1585
    %1603 = vmatprep.subr.bf16.mxu0 0
    %1604 = vmatpush1.bf16.xpose.msra.mxu0 0
    %1605 = vmatprep.subr.bf16.mxu0 0
    %1606 = vmatpush1.bf16.xpose.msra.mxu0 0
    %1607 = vmatprep.subr.bf16.mxu0 0
    %1608 = vmatpush1.bf16.xpose.msra.mxu0 0
    %1609 = vmatprep.subr.bf16.mxu0 0
    %1610 = vmatpush1.bf16.xpose.msra.mxu0 0
    %1611 = vmatprep.subr.bf16.mxu0 0
    %1612 = vmatpush1.bf16.xpose.msra.mxu0 0
    %1613 = vmatprep.subr.bf16.mxu0 0
    %1614 = vmatpush1.bf16.xpose.msra.mxu0 0
    %1615 = vmatprep.subr.bf16.mxu0 0
    %1616 = vmatpush1.bf16.xpose.msra.mxu0 0
    %1617 = vmatprep.subr.bf16.mxu0 0
    %1618 = vmatpush1.bf16.xpose.msra.mxu0 0
    %1619 = vmatprep.mubr.bf16.mxu0 0
    %1620 = vmatmul.mubr.bf16.gmra.mrb[0].mxu0 %v1540
    %v1621 = vpop.f32.mrb[0].mxu0
    %v1622 = vadd.f32 %v975, %v1621
    %v1623 = vpop.f32.mrb[0].mxu0
    %v1624 = vpop.f32.mrb[0].mxu0
    %v1625 = vadd.f32 %v976, %v1624
    %v1626 = vpop.f32.mrb[0].mxu0
    %1627 = vmatprep.mubr.bf16.mxu0 0
    %1628 = vmatmul.mubr.bf16.gmra.mrb[0].mxu0 %v1543
    %v1629 = vpop.f32.mrb[0].mxu0
    %v1630 = vadd.f32 %v977, %v1629
    %v1631 = vpop.f32.mrb[0].mxu0
    %v1632 = vpop.f32.mrb[0].mxu0
    %v1633 = vadd.f32 %v978, %v1632
    %v1634 = vpop.f32.mrb[0].mxu0
    %1635 = vmatprep.mubr.bf16.mxu0 0
    %1636 = vmatmul.mubr.bf16.gmra.mrb[0].mxu0 %v1546
    %v1637 = vpop.f32.mrb[0].mxu0
    %v1638 = vadd.f32 %v979, %v1637
    %v1639 = vpop.f32.mrb[0].mxu0
    %v1640 = vpop.f32.mrb[0].mxu0
    %v1641 = vadd.f32 %v980, %v1640
    %v1642 = vpop.f32.mrb[0].mxu0
    %1643 = vmatprep.mubr.bf16.mxu0 0
    %1644 = vmatmul.mubr.bf16.gmra.mrb[0].mxu0 %v1549
    %v1645 = vpop.f32.mrb[0].mxu0
    %v1646 = vadd.f32 %v981, %v1645
    %v1647 = vpop.f32.mrb[0].mxu0
    %v1648 = vpop.f32.mrb[0].mxu0
    %v1649 = vadd.f32 %v982, %v1648
    %v1650 = vpop.f32.mrb[0].mxu0
    %1651 = vmatprep.mubr.bf16.mxu0 0
    %1652 = vmatmul.mubr.bf16.gmra.mrb[0].mxu0 %v1552
    %v1653 = vpop.f32.mrb[0].mxu0
    %v1654 = vadd.f32 %v983, %v1653
    %v1655 = vpop.f32.mrb[0].mxu0
    %v1656 = vpop.f32.mrb[0].mxu0
    %v1657 = vadd.f32 %v984, %v1656
    %v1658 = vpop.f32.mrb[0].mxu0
    %1659 = vmatprep.mubr.bf16.mxu0 0
    %1660 = vmatmul.mubr.bf16.gmra.mrb[0].mxu0 %v1555
    %v1661 = vpop.f32.mrb[0].mxu0
    %v1662 = vadd.f32 %v985, %v1661
    %v1663 = vpop.f32.mrb[0].mxu0
    %v1664 = vpop.f32.mrb[0].mxu0
    %v1665 = vadd.f32 %v986, %v1664
    %v1666 = vpop.f32.mrb[0].mxu0
    %1667 = vmatprep.mubr.bf16.mxu0 0
    %1668 = vmatmul.mubr.bf16.gmra.mrb[0].mxu0 %v1558
    %v1669 = vpop.f32.mrb[0].mxu0
    %v1670 = vadd.f32 %v987, %v1669
    %v1671 = vpop.f32.mrb[0].mxu0
    %v1672 = vpop.f32.mrb[0].mxu0
    %v1673 = vadd.f32 %v988, %v1672
    %v1674 = vpop.f32.mrb[0].mxu0
    %1675 = vmatprep.mubr.bf16.mxu0 0
    %1676 = vmatmul.mubr.bf16.gmra.mrb[0].mxu0 %v1561
    %v1677 = vpop.f32.mrb[0].mxu0
    %v1678 = vadd.f32 %v989, %v1677
    %v1679 = vpop.f32.mrb[0].mxu0
    %v1680 = vpop.f32.mrb[0].mxu0
    %v1681 = vadd.f32 %v990, %v1680
    %v1682 = vpop.f32.mrb[0].mxu0
    %1683 = vdwg.mxu0
    %1684 = vmax.xlane.f32.xlu0 %v1075
    %v1685 = vpop.xlane.xlu0 %1684
    %1686 = vmax.xlane.f32.xlu0 %v1078
    %v1687 = vpop.xlane.xlu0 %1686
    %1688 = vmax.xlane.f32.xlu0 %v1083
    %v1689 = vpop.xlane.xlu0 %1688
    %1690 = vmax.xlane.f32.xlu0 %v1086
    %v1691 = vpop.xlane.xlu0 %1690
    %1692 = vmax.xlane.f32.xlu0 %v1091
    %v1693 = vpop.xlane.xlu0 %1692
    %1694 = vmax.xlane.f32.xlu0 %v1094
    %v1695 = vpop.xlane.xlu0 %1694
    %1696 = vmax.xlane.f32.xlu0 %v1099
    %v1697 = vpop.xlane.xlu0 %1696
    %1698 = vmax.xlane.f32.xlu0 %v1102
    %v1699 = vpop.xlane.xlu0 %1698
    %1700 = vmax.xlane.f32.xlu0 %v1107
    %v1701 = vpop.xlane.xlu0 %1700
    %1702 = vmax.xlane.f32.xlu0 %v1110
    %v1703 = vpop.xlane.xlu0 %1702
    %1704 = vmax.xlane.f32.xlu0 %v1115
    %v1705 = vpop.xlane.xlu0 %1704
    %1706 = vmax.xlane.f32.xlu0 %v1118
    %v1707 = vpop.xlane.xlu0 %1706
    %1708 = vmax.xlane.f32.xlu0 %v1123
    %v1709 = vpop.xlane.xlu0 %1708
    %1710 = vmax.xlane.f32.xlu0 %v1126
    %v1711 = vpop.xlane.xlu0 %1710
    %1712 = vmax.xlane.f32.xlu0 %v1131
    %v1713 = vpop.xlane.xlu0 %1712
    %1714 = vmax.xlane.f32.xlu0 %v1134
    %v1715 = vpop.xlane.xlu0 %1714
    %v1716 = vsub.f32 %v1075, %v1685
    %v1717 = vsub.f32 %v1078, %v1687
    %v1718 = vsub.f32 %v1083, %v1689
    %v1719 = vsub.f32 %v1086, %v1691
    %v1720 = vsub.f32 %v1091, %v1693
    %v1721 = vsub.f32 %v1094, %v1695
    %v1722 = vsub.f32 %v1099, %v1697
    %v1723 = vsub.f32 %v1102, %v1699
    %v1724 = vsub.f32 %v1107, %v1701
    %v1725 = vsub.f32 %v1110, %v1703
    %v1726 = vsub.f32 %v1115, %v1705
    %v1727 = vsub.f32 %v1118, %v1707
    %v1728 = vsub.f32 %v1123, %v1709
    %v1729 = vsub.f32 %v1126, %v1711
    %v1730 = vsub.f32 %v1131, %v1713
    %v1731 = vsub.f32 %v1134, %v1715
    %v1732 = vmul.f32 %v1716, 1.442695
    %v1733 = vpow.pop %v1732
    %v1734 = vmul.f32 %v1717, 1.442695
    %v1735 = vpow.pop %v1734
    %v1736 = vmul.f32 %v1718, 1.442695
    %v1737 = vpow.pop %v1736
    %v1738 = vmul.f32 %v1719, 1.442695
    %v1739 = vpow.pop %v1738
    %v1740 = vmul.f32 %v1720, 1.442695
    %v1741 = vpow.pop %v1740
    %v1742 = vmul.f32 %v1721, 1.442695
    %v1743 = vpow.pop %v1742
    %v1744 = vmul.f32 %v1722, 1.442695
    %v1745 = vpow.pop %v1744
    %v1746 = vmul.f32 %v1723, 1.442695
    %v1747 = vpow.pop %v1746
    %v1748 = vmul.f32 %v1724, 1.442695
    %v1749 = vpow.pop %v1748
    %v1750 = vmul.f32 %v1725, 1.442695
    %v1751 = vpow.pop %v1750
    %v1752 = vmul.f32 %v1726, 1.442695
    %v1753 = vpow.pop %v1752
    %v1754 = vmul.f32 %v1727, 1.442695
    %v1755 = vpow.pop %v1754
    %v1756 = vmul.f32 %v1728, 1.442695
    %v1757 = vpow.pop %v1756
    %v1758 = vmul.f32 %v1729, 1.442695
    %v1759 = vpow.pop %v1758
    %v1760 = vmul.f32 %v1730, 1.442695
    %v1761 = vpow.pop %v1760
    %v1762 = vmul.f32 %v1731, 1.442695
    %v1763 = vpow.pop %v1762
    %1764 = vadd.xlane.f32.xlu0 %v1733
    %v1765 = vpop.xlane.xlu0 %1764
    %1766 = vadd.xlane.f32.xlu0 %v1735
    %v1767 = vpop.xlane.xlu0 %1766
    %1768 = vadd.xlane.f32.xlu0 %v1737
    %v1769 = vpop.xlane.xlu0 %1768
    %1770 = vadd.xlane.f32.xlu0 %v1739
    %v1771 = vpop.xlane.xlu0 %1770
    %1772 = vadd.xlane.f32.xlu0 %v1741
    %v1773 = vpop.xlane.xlu0 %1772
    %1774 = vadd.xlane.f32.xlu0 %v1743
    %v1775 = vpop.xlane.xlu0 %1774
    %1776 = vadd.xlane.f32.xlu0 %v1745
    %v1777 = vpop.xlane.xlu0 %1776
    %1778 = vadd.xlane.f32.xlu0 %v1747
    %v1779 = vpop.xlane.xlu0 %1778
    %1780 = vadd.xlane.f32.xlu0 %v1749
    %v1781 = vpop.xlane.xlu0 %1780
    %1782 = vadd.xlane.f32.xlu0 %v1751
    %v1783 = vpop.xlane.xlu0 %1782
    %1784 = vadd.xlane.f32.xlu0 %v1753
    %v1785 = vpop.xlane.xlu0 %1784
    %1786 = vadd.xlane.f32.xlu0 %v1755
    %v1787 = vpop.xlane.xlu0 %1786
    %1788 = vadd.xlane.f32.xlu0 %v1757
    %v1789 = vpop.xlane.xlu0 %1788
    %1790 = vadd.xlane.f32.xlu0 %v1759
    %v1791 = vpop.xlane.xlu0 %1790
    %1792 = vadd.xlane.f32.xlu0 %v1761
    %v1793 = vpop.xlane.xlu0 %1792
    %1794 = vadd.xlane.f32.xlu0 %v1763
    %v1795 = vpop.xlane.xlu0 %1794
    %v1796 = vpack.c.bf16 %v1735, %v1733
    %v1797 = vpack.c.bf16 %v1739, %v1737
    %v1798 = vpack.c.bf16 %v1743, %v1741
    %v1799 = vpack.c.bf16 %v1747, %v1745
    %v1800 = vpack.c.bf16 %v1751, %v1749
    %v1801 = vpack.c.bf16 %v1755, %v1753
    %v1802 = vpack.c.bf16 %v1759, %v1757
    %v1803 = vpack.c.bf16 %v1763, %v1761
    %v1804 = vrcp.pop %v1765
    %v1805 = vrcp.pop %v1767
    %v1806 = vrcp.pop %v1769
    %v1807 = vrcp.pop %v1771
    %v1808 = vrcp.pop %v1773
    %v1809 = vrcp.pop %v1775
    %v1810 = vrcp.pop %v1777
    %v1811 = vrcp.pop %v1779
    %v1812 = vrcp.pop %v1781
    %v1813 = vrcp.pop %v1783
    %v1814 = vrcp.pop %v1785
    %v1815 = vrcp.pop %v1787
    %v1816 = vrcp.pop %v1789
    %v1817 = vrcp.pop %v1791
    %v1818 = vrcp.pop %v1793
    %v1819 = vrcp.pop %v1795
    %1820 = vmax.xlane.f32.xlu0 %v1268
    %v1821 = vpop.xlane.xlu0 %1820
    %1822 = vmax.xlane.f32.xlu0 %v1271
    %v1823 = vpop.xlane.xlu0 %1822
    %1824 = vmax.xlane.f32.xlu0 %v1276
    %v1825 = vpop.xlane.xlu0 %1824
    %1826 = vmax.xlane.f32.xlu0 %v1279
    %v1827 = vpop.xlane.xlu0 %1826
    %1828 = vmax.xlane.f32.xlu0 %v1284
    %v1829 = vpop.xlane.xlu0 %1828
    %1830 = vmax.xlane.f32.xlu0 %v1287
    %v1831 = vpop.xlane.xlu0 %1830
    %1832 = vmax.xlane.f32.xlu0 %v1292
    %v1833 = vpop.xlane.xlu0 %1832
    %1834 = vmax.xlane.f32.xlu0 %v1295
    %v1835 = vpop.xlane.xlu0 %1834
    %1836 = vmax.xlane.f32.xlu0 %v1300
    %v1837 = vpop.xlane.xlu0 %1836
    %1838 = vmax.xlane.f32.xlu0 %v1303
    %v1839 = vpop.xlane.xlu0 %1838
    %1840 = vmax.xlane.f32.xlu0 %v1308
    %v1841 = vpop.xlane.xlu0 %1840
    %1842 = vmax.xlane.f32.xlu0 %v1311
    %v1843 = vpop.xlane.xlu0 %1842
    %1844 = vmax.xlane.f32.xlu0 %v1316
    %v1845 = vpop.xlane.xlu0 %1844
    %1846 = vmax.xlane.f32.xlu0 %v1319
    %v1847 = vpop.xlane.xlu0 %1846
    %1848 = vmax.xlane.f32.xlu0 %v1324
    %v1849 = vpop.xlane.xlu0 %1848
    %1850 = vmax.xlane.f32.xlu0 %v1327
    %v1851 = vpop.xlane.xlu0 %1850
    %v1852 = vsub.f32 %v1268, %v1821
    %v1853 = vsub.f32 %v1271, %v1823
    %v1854 = vsub.f32 %v1276, %v1825
    %v1855 = vsub.f32 %v1279, %v1827
    %v1856 = vsub.f32 %v1284, %v1829
    %v1857 = vsub.f32 %v1287, %v1831
    %v1858 = vsub.f32 %v1292, %v1833
    %v1859 = vsub.f32 %v1295, %v1835
    %v1860 = vsub.f32 %v1300, %v1837
    %v1861 = vsub.f32 %v1303, %v1839
    %v1862 = vsub.f32 %v1308, %v1841
    %v1863 = vsub.f32 %v1311, %v1843
    %v1864 = vsub.f32 %v1316, %v1845
    %v1865 = vsub.f32 %v1319, %v1847
    %v1866 = vsub.f32 %v1324, %v1849
    %v1867 = vsub.f32 %v1327, %v1851
    %v1868 = vmul.f32 %v1852, 1.442695
    %v1869 = vpow.pop %v1868
    %v1870 = vmul.f32 %v1853, 1.442695
    %v1871 = vpow.pop %v1870
    %v1872 = vmul.f32 %v1854, 1.442695
    %v1873 = vpow.pop %v1872
    %v1874 = vmul.f32 %v1855, 1.442695
    %v1875 = vpow.pop %v1874
    %v1876 = vmul.f32 %v1856, 1.442695
    %v1877 = vpow.pop %v1876
    %v1878 = vmul.f32 %v1857, 1.442695
    %v1879 = vpow.pop %v1878
    %v1880 = vmul.f32 %v1858, 1.442695
    %v1881 = vpow.pop %v1880
    %v1882 = vmul.f32 %v1859, 1.442695
    %v1883 = vpow.pop %v1882
    %v1884 = vmul.f32 %v1860, 1.442695
    %v1885 = vpow.pop %v1884
    %v1886 = vmul.f32 %v1861, 1.442695
    %v1887 = vpow.pop %v1886
    %v1888 = vmul.f32 %v1862, 1.442695
    %v1889 = vpow.pop %v1888
    %v1890 = vmul.f32 %v1863, 1.442695
    %v1891 = vpow.pop %v1890
    %v1892 = vmul.f32 %v1864, 1.442695
    %v1893 = vpow.pop %v1892
    %v1894 = vmul.f32 %v1865, 1.442695
    %v1895 = vpow.pop %v1894
    %v1896 = vmul.f32 %v1866, 1.442695
    %v1897 = vpow.pop %v1896
    %v1898 = vmul.f32 %v1867, 1.442695
    %v1899 = vpow.pop %v1898
    %1900 = vadd.xlane.f32.xlu0 %v1869
    %v1901 = vpop.xlane.xlu0 %1900
    %1902 = vadd.xlane.f32.xlu0 %v1871
    %v1903 = vpop.xlane.xlu0 %1902
    %1904 = vadd.xlane.f32.xlu0 %v1873
    %v1905 = vpop.xlane.xlu0 %1904
    %1906 = vadd.xlane.f32.xlu0 %v1875
    %v1907 = vpop.xlane.xlu0 %1906
    %1908 = vadd.xlane.f32.xlu0 %v1877
    %v1909 = vpop.xlane.xlu0 %1908
    %1910 = vadd.xlane.f32.xlu0 %v1879
    %v1911 = vpop.xlane.xlu0 %1910
    %1912 = vadd.xlane.f32.xlu0 %v1881
    %v1913 = vpop.xlane.xlu0 %1912
    %1914 = vadd.xlane.f32.xlu0 %v1883
    %v1915 = vpop.xlane.xlu0 %1914
    %1916 = vadd.xlane.f32.xlu0 %v1885
    %v1917 = vpop.xlane.xlu0 %1916
    %1918 = vadd.xlane.f32.xlu0 %v1887
    %v1919 = vpop.xlane.xlu0 %1918
    %1920 = vadd.xlane.f32.xlu0 %v1889
    %v1921 = vpop.xlane.xlu0 %1920
    %1922 = vadd.xlane.f32.xlu0 %v1891
    %v1923 = vpop.xlane.xlu0 %1922
    %1924 = vadd.xlane.f32.xlu0 %v1893
    %v1925 = vpop.xlane.xlu0 %1924
    %1926 = vadd.xlane.f32.xlu0 %v1895
    %v1927 = vpop.xlane.xlu0 %1926
    %1928 = vadd.xlane.f32.xlu0 %v1897
    %v1929 = vpop.xlane.xlu0 %1928
    %1930 = vadd.xlane.f32.xlu0 %v1899
    %v1931 = vpop.xlane.xlu0 %1930
    %v1932 = vpack.c.bf16 %v1871, %v1869
    %v1933 = vpack.c.bf16 %v1875, %v1873
    %v1934 = vpack.c.bf16 %v1879, %v1877
    %v1935 = vpack.c.bf16 %v1883, %v1881
    %v1936 = vpack.c.bf16 %v1887, %v1885
    %v1937 = vpack.c.bf16 %v1891, %v1889
    %v1938 = vpack.c.bf16 %v1895, %v1893
    %v1939 = vpack.c.bf16 %v1899, %v1897
    %v1940 = vrcp.pop %v1901
    %v1941 = vrcp.pop %v1903
    %v1942 = vrcp.pop %v1905
    %v1943 = vrcp.pop %v1907
    %v1944 = vrcp.pop %v1909
    %v1945 = vrcp.pop %v1911
    %v1946 = vrcp.pop %v1913
    %v1947 = vrcp.pop %v1915
    %v1948 = vrcp.pop %v1917
    %v1949 = vrcp.pop %v1919
    %v1950 = vrcp.pop %v1921
    %v1951 = vrcp.pop %v1923
    %v1952 = vrcp.pop %v1925
    %v1953 = vrcp.pop %v1927
    %v1954 = vrcp.pop %v1929
    %v1955 = vrcp.pop %v1931
    %1956 = vmax.xlane.f32.xlu0 %v1445
    %v1957 = vpop.xlane.xlu0 %1956
    %1958 = vmax.xlane.f32.xlu0 %v1448
    %v1959 = vpop.xlane.xlu0 %1958
    %1960 = vmax.xlane.f32.xlu0 %v1453
    %v1961 = vpop.xlane.xlu0 %1960
    %1962 = vmax.xlane.f32.xlu0 %v1456
    %v1963 = vpop.xlane.xlu0 %1962
    %1964 = vmax.xlane.f32.xlu0 %v1461
    %v1965 = vpop.xlane.xlu0 %1964
    %1966 = vmax.xlane.f32.xlu0 %v1464
    %v1967 = vpop.xlane.xlu0 %1966
    %1968 = vmax.xlane.f32.xlu0 %v1469
    %v1969 = vpop.xlane.xlu0 %1968
    %1970 = vmax.xlane.f32.xlu0 %v1472
    %v1971 = vpop.xlane.xlu0 %1970
    %1972 = vmax.xlane.f32.xlu0 %v1477
    %v1973 = vpop.xlane.xlu0 %1972
    %1974 = vmax.xlane.f32.xlu0 %v1480
    %v1975 = vpop.xlane.xlu0 %1974
    %1976 = vmax.xlane.f32.xlu0 %v1485
    %v1977 = vpop.xlane.xlu0 %1976
    %1978 = vmax.xlane.f32.xlu0 %v1488
    %v1979 = vpop.xlane.xlu0 %1978
    %1980 = vmax.xlane.f32.xlu0 %v1493
    %v1981 = vpop.xlane.xlu0 %1980
    %1982 = vmax.xlane.f32.xlu0 %v1496
    %v1983 = vpop.xlane.xlu0 %1982
    %1984 = vmax.xlane.f32.xlu0 %v1501
    %v1985 = vpop.xlane.xlu0 %1984
    %1986 = vmax.xlane.f32.xlu0 %v1504
    %v1987 = vpop.xlane.xlu0 %1986
    %v1988 = vsub.f32 %v1445, %v1957
    %v1989 = vsub.f32 %v1448, %v1959
    %v1990 = vsub.f32 %v1453, %v1961
    %v1991 = vsub.f32 %v1456, %v1963
    %v1992 = vsub.f32 %v1461, %v1965
    %v1993 = vsub.f32 %v1464, %v1967
    %v1994 = vsub.f32 %v1469, %v1969
    %v1995 = vsub.f32 %v1472, %v1971
    %v1996 = vsub.f32 %v1477, %v1973
    %v1997 = vsub.f32 %v1480, %v1975
    %v1998 = vsub.f32 %v1485, %v1977
    %v1999 = vsub.f32 %v1488, %v1979
    %v2000 = vsub.f32 %v1493, %v1981
    %v2001 = vsub.f32 %v1496, %v1983
    %v2002 = vsub.f32 %v1501, %v1985
    %v2003 = vsub.f32 %v1504, %v1987
    %v2004 = vmul.f32 %v1988, 1.442695
    %v2005 = vpow.pop %v2004
    %v2006 = vmul.f32 %v1989, 1.442695
    %v2007 = vpow.pop %v2006
    %v2008 = vmul.f32 %v1990, 1.442695
    %v2009 = vpow.pop %v2008
    %v2010 = vmul.f32 %v1991, 1.442695
    %v2011 = vpow.pop %v2010
    %v2012 = vmul.f32 %v1992, 1.442695
    %v2013 = vpow.pop %v2012
    %v2014 = vmul.f32 %v1993, 1.442695
    %v2015 = vpow.pop %v2014
    %v2016 = vmul.f32 %v1994, 1.442695
    %v2017 = vpow.pop %v2016
    %v2018 = vmul.f32 %v1995, 1.442695
    %v2019 = vpow.pop %v2018
    %v2020 = vmul.f32 %v1996, 1.442695
    %v2021 = vpow.pop %v2020
    %v2022 = vmul.f32 %v1997, 1.442695
    %v2023 = vpow.pop %v2022
    %v2024 = vmul.f32 %v1998, 1.442695
    %v2025 = vpow.pop %v2024
    %v2026 = vmul.f32 %v1999, 1.442695
    %v2027 = vpow.pop %v2026
    %v2028 = vmul.f32 %v2000, 1.442695
    %v2029 = vpow.pop %v2028
    %v2030 = vmul.f32 %v2001, 1.442695
    %v2031 = vpow.pop %v2030
    %v2032 = vmul.f32 %v2002, 1.442695
    %v2033 = vpow.pop %v2032
    %v2034 = vmul.f32 %v2003, 1.442695
    %v2035 = vpow.pop %v2034
    %2036 = vadd.xlane.f32.xlu0 %v2005
    %v2037 = vpop.xlane.xlu0 %2036
    %2038 = vadd.xlane.f32.xlu0 %v2007
    %v2039 = vpop.xlane.xlu0 %2038
    %2040 = vadd.xlane.f32.xlu0 %v2009
    %v2041 = vpop.xlane.xlu0 %2040
    %2042 = vadd.xlane.f32.xlu0 %v2011
    %v2043 = vpop.xlane.xlu0 %2042
    %2044 = vadd.xlane.f32.xlu0 %v2013
    %v2045 = vpop.xlane.xlu0 %2044
    %2046 = vadd.xlane.f32.xlu0 %v2015
    %v2047 = vpop.xlane.xlu0 %2046
    %2048 = vadd.xlane.f32.xlu0 %v2017
    %v2049 = vpop.xlane.xlu0 %2048
    %2050 = vadd.xlane.f32.xlu0 %v2019
    %v2051 = vpop.xlane.xlu0 %2050
    %2052 = vadd.xlane.f32.xlu0 %v2021
    %v2053 = vpop.xlane.xlu0 %2052
    %2054 = vadd.xlane.f32.xlu0 %v2023
    %v2055 = vpop.xlane.xlu0 %2054
    %2056 = vadd.xlane.f32.xlu0 %v2025
    %v2057 = vpop.xlane.xlu0 %2056
    %2058 = vadd.xlane.f32.xlu0 %v2027
    %v2059 = vpop.xlane.xlu0 %2058
    %2060 = vadd.xlane.f32.xlu0 %v2029
    %v2061 = vpop.xlane.xlu0 %2060
    %2062 = vadd.xlane.f32.xlu0 %v2031
    %v2063 = vpop.xlane.xlu0 %2062
    %2064 = vadd.xlane.f32.xlu0 %v2033
    %v2065 = vpop.xlane.xlu0 %2064
    %2066 = vadd.xlane.f32.xlu0 %v2035
    %v2067 = vpop.xlane.xlu0 %2066
    %v2068 = vpack.c.bf16 %v2007, %v2005
    %v2069 = vpack.c.bf16 %v2011, %v2009
    %v2070 = vpack.c.bf16 %v2015, %v2013
    %v2071 = vpack.c.bf16 %v2019, %v2017
    %v2072 = vpack.c.bf16 %v2023, %v2021
    %v2073 = vpack.c.bf16 %v2027, %v2025
    %v2074 = vpack.c.bf16 %v2031, %v2029
    %v2075 = vpack.c.bf16 %v2035, %v2033
    %v2076 = vrcp.pop %v2037
    %v2077 = vrcp.pop %v2039
    %v2078 = vrcp.pop %v2041
    %v2079 = vrcp.pop %v2043
    %v2080 = vrcp.pop %v2045
    %v2081 = vrcp.pop %v2047
    %v2082 = vrcp.pop %v2049
    %v2083 = vrcp.pop %v2051
    %v2084 = vrcp.pop %v2053
    %v2085 = vrcp.pop %v2055
    %v2086 = vrcp.pop %v2057
    %v2087 = vrcp.pop %v2059
    %v2088 = vrcp.pop %v2061
    %v2089 = vrcp.pop %v2063
    %v2090 = vrcp.pop %v2065
    %v2091 = vrcp.pop %v2067
    %2092 = vmax.xlane.f32.xlu0 %v1622
    %v2093 = vpop.xlane.xlu0 %2092
    %2094 = vmax.xlane.f32.xlu0 %v1625
    %v2095 = vpop.xlane.xlu0 %2094
    %2096 = vmax.xlane.f32.xlu0 %v1630
    %v2097 = vpop.xlane.xlu0 %2096
    %2098 = vmax.xlane.f32.xlu0 %v1633
    %v2099 = vpop.xlane.xlu0 %2098
    %2100 = vmax.xlane.f32.xlu0 %v1638
    %v2101 = vpop.xlane.xlu0 %2100
    %2102 = vmax.xlane.f32.xlu0 %v1641
    %v2103 = vpop.xlane.xlu0 %2102
    %2104 = vmax.xlane.f32.xlu0 %v1646
    %v2105 = vpop.xlane.xlu0 %2104
    %2106 = vmax.xlane.f32.xlu0 %v1649
    %v2107 = vpop.xlane.xlu0 %2106
    %2108 = vmax.xlane.f32.xlu0 %v1654
    %v2109 = vpop.xlane.xlu0 %2108
    %2110 = vmax.xlane.f32.xlu0 %v1657
    %v2111 = vpop.xlane.xlu0 %2110
    %2112 = vmax.xlane.f32.xlu0 %v1662
    %v2113 = vpop.xlane.xlu0 %2112
    %2114 = vmax.xlane.f32.xlu0 %v1665
    %v2115 = vpop.xlane.xlu0 %2114
    %2116 = vmax.xlane.f32.xlu0 %v1670
    %v2117 = vpop.xlane.xlu0 %2116
    %2118 = vmax.xlane.f32.xlu0 %v1673
    %v2119 = vpop.xlane.xlu0 %2118
    %2120 = vmax.xlane.f32.xlu0 %v1678
    %v2121 = vpop.xlane.xlu0 %2120
    %2122 = vmax.xlane.f32.xlu0 %v1681
    %v2123 = vpop.xlane.xlu0 %2122
    %v2124 = vsub.f32 %v1622, %v2093
    %v2125 = vsub.f32 %v1625, %v2095
    %v2126 = vsub.f32 %v1630, %v2097
    %v2127 = vsub.f32 %v1633, %v2099
    %v2128 = vsub.f32 %v1638, %v2101
    %v2129 = vsub.f32 %v1641, %v2103
    %v2130 = vsub.f32 %v1646, %v2105
    %v2131 = vsub.f32 %v1649, %v2107
    %v2132 = vsub.f32 %v1654, %v2109
    %v2133 = vsub.f32 %v1657, %v2111
    %v2134 = vsub.f32 %v1662, %v2113
    %v2135 = vsub.f32 %v1665, %v2115
    %v2136 = vsub.f32 %v1670, %v2117
    %v2137 = vsub.f32 %v1673, %v2119
    %v2138 = vsub.f32 %v1678, %v2121
    %v2139 = vsub.f32 %v1681, %v2123
    %v2140 = vmul.f32 %v2124, 1.442695
    %v2141 = vpow.pop %v2140
    %v2142 = vmul.f32 %v2125, 1.442695
    %v2143 = vpow.pop %v2142
    %v2144 = vmul.f32 %v2126, 1.442695
    %v2145 = vpow.pop %v2144
    %v2146 = vmul.f32 %v2127, 1.442695
    %v2147 = vpow.pop %v2146
    %v2148 = vmul.f32 %v2128, 1.442695
    %v2149 = vpow.pop %v2148
    %v2150 = vmul.f32 %v2129, 1.442695
    %v2151 = vpow.pop %v2150
    %v2152 = vmul.f32 %v2130, 1.442695
    %v2153 = vpow.pop %v2152
    %v2154 = vmul.f32 %v2131, 1.442695
    %v2155 = vpow.pop %v2154
    %v2156 = vmul.f32 %v2132, 1.442695
    %v2157 = vpow.pop %v2156
    %v2158 = vmul.f32 %v2133, 1.442695
    %v2159 = vpow.pop %v2158
    %v2160 = vmul.f32 %v2134, 1.442695
    %v2161 = vpow.pop %v2160
    %v2162 = vmul.f32 %v2135, 1.442695
    %v2163 = vpow.pop %v2162
    %v2164 = vmul.f32 %v2136, 1.442695
    %v2165 = vpow.pop %v2164
    %v2166 = vmul.f32 %v2137, 1.442695
    %v2167 = vpow.pop %v2166
    %v2168 = vmul.f32 %v2138, 1.442695
    %v2169 = vpow.pop %v2168
    %v2170 = vmul.f32 %v2139, 1.442695
    %v2171 = vpow.pop %v2170
    %2172 = vadd.xlane.f32.xlu0 %v2141
    %v2173 = vpop.xlane.xlu0 %2172
    %2174 = vadd.xlane.f32.xlu0 %v2143
    %v2175 = vpop.xlane.xlu0 %2174
    %2176 = vadd.xlane.f32.xlu0 %v2145
    %v2177 = vpop.xlane.xlu0 %2176
    %2178 = vadd.xlane.f32.xlu0 %v2147
    %v2179 = vpop.xlane.xlu0 %2178
    %2180 = vadd.xlane.f32.xlu0 %v2149
    %v2181 = vpop.xlane.xlu0 %2180
    %2182 = vadd.xlane.f32.xlu0 %v2151
    %v2183 = vpop.xlane.xlu0 %2182
    %2184 = vadd.xlane.f32.xlu0 %v2153
    %v2185 = vpop.xlane.xlu0 %2184
    %2186 = vadd.xlane.f32.xlu0 %v2155
    %v2187 = vpop.xlane.xlu0 %2186
    %2188 = vadd.xlane.f32.xlu0 %v2157
    %v2189 = vpop.xlane.xlu0 %2188
    %2190 = vadd.xlane.f32.xlu0 %v2159
    %v2191 = vpop.xlane.xlu0 %2190
    %2192 = vadd.xlane.f32.xlu0 %v2161
    %v2193 = vpop.xlane.xlu0 %2192
    %2194 = vadd.xlane.f32.xlu0 %v2163
    %v2195 = vpop.xlane.xlu0 %2194
    %2196 = vadd.xlane.f32.xlu0 %v2165
    %v2197 = vpop.xlane.xlu0 %2196
    %2198 = vadd.xlane.f32.xlu0 %v2167
    %v2199 = vpop.xlane.xlu0 %2198
    %2200 = vadd.xlane.f32.xlu0 %v2169
    %v2201 = vpop.xlane.xlu0 %2200
    %2202 = vadd.xlane.f32.xlu0 %v2171
    %v2203 = vpop.xlane.xlu0 %2202
    %v2204 = vpack.c.bf16 %v2143, %v2141
    %v2205 = vpack.c.bf16 %v2147, %v2145
    %v2206 = vpack.c.bf16 %v2151, %v2149
    %v2207 = vpack.c.bf16 %v2155, %v2153
    %v2208 = vpack.c.bf16 %v2159, %v2157
    %v2209 = vpack.c.bf16 %v2163, %v2161
    %v2210 = vpack.c.bf16 %v2167, %v2165
    %v2211 = vpack.c.bf16 %v2171, %v2169
    %v2212 = vrcp.pop %v2173
    %v2213 = vrcp.pop %v2175
    %v2214 = vrcp.pop %v2177
    %v2215 = vrcp.pop %v2179
    %v2216 = vrcp.pop %v2181
    %v2217 = vrcp.pop %v2183
    %v2218 = vrcp.pop %v2185
    %v2219 = vrcp.pop %v2187
    %v2220 = vrcp.pop %v2189
    %v2221 = vrcp.pop %v2191
    %v2222 = vrcp.pop %v2193
    %v2223 = vrcp.pop %v2195
    %v2224 = vrcp.pop %v2197
    %v2225 = vrcp.pop %v2199
    %v2226 = vrcp.pop %v2201
    %v2227 = vrcp.pop %v2203
    %2228 = vmatprep.subr.bf16.mxu0 0
    %2229 = vmatpush1.bf16.msra.mxu0 %v900
    %2230 = vmatprep.subr.bf16.mxu0 0
    %2231 = vmatpush1.bf16.msra.mxu0 %v901
    %2232 = vmatprep.subr.bf16.mxu0 0
    %2233 = vmatpush1.bf16.msra.mxu0 %v902
    %2234 = vmatprep.subr.bf16.mxu0 0
    %2235 = vmatpush1.bf16.msra.mxu0 %v903
    %2236 = vmatprep.subr.bf16.mxu0 0
    %2237 = vmatpush1.bf16.msra.mxu0 %v904
    %2238 = vmatprep.subr.bf16.mxu0 0
    %2239 = vmatpush1.bf16.msra.mxu0 %v905
    %2240 = vmatprep.subr.bf16.mxu0 0
    %2241 = vmatpush1.bf16.msra.mxu0 %v906
    %2242 = vmatprep.subr.bf16.mxu0 0
    %2243 = vmatpush1.bf16.msra.mxu0 %v907
    %2244 = vmatprep.subr.bf16.mxu0 0
    %2245 = vmatpush1.bf16.msra.mxu0 0
    %2246 = vmatprep.subr.bf16.mxu0 0
    %2247 = vmatpush1.bf16.msra.mxu0 0
    %2248 = vmatprep.subr.bf16.mxu0 0
    %2249 = vmatpush1.bf16.msra.mxu0 0
    %2250 = vmatprep.subr.bf16.mxu0 0
    %2251 = vmatpush1.bf16.msra.mxu0 0
    %2252 = vmatprep.subr.bf16.mxu0 0
    %2253 = vmatpush1.bf16.msra.mxu0 0
    %2254 = vmatprep.subr.bf16.mxu0 0
    %2255 = vmatpush1.bf16.msra.mxu0 0
    %2256 = vmatprep.subr.bf16.mxu0 0
    %2257 = vmatpush1.bf16.msra.mxu0 0
    %2258 = vmatprep.subr.bf16.mxu0 0
    %2259 = vmatpush1.bf16.msra.mxu0 0
    %2260 = vmatprep.mubr.bf16.mxu0 0
    %2261 = vmatmul.mubr.bf16.gmra.mrb[0].mxu0 %v1796
    %v2262 = vpop.f32.mrb[0].mxu0
    %v2263 = vadd.f32 0.0, %v2262
    %v2264 = vpop.f32.mrb[0].mxu0
    %v2265 = vpop.f32.mrb[0].mxu0
    %v2266 = vadd.f32 0.0, %v2265
    %v2267 = vpop.f32.mrb[0].mxu0
    %2268 = vmatprep.mubr.bf16.mxu0 0
    %2269 = vmatmul.mubr.bf16.gmra.mrb[0].mxu0 %v1797
    %v2270 = vpop.f32.mrb[0].mxu0
    %v2271 = vadd.f32 0.0, %v2270
    %v2272 = vpop.f32.mrb[0].mxu0
    %v2273 = vpop.f32.mrb[0].mxu0
    %v2274 = vadd.f32 0.0, %v2273
    %v2275 = vpop.f32.mrb[0].mxu0
    %2276 = vmatprep.mubr.bf16.mxu0 0
    %2277 = vmatmul.mubr.bf16.gmra.mrb[0].mxu0 %v1798
    %v2278 = vpop.f32.mrb[0].mxu0
    %v2279 = vadd.f32 0.0, %v2278
    %v2280 = vpop.f32.mrb[0].mxu0
    %v2281 = vpop.f32.mrb[0].mxu0
    %v2282 = vadd.f32 0.0, %v2281
    %v2283 = vpop.f32.mrb[0].mxu0
    %2284 = vmatprep.mubr.bf16.mxu0 0
    %2285 = vmatmul.mubr.bf16.gmra.mrb[0].mxu0 %v1799
    %v2286 = vpop.f32.mrb[0].mxu0
    %v2287 = vadd.f32 0.0, %v2286
    %v2288 = vpop.f32.mrb[0].mxu0
    %v2289 = vpop.f32.mrb[0].mxu0
    %v2290 = vadd.f32 0.0, %v2289
    %v2291 = vpop.f32.mrb[0].mxu0
    %2292 = vmatprep.mubr.bf16.mxu0 0
    %2293 = vmatmul.mubr.bf16.gmra.mrb[0].mxu0 %v1800
    %v2294 = vpop.f32.mrb[0].mxu0
    %v2295 = vadd.f32 0.0, %v2294
    %v2296 = vpop.f32.mrb[0].mxu0
    %v2297 = vpop.f32.mrb[0].mxu0
    %v2298 = vadd.f32 0.0, %v2297
    %v2299 = vpop.f32.mrb[0].mxu0
    %2300 = vmatprep.mubr.bf16.mxu0 0
    %2301 = vmatmul.mubr.bf16.gmra.mrb[0].mxu0 %v1801
    %v2302 = vpop.f32.mrb[0].mxu0
    %v2303 = vadd.f32 0.0, %v2302
    %v2304 = vpop.f32.mrb[0].mxu0
    %v2305 = vpop.f32.mrb[0].mxu0
    %v2306 = vadd.f32 0.0, %v2305
    %v2307 = vpop.f32.mrb[0].mxu0
    %2308 = vmatprep.mubr.bf16.mxu0 0
    %2309 = vmatmul.mubr.bf16.gmra.mrb[0].mxu0 %v1802
    %v2310 = vpop.f32.mrb[0].mxu0
    %v2311 = vadd.f32 0.0, %v2310
    %v2312 = vpop.f32.mrb[0].mxu0
    %v2313 = vpop.f32.mrb[0].mxu0
    %v2314 = vadd.f32 0.0, %v2313
    %v2315 = vpop.f32.mrb[0].mxu0
    %2316 = vmatprep.mubr.bf16.mxu0 0
    %2317 = vmatmul.mubr.bf16.gmra.mrb[0].mxu0 %v1803
    %v2318 = vpop.f32.mrb[0].mxu0
    %v2319 = vadd.f32 0.0, %v2318
    %v2320 = vpop.f32.mrb[0].mxu0
    %v2321 = vpop.f32.mrb[0].mxu0
    %v2322 = vadd.f32 0.0, %v2321
    %v2323 = vpop.f32.mrb[0].mxu0
    %2324 = vdwg.mxu0
    %v2325 = vmul.f32 %v2263, %v1804
    %v2326 = vmul.f32 %v2266, %v1805
    %v2327 = vmul.f32 %v2271, %v1806
    %v2328 = vmul.f32 %v2274, %v1807
    %v2329 = vmul.f32 %v2279, %v1808
    %v2330 = vmul.f32 %v2282, %v1809
    %v2331 = vmul.f32 %v2287, %v1810
    %v2332 = vmul.f32 %v2290, %v1811
    %v2333 = vmul.f32 %v2295, %v1812
    %v2334 = vmul.f32 %v2298, %v1813
    %v2335 = vmul.f32 %v2303, %v1814
    %v2336 = vmul.f32 %v2306, %v1815
    %v2337 = vmul.f32 %v2311, %v1816
    %v2338 = vmul.f32 %v2314, %v1817
    %v2339 = vmul.f32 %v2319, %v1818
    %v2340 = vmul.f32 %v2322, %v1819
    %v2341 = vpack.c.bf16 %v2326, %v2325
    %v2342 = vpack.c.bf16 %v2328, %v2327
    %v2343 = vpack.c.bf16 %v2330, %v2329
    %v2344 = vpack.c.bf16 %v2332, %v2331
    %v2345 = vpack.c.bf16 %v2334, %v2333
    %v2346 = vpack.c.bf16 %v2336, %v2335
    %v2347 = vpack.c.bf16 %v2338, %v2337
    %v2348 = vpack.c.bf16 %v2340, %v2339
    %2357 = vrot.lane.b32.xlu0 %v900, 96
    %v2358 = vpop.permute.xlu0 %2357
    %2359 = vrot.lane.b32.xlu0 %v901, 96
    %v2360 = vpop.permute.xlu0 %2359
    %2361 = vrot.lane.b32.xlu0 %v902, 96
    %v2362 = vpop.permute.xlu0 %2361
    %2363 = vrot.lane.b32.xlu0 %v903, 96
    %v2364 = vpop.permute.xlu0 %2363
    %2365 = vrot.lane.b32.xlu0 %v904, 96
    %v2366 = vpop.permute.xlu0 %2365
    %2367 = vrot.lane.b32.xlu0 %v905, 96
    %v2368 = vpop.permute.xlu0 %2367
    %2369 = vrot.lane.b32.xlu0 %v906, 96
    %v2370 = vpop.permute.xlu0 %2369
    %2371 = vrot.lane.b32.xlu0 %v907, 96
    %v2372 = vpop.permute.xlu0 %2371
    %2381 = vmatprep.subr.bf16.mxu0 0
    %2382 = vmatpush1.bf16.msra.mxu0 %v2358
    %2383 = vmatprep.subr.bf16.mxu0 0
    %2384 = vmatpush1.bf16.msra.mxu0 %v2360
    %2385 = vmatprep.subr.bf16.mxu0 0
    %2386 = vmatpush1.bf16.msra.mxu0 %v2362
    %2387 = vmatprep.subr.bf16.mxu0 0
    %2388 = vmatpush1.bf16.msra.mxu0 %v2364
    %2389 = vmatprep.subr.bf16.mxu0 0
    %2390 = vmatpush1.bf16.msra.mxu0 %v2366
    %2391 = vmatprep.subr.bf16.mxu0 0
    %2392 = vmatpush1.bf16.msra.mxu0 %v2368
    %2393 = vmatprep.subr.bf16.mxu0 0
    %2394 = vmatpush1.bf16.msra.mxu0 %v2370
    %2395 = vmatprep.subr.bf16.mxu0 0
    %2396 = vmatpush1.bf16.msra.mxu0 %v2372
    %2397 = vmatprep.subr.bf16.mxu0 0
    %2398 = vmatpush1.bf16.msra.mxu0 0
    %2399 = vmatprep.subr.bf16.mxu0 0
    %2400 = vmatpush1.bf16.msra.mxu0 0
    %2401 = vmatprep.subr.bf16.mxu0 0
    %2402 = vmatpush1.bf16.msra.mxu0 0
    %2403 = vmatprep.subr.bf16.mxu0 0
    %2404 = vmatpush1.bf16.msra.mxu0 0
    %2405 = vmatprep.subr.bf16.mxu0 0
    %2406 = vmatpush1.bf16.msra.mxu0 0
    %2407 = vmatprep.subr.bf16.mxu0 0
    %2408 = vmatpush1.bf16.msra.mxu0 0
    %2409 = vmatprep.subr.bf16.mxu0 0
    %2410 = vmatpush1.bf16.msra.mxu0 0
    %2411 = vmatprep.subr.bf16.mxu0 0
    %2412 = vmatpush1.bf16.msra.mxu0 0
    %2413 = vmatprep.mubr.bf16.mxu0 0
    %2414 = vmatmul.mubr.bf16.gmra.mrb[0].mxu0 %v1932
    %v2415 = vpop.f32.mrb[0].mxu0
    %v2416 = vadd.f32 0.0, %v2415
    %v2417 = vpop.f32.mrb[0].mxu0
    %v2418 = vpop.f32.mrb[0].mxu0
    %v2419 = vadd.f32 0.0, %v2418
    %v2420 = vpop.f32.mrb[0].mxu0
    %2421 = vmatprep.mubr.bf16.mxu0 0
    %2422 = vmatmul.mubr.bf16.gmra.mrb[0].mxu0 %v1933
    %v2423 = vpop.f32.mrb[0].mxu0
    %v2424 = vadd.f32 0.0, %v2423
    %v2425 = vpop.f32.mrb[0].mxu0
    %v2426 = vpop.f32.mrb[0].mxu0
    %v2427 = vadd.f32 0.0, %v2426
    %v2428 = vpop.f32.mrb[0].mxu0
    %2429 = vmatprep.mubr.bf16.mxu0 0
    %2430 = vmatmul.mubr.bf16.gmra.mrb[0].mxu0 %v1934
    %v2431 = vpop.f32.mrb[0].mxu0
    %v2432 = vadd.f32 0.0, %v2431
    %v2433 = vpop.f32.mrb[0].mxu0
    %v2434 = vpop.f32.mrb[0].mxu0
    %v2435 = vadd.f32 0.0, %v2434
    %v2436 = vpop.f32.mrb[0].mxu0
    %2437 = vmatprep.mubr.bf16.mxu0 0
    %2438 = vmatmul.mubr.bf16.gmra.mrb[0].mxu0 %v1935
    %v2439 = vpop.f32.mrb[0].mxu0
    %v2440 = vadd.f32 0.0, %v2439
    %v2441 = vpop.f32.mrb[0].mxu0
    %v2442 = vpop.f32.mrb[0].mxu0
    %v2443 = vadd.f32 0.0, %v2442
    %v2444 = vpop.f32.mrb[0].mxu0
    %2445 = vmatprep.mubr.bf16.mxu0 0
    %2446 = vmatmul.mubr.bf16.gmra.mrb[0].mxu0 %v1936
    %v2447 = vpop.f32.mrb[0].mxu0
    %v2448 = vadd.f32 0.0, %v2447
    %v2449 = vpop.f32.mrb[0].mxu0
    %v2450 = vpop.f32.mrb[0].mxu0
    %v2451 = vadd.f32 0.0, %v2450
    %v2452 = vpop.f32.mrb[0].mxu0
    %2453 = vmatprep.mubr.bf16.mxu0 0
    %2454 = vmatmul.mubr.bf16.gmra.mrb[0].mxu0 %v1937
    %v2455 = vpop.f32.mrb[0].mxu0
    %v2456 = vadd.f32 0.0, %v2455
    %v2457 = vpop.f32.mrb[0].mxu0
    %v2458 = vpop.f32.mrb[0].mxu0
    %v2459 = vadd.f32 0.0, %v2458
    %v2460 = vpop.f32.mrb[0].mxu0
    %2461 = vmatprep.mubr.bf16.mxu0 0
    %2462 = vmatmul.mubr.bf16.gmra.mrb[0].mxu0 %v1938
    %v2463 = vpop.f32.mrb[0].mxu0
    %v2464 = vadd.f32 0.0, %v2463
    %v2465 = vpop.f32.mrb[0].mxu0
    %v2466 = vpop.f32.mrb[0].mxu0
    %v2467 = vadd.f32 0.0, %v2466
    %v2468 = vpop.f32.mrb[0].mxu0
    %2469 = vmatprep.mubr.bf16.mxu0 0
    %2470 = vmatmul.mubr.bf16.gmra.mrb[0].mxu0 %v1939
    %v2471 = vpop.f32.mrb[0].mxu0
    %v2472 = vadd.f32 0.0, %v2471
    %v2473 = vpop.f32.mrb[0].mxu0
    %v2474 = vpop.f32.mrb[0].mxu0
    %v2475 = vadd.f32 0.0, %v2474
    %v2476 = vpop.f32.mrb[0].mxu0
    %2477 = vdwg.mxu0
    %v2478 = vmul.f32 %v2416, %v1940
    %v2479 = vmul.f32 %v2419, %v1941
    %v2480 = vmul.f32 %v2424, %v1942
    %v2481 = vmul.f32 %v2427, %v1943
    %v2482 = vmul.f32 %v2432, %v1944
    %v2483 = vmul.f32 %v2435, %v1945
    %v2484 = vmul.f32 %v2440, %v1946
    %v2485 = vmul.f32 %v2443, %v1947
    %v2486 = vmul.f32 %v2448, %v1948
    %v2487 = vmul.f32 %v2451, %v1949
    %v2488 = vmul.f32 %v2456, %v1950
    %v2489 = vmul.f32 %v2459, %v1951
    %v2490 = vmul.f32 %v2464, %v1952
    %v2491 = vmul.f32 %v2467, %v1953
    %v2492 = vmul.f32 %v2472, %v1954
    %v2493 = vmul.f32 %v2475, %v1955
    %v2494 = vpack.c.bf16 %v2479, %v2478
    %v2495 = vpack.c.bf16 %v2481, %v2480
    %v2496 = vpack.c.bf16 %v2483, %v2482
    %v2497 = vpack.c.bf16 %v2485, %v2484
    %v2498 = vpack.c.bf16 %v2487, %v2486
    %v2499 = vpack.c.bf16 %v2489, %v2488
    %v2500 = vpack.c.bf16 %v2491, %v2490
    %v2501 = vpack.c.bf16 %v2493, %v2492
    %v2506 = vunpack.c.l.b16 %v196
    %v2507 = vunpack.c.l.b16 %v197
    %v2508 = vunpack.c.l.b16 %v198
    %v2509 = vunpack.c.l.b16 %v199
    %v2510 = vpack.c.b16 %v2507, %v2506
    %v2511 = vpack.c.b16 %v2509, %v2508
    %v2515 = vsel %vm991, %v2494, 0
    %v2518 = vsel %vm991, %v2495, 0
    %v2521 = vsel %vm991, %v2496, 0
    %v2524 = vsel %vm991, %v2497, 0
    %v2527 = vsel %vm991, %v2498, 0
    %v2530 = vsel %vm991, %v2499, 0
    %v2533 = vsel %vm991, %v2500, 0
    %v2536 = vsel %vm991, %v2501, 0
    %2538 = vmatprep.subr.bf16.mxu0 0
    %2539 = vmatpush1.bf16.msra.mxu0 %v2510
    %2540 = vmatprep.subr.bf16.mxu0 0
    %2541 = vmatpush1.bf16.msra.mxu0 %v2511
    %2542 = vmatprep.subr.bf16.mxu0 0
    %2543 = vmatpush1.bf16.msra.mxu0 0
    %2544 = vmatprep.subr.bf16.mxu0 0
    %2545 = vmatpush1.bf16.msra.mxu0 0
    %2546 = vmatprep.subr.bf16.mxu0 0
    %2547 = vmatpush1.bf16.msra.mxu0 0
    %2548 = vmatprep.subr.bf16.mxu0 0
    %2549 = vmatpush1.bf16.msra.mxu0 0
    %2550 = vmatprep.subr.bf16.mxu0 0
    %2551 = vmatpush1.bf16.msra.mxu0 0
    %2552 = vmatprep.subr.bf16.mxu0 0
    %2553 = vmatpush1.bf16.msra.mxu0 0
    %2554 = vmatprep.subr.bf16.mxu0 0
    %2555 = vmatpush1.bf16.msra.mxu0 0
    %2556 = vmatprep.subr.bf16.mxu0 0
    %2557 = vmatpush1.bf16.msra.mxu0 0
    %2558 = vmatprep.subr.bf16.mxu0 0
    %2559 = vmatpush1.bf16.msra.mxu0 0
    %2560 = vmatprep.subr.bf16.mxu0 0
    %2561 = vmatpush1.bf16.msra.mxu0 0
    %2562 = vmatprep.subr.bf16.mxu0 0
    %2563 = vmatpush1.bf16.msra.mxu0 0
    %2564 = vmatprep.subr.bf16.mxu0 0
    %2565 = vmatpush1.bf16.msra.mxu0 0
    %2566 = vmatprep.subr.bf16.mxu0 0
    %2567 = vmatpush1.bf16.msra.mxu0 0
    %2568 = vmatprep.subr.bf16.mxu0 0
    %2569 = vmatpush1.bf16.msra.mxu0 0
    %2570 = vmatprep.mubr.bf16.mxu0 0
    %2571 = vmatmul.mubr.bf16.gmra.mrb[0].mxu0 %v2515
    %v2572 = vpop.f32.mrb[0].mxu0
    %v2573 = vadd.f32 0.0, %v2572
    %v2574 = vpop.f32.mrb[0].mxu0
    %v2575 = vpop.f32.mrb[0].mxu0
    %v2576 = vadd.f32 0.0, %v2575
    %v2577 = vpop.f32.mrb[0].mxu0
    %2578 = vmatprep.mubr.bf16.mxu0 0
    %2579 = vmatmul.mubr.bf16.gmra.mrb[0].mxu0 %v2518
    %v2580 = vpop.f32.mrb[0].mxu0
    %v2581 = vadd.f32 0.0, %v2580
    %v2582 = vpop.f32.mrb[0].mxu0
    %v2583 = vpop.f32.mrb[0].mxu0
    %v2584 = vadd.f32 0.0, %v2583
    %v2585 = vpop.f32.mrb[0].mxu0
    %2586 = vmatprep.mubr.bf16.mxu0 0
    %2587 = vmatmul.mubr.bf16.gmra.mrb[0].mxu0 %v2521
    %v2588 = vpop.f32.mrb[0].mxu0
    %v2589 = vadd.f32 0.0, %v2588
    %v2590 = vpop.f32.mrb[0].mxu0
    %v2591 = vpop.f32.mrb[0].mxu0
    %v2592 = vadd.f32 0.0, %v2591
    %v2593 = vpop.f32.mrb[0].mxu0
    %2594 = vmatprep.mubr.bf16.mxu0 0
    %2595 = vmatmul.mubr.bf16.gmra.mrb[0].mxu0 %v2524
    %v2596 = vpop.f32.mrb[0].mxu0
    %v2597 = vadd.f32 0.0, %v2596
    %v2598 = vpop.f32.mrb[0].mxu0
    %v2599 = vpop.f32.mrb[0].mxu0
    %v2600 = vadd.f32 0.0, %v2599
    %v2601 = vpop.f32.mrb[0].mxu0
    %2602 = vmatprep.mubr.bf16.mxu0 0
    %2603 = vmatmul.mubr.bf16.gmra.mrb[0].mxu0 %v2527
    %v2604 = vpop.f32.mrb[0].mxu0
    %v2605 = vadd.f32 0.0, %v2604
    %v2606 = vpop.f32.mrb[0].mxu0
    %v2607 = vpop.f32.mrb[0].mxu0
    %v2608 = vadd.f32 0.0, %v2607
    %v2609 = vpop.f32.mrb[0].mxu0
    %2610 = vmatprep.mubr.bf16.mxu0 0
    %2611 = vmatmul.mubr.bf16.gmra.mrb[0].mxu0 %v2530
    %v2612 = vpop.f32.mrb[0].mxu0
    %v2613 = vadd.f32 0.0, %v2612
    %v2614 = vpop.f32.mrb[0].mxu0
    %v2615 = vpop.f32.mrb[0].mxu0
    %v2616 = vadd.f32 0.0, %v2615
    %v2617 = vpop.f32.mrb[0].mxu0
    %2618 = vmatprep.mubr.bf16.mxu0 0
    %2619 = vmatmul.mubr.bf16.gmra.mrb[0].mxu0 %v2533
    %v2620 = vpop.f32.mrb[0].mxu0
    %v2621 = vadd.f32 0.0, %v2620
    %v2622 = vpop.f32.mrb[0].mxu0
    %v2623 = vpop.f32.mrb[0].mxu0
    %v2624 = vadd.f32 0.0, %v2623
    %v2625 = vpop.f32.mrb[0].mxu0
    %2626 = vmatprep.mubr.bf16.mxu0 0
    %2627 = vmatmul.mubr.bf16.gmra.mrb[0].mxu0 %v2536
    %v2628 = vpop.f32.mrb[0].mxu0
    %v2629 = vadd.f32 0.0, %v2628
    %v2630 = vpop.f32.mrb[0].mxu0
    %v2631 = vpop.f32.mrb[0].mxu0
    %v2632 = vadd.f32 0.0, %v2631
    %v2633 = vpop.f32.mrb[0].mxu0
    %2634 = vdwg.mxu0
    %v2639 = vunpack.c.l.b16 %v192
    %v2640 = vunpack.c.l.b16 %v193
    %v2641 = vunpack.c.l.b16 %v194
    %v2642 = vunpack.c.l.b16 %v195
    %v2643 = vpack.c.b16 %v2640, %v2639
    %v2644 = vpack.c.b16 %v2642, %v2641
    %v2648 = vsel %vm991, %v2341, 0
    %v2651 = vsel %vm991, %v2342, 0
    %v2654 = vsel %vm991, %v2343, 0
    %v2657 = vsel %vm991, %v2344, 0
    %v2660 = vsel %vm991, %v2345, 0
    %v2663 = vsel %vm991, %v2346, 0
    %v2666 = vsel %vm991, %v2347, 0
    %v2669 = vsel %vm991, %v2348, 0
    %2671 = vmatprep.subr.bf16.mxu0 0
    %2672 = vmatpush1.bf16.msra.mxu0 %v2643
    %2673 = vmatprep.subr.bf16.mxu0 0
    %2674 = vmatpush1.bf16.msra.mxu0 %v2644
    %2675 = vmatprep.subr.bf16.mxu0 0
    %2676 = vmatpush1.bf16.msra.mxu0 0
    %2677 = vmatprep.subr.bf16.mxu0 0
    %2678 = vmatpush1.bf16.msra.mxu0 0
    %2679 = vmatprep.subr.bf16.mxu0 0
    %2680 = vmatpush1.bf16.msra.mxu0 0
    %2681 = vmatprep.subr.bf16.mxu0 0
    %2682 = vmatpush1.bf16.msra.mxu0 0
    %2683 = vmatprep.subr.bf16.mxu0 0
    %2684 = vmatpush1.bf16.msra.mxu0 0
    %2685 = vmatprep.subr.bf16.mxu0 0
    %2686 = vmatpush1.bf16.msra.mxu0 0
    %2687 = vmatprep.subr.bf16.mxu0 0
    %2688 = vmatpush1.bf16.msra.mxu0 0
    %2689 = vmatprep.subr.bf16.mxu0 0
    %2690 = vmatpush1.bf16.msra.mxu0 0
    %2691 = vmatprep.subr.bf16.mxu0 0
    %2692 = vmatpush1.bf16.msra.mxu0 0
    %2693 = vmatprep.subr.bf16.mxu0 0
    %2694 = vmatpush1.bf16.msra.mxu0 0
    %2695 = vmatprep.subr.bf16.mxu0 0
    %2696 = vmatpush1.bf16.msra.mxu0 0
    %2697 = vmatprep.subr.bf16.mxu0 0
    %2698 = vmatpush1.bf16.msra.mxu0 0
    %2699 = vmatprep.subr.bf16.mxu0 0
    %2700 = vmatpush1.bf16.msra.mxu0 0
    %2701 = vmatprep.subr.bf16.mxu0 0
    %2702 = vmatpush1.bf16.msra.mxu0 0
    %2703 = vmatprep.mubr.bf16.mxu0 0
    %2704 = vmatmul.mubr.bf16.gmra.mrb[0].mxu0 %v2648
    %v2705 = vpop.f32.mrb[0].mxu0
    %v2706 = vadd.f32 %v2573, %v2705
    %v2707 = vpop.f32.mrb[0].mxu0
    %v2708 = vpop.f32.mrb[0].mxu0
    %v2709 = vadd.f32 %v2576, %v2708
    %v2710 = vpop.f32.mrb[0].mxu0
    %2711 = vmatprep.mubr.bf16.mxu0 0
    %2712 = vmatmul.mubr.bf16.gmra.mrb[0].mxu0 %v2651
    %v2713 = vpop.f32.mrb[0].mxu0
    %v2714 = vadd.f32 %v2581, %v2713
    %v2715 = vpop.f32.mrb[0].mxu0
    %v2716 = vpop.f32.mrb[0].mxu0
    %v2717 = vadd.f32 %v2584, %v2716
    %v2718 = vpop.f32.mrb[0].mxu0
    %2719 = vmatprep.mubr.bf16.mxu0 0
    %2720 = vmatmul.mubr.bf16.gmra.mrb[0].mxu0 %v2654
    %v2721 = vpop.f32.mrb[0].mxu0
    %v2722 = vadd.f32 %v2589, %v2721
    %v2723 = vpop.f32.mrb[0].mxu0
    %v2724 = vpop.f32.mrb[0].mxu0
    %v2725 = vadd.f32 %v2592, %v2724
    %v2726 = vpop.f32.mrb[0].mxu0
    %2727 = vmatprep.mubr.bf16.mxu0 0
    %2728 = vmatmul.mubr.bf16.gmra.mrb[0].mxu0 %v2657
    %v2729 = vpop.f32.mrb[0].mxu0
    %v2730 = vadd.f32 %v2597, %v2729
    %v2731 = vpop.f32.mrb[0].mxu0
    %v2732 = vpop.f32.mrb[0].mxu0
    %v2733 = vadd.f32 %v2600, %v2732
    %v2734 = vpop.f32.mrb[0].mxu0
    %2735 = vmatprep.mubr.bf16.mxu0 0
    %2736 = vmatmul.mubr.bf16.gmra.mrb[0].mxu0 %v2660
    %v2737 = vpop.f32.mrb[0].mxu0
    %v2738 = vadd.f32 %v2605, %v2737
    %v2739 = vpop.f32.mrb[0].mxu0
    %v2740 = vpop.f32.mrb[0].mxu0
    %v2741 = vadd.f32 %v2608, %v2740
    %v2742 = vpop.f32.mrb[0].mxu0
    %2743 = vmatprep.mubr.bf16.mxu0 0
    %2744 = vmatmul.mubr.bf16.gmra.mrb[0].mxu0 %v2663
    %v2745 = vpop.f32.mrb[0].mxu0
    %v2746 = vadd.f32 %v2613, %v2745
    %v2747 = vpop.f32.mrb[0].mxu0
    %v2748 = vpop.f32.mrb[0].mxu0
    %v2749 = vadd.f32 %v2616, %v2748
    %v2750 = vpop.f32.mrb[0].mxu0
    %2751 = vmatprep.mubr.bf16.mxu0 0
    %2752 = vmatmul.mubr.bf16.gmra.mrb[0].mxu0 %v2666
    %v2753 = vpop.f32.mrb[0].mxu0
    %v2754 = vadd.f32 %v2621, %v2753
    %v2755 = vpop.f32.mrb[0].mxu0
    %v2756 = vpop.f32.mrb[0].mxu0
    %v2757 = vadd.f32 %v2624, %v2756
    %v2758 = vpop.f32.mrb[0].mxu0
    %2759 = vmatprep.mubr.bf16.mxu0 0
    %2760 = vmatmul.mubr.bf16.gmra.mrb[0].mxu0 %v2669
    %v2761 = vpop.f32.mrb[0].mxu0
    %v2762 = vadd.f32 %v2629, %v2761
    %v2763 = vpop.f32.mrb[0].mxu0
    %v2764 = vpop.f32.mrb[0].mxu0
    %v2765 = vadd.f32 %v2632, %v2764
    %v2766 = vpop.f32.mrb[0].mxu0
    %2767 = vdwg.mxu0
    %2768 = vrot.lane.b32.xlu0 %v900, 64
    %v2769 = vpop.permute.xlu0 %2768
    %2770 = vrot.lane.b32.xlu0 %v901, 64
    %v2771 = vpop.permute.xlu0 %2770
    %2772 = vrot.lane.b32.xlu0 %v902, 64
    %v2773 = vpop.permute.xlu0 %2772
    %2774 = vrot.lane.b32.xlu0 %v903, 64
    %v2775 = vpop.permute.xlu0 %2774
    %2776 = vrot.lane.b32.xlu0 %v904, 64
    %v2777 = vpop.permute.xlu0 %2776
    %2778 = vrot.lane.b32.xlu0 %v905, 64
    %v2779 = vpop.permute.xlu0 %2778
    %2780 = vrot.lane.b32.xlu0 %v906, 64
    %v2781 = vpop.permute.xlu0 %2780
    %2782 = vrot.lane.b32.xlu0 %v907, 64
    %v2783 = vpop.permute.xlu0 %2782
    %2792 = vmatprep.subr.bf16.mxu0 0
    %2793 = vmatpush1.bf16.msra.mxu0 %v2769
    %2794 = vmatprep.subr.bf16.mxu0 0
    %2795 = vmatpush1.bf16.msra.mxu0 %v2771
    %2796 = vmatprep.subr.bf16.mxu0 0
    %2797 = vmatpush1.bf16.msra.mxu0 %v2773
    %2798 = vmatprep.subr.bf16.mxu0 0
    %2799 = vmatpush1.bf16.msra.mxu0 %v2775
    %2800 = vmatprep.subr.bf16.mxu0 0
    %2801 = vmatpush1.bf16.msra.mxu0 %v2777
    %2802 = vmatprep.subr.bf16.mxu0 0
    %2803 = vmatpush1.bf16.msra.mxu0 %v2779
    %2804 = vmatprep.subr.bf16.mxu0 0
    %2805 = vmatpush1.bf16.msra.mxu0 %v2781
    %2806 = vmatprep.subr.bf16.mxu0 0
    %2807 = vmatpush1.bf16.msra.mxu0 %v2783
    %2808 = vmatprep.subr.bf16.mxu0 0
    %2809 = vmatpush1.bf16.msra.mxu0 0
    %2810 = vmatprep.subr.bf16.mxu0 0
    %2811 = vmatpush1.bf16.msra.mxu0 0
    %2812 = vmatprep.subr.bf16.mxu0 0
    %2813 = vmatpush1.bf16.msra.mxu0 0
    %2814 = vmatprep.subr.bf16.mxu0 0
    %2815 = vmatpush1.bf16.msra.mxu0 0
    %2816 = vmatprep.subr.bf16.mxu0 0
    %2817 = vmatpush1.bf16.msra.mxu0 0
    %2818 = vmatprep.subr.bf16.mxu0 0
    %2819 = vmatpush1.bf16.msra.mxu0 0
    %2820 = vmatprep.subr.bf16.mxu0 0
    %2821 = vmatpush1.bf16.msra.mxu0 0
    %2822 = vmatprep.subr.bf16.mxu0 0
    %2823 = vmatpush1.bf16.msra.mxu0 0
    %2824 = vmatprep.mubr.bf16.mxu0 0
    %2825 = vmatmul.mubr.bf16.gmra.mrb[0].mxu0 %v2068
    %v2826 = vpop.f32.mrb[0].mxu0
    %v2827 = vadd.f32 0.0, %v2826
    %v2828 = vpop.f32.mrb[0].mxu0
    %v2829 = vpop.f32.mrb[0].mxu0
    %v2830 = vadd.f32 0.0, %v2829
    %v2831 = vpop.f32.mrb[0].mxu0
    %2832 = vmatprep.mubr.bf16.mxu0 0
    %2833 = vmatmul.mubr.bf16.gmra.mrb[0].mxu0 %v2069
    %v2834 = vpop.f32.mrb[0].mxu0
    %v2835 = vadd.f32 0.0, %v2834
    %v2836 = vpop.f32.mrb[0].mxu0
    %v2837 = vpop.f32.mrb[0].mxu0
    %v2838 = vadd.f32 0.0, %v2837
    %v2839 = vpop.f32.mrb[0].mxu0
    %2840 = vmatprep.mubr.bf16.mxu0 0
    %2841 = vmatmul.mubr.bf16.gmra.mrb[0].mxu0 %v2070
    %v2842 = vpop.f32.mrb[0].mxu0
    %v2843 = vadd.f32 0.0, %v2842
    %v2844 = vpop.f32.mrb[0].mxu0
    %v2845 = vpop.f32.mrb[0].mxu0
    %v2846 = vadd.f32 0.0, %v2845
    %v2847 = vpop.f32.mrb[0].mxu0
    %2848 = vmatprep.mubr.bf16.mxu0 0
    %2849 = vmatmul.mubr.bf16.gmra.mrb[0].mxu0 %v2071
    %v2850 = vpop.f32.mrb[0].mxu0
    %v2851 = vadd.f32 0.0, %v2850
    %v2852 = vpop.f32.mrb[0].mxu0
    %v2853 = vpop.f32.mrb[0].mxu0
    %v2854 = vadd.f32 0.0, %v2853
    %v2855 = vpop.f32.mrb[0].mxu0
    %2856 = vmatprep.mubr.bf16.mxu0 0
    %2857 = vmatmul.mubr.bf16.gmra.mrb[0].mxu0 %v2072
    %v2858 = vpop.f32.mrb[0].mxu0
    %v2859 = vadd.f32 0.0, %v2858
    %v2860 = vpop.f32.mrb[0].mxu0
    %v2861 = vpop.f32.mrb[0].mxu0
    %v2862 = vadd.f32 0.0, %v2861
    %v2863 = vpop.f32.mrb[0].mxu0
    %2864 = vmatprep.mubr.bf16.mxu0 0
    %2865 = vmatmul.mubr.bf16.gmra.mrb[0].mxu0 %v2073
    %v2866 = vpop.f32.mrb[0].mxu0
    %v2867 = vadd.f32 0.0, %v2866
    %v2868 = vpop.f32.mrb[0].mxu0
    %v2869 = vpop.f32.mrb[0].mxu0
    %v2870 = vadd.f32 0.0, %v2869
    %v2871 = vpop.f32.mrb[0].mxu0
    %2872 = vmatprep.mubr.bf16.mxu0 0
    %2873 = vmatmul.mubr.bf16.gmra.mrb[0].mxu0 %v2074
    %v2874 = vpop.f32.mrb[0].mxu0
    %v2875 = vadd.f32 0.0, %v2874
    %v2876 = vpop.f32.mrb[0].mxu0
    %v2877 = vpop.f32.mrb[0].mxu0
    %v2878 = vadd.f32 0.0, %v2877
    %v2879 = vpop.f32.mrb[0].mxu0
    %2880 = vmatprep.mubr.bf16.mxu0 0
    %2881 = vmatmul.mubr.bf16.gmra.mrb[0].mxu0 %v2075
    %v2882 = vpop.f32.mrb[0].mxu0
    %v2883 = vadd.f32 0.0, %v2882
    %v2884 = vpop.f32.mrb[0].mxu0
    %v2885 = vpop.f32.mrb[0].mxu0
    %v2886 = vadd.f32 0.0, %v2885
    %v2887 = vpop.f32.mrb[0].mxu0
    %2888 = vdwg.mxu0
    %v2889 = vmul.f32 %v2827, %v2076
    %v2890 = vmul.f32 %v2830, %v2077
    %v2891 = vmul.f32 %v2835, %v2078
    %v2892 = vmul.f32 %v2838, %v2079
    %v2893 = vmul.f32 %v2843, %v2080
    %v2894 = vmul.f32 %v2846, %v2081
    %v2895 = vmul.f32 %v2851, %v2082
    %v2896 = vmul.f32 %v2854, %v2083
    %v2897 = vmul.f32 %v2859, %v2084
    %v2898 = vmul.f32 %v2862, %v2085
    %v2899 = vmul.f32 %v2867, %v2086
    %v2900 = vmul.f32 %v2870, %v2087
    %v2901 = vmul.f32 %v2875, %v2088
    %v2902 = vmul.f32 %v2878, %v2089
    %v2903 = vmul.f32 %v2883, %v2090
    %v2904 = vmul.f32 %v2886, %v2091
    %v2905 = vpack.c.bf16 %v2890, %v2889
    %v2906 = vpack.c.bf16 %v2892, %v2891
    %v2907 = vpack.c.bf16 %v2894, %v2893
    %v2908 = vpack.c.bf16 %v2896, %v2895
    %v2909 = vpack.c.bf16 %v2898, %v2897
    %v2910 = vpack.c.bf16 %v2900, %v2899
    %v2911 = vpack.c.bf16 %v2902, %v2901
    %v2912 = vpack.c.bf16 %v2904, %v2903
    %v2917 = vunpack.c.l.b16 %v200
    %v2918 = vunpack.c.l.b16 %v201
    %v2919 = vunpack.c.l.b16 %v202
    %v2920 = vunpack.c.l.b16 %v203
    %v2921 = vpack.c.b16 %v2918, %v2917
    %v2922 = vpack.c.b16 %v2920, %v2919
    %v2926 = vsel %vm991, %v2905, 0
    %v2929 = vsel %vm991, %v2906, 0
    %v2932 = vsel %vm991, %v2907, 0
    %v2935 = vsel %vm991, %v2908, 0
    %v2938 = vsel %vm991, %v2909, 0
    %v2941 = vsel %vm991, %v2910, 0
    %v2944 = vsel %vm991, %v2911, 0
    %v2947 = vsel %vm991, %v2912, 0
    %2949 = vmatprep.subr.bf16.mxu0 0
    %2950 = vmatpush1.bf16.msra.mxu0 %v2921
    %2951 = vmatprep.subr.bf16.mxu0 0
    %2952 = vmatpush1.bf16.msra.mxu0 %v2922
    %2953 = vmatprep.subr.bf16.mxu0 0
    %2954 = vmatpush1.bf16.msra.mxu0 0
    %2955 = vmatprep.subr.bf16.mxu0 0
    %2956 = vmatpush1.bf16.msra.mxu0 0
    %2957 = vmatprep.subr.bf16.mxu0 0
    %2958 = vmatpush1.bf16.msra.mxu0 0
    %2959 = vmatprep.subr.bf16.mxu0 0
    %2960 = vmatpush1.bf16.msra.mxu0 0
    %2961 = vmatprep.subr.bf16.mxu0 0
    %2962 = vmatpush1.bf16.msra.mxu0 0
    %2963 = vmatprep.subr.bf16.mxu0 0
    %2964 = vmatpush1.bf16.msra.mxu0 0
    %2965 = vmatprep.subr.bf16.mxu0 0
    %2966 = vmatpush1.bf16.msra.mxu0 0
    %2967 = vmatprep.subr.bf16.mxu0 0
    %2968 = vmatpush1.bf16.msra.mxu0 0
    %2969 = vmatprep.subr.bf16.mxu0 0
    %2970 = vmatpush1.bf16.msra.mxu0 0
    %2971 = vmatprep.subr.bf16.mxu0 0
    %2972 = vmatpush1.bf16.msra.mxu0 0
    %2973 = vmatprep.subr.bf16.mxu0 0
    %2974 = vmatpush1.bf16.msra.mxu0 0
    %2975 = vmatprep.subr.bf16.mxu0 0
    %2976 = vmatpush1.bf16.msra.mxu0 0
    %2977 = vmatprep.subr.bf16.mxu0 0
    %2978 = vmatpush1.bf16.msra.mxu0 0
    %2979 = vmatprep.subr.bf16.mxu0 0
    %2980 = vmatpush1.bf16.msra.mxu0 0
    %2981 = vmatprep.mubr.bf16.mxu0 0
    %2982 = vmatmul.mubr.bf16.gmra.mrb[0].mxu0 %v2926
    %v2983 = vpop.f32.mrb[0].mxu0
    %v2984 = vadd.f32 0.0, %v2983
    %v2985 = vpop.f32.mrb[0].mxu0
    %v2986 = vpop.f32.mrb[0].mxu0
    %v2987 = vadd.f32 0.0, %v2986
    %v2988 = vpop.f32.mrb[0].mxu0
    %2989 = vmatprep.mubr.bf16.mxu0 0
    %2990 = vmatmul.mubr.bf16.gmra.mrb[0].mxu0 %v2929
    %v2991 = vpop.f32.mrb[0].mxu0
    %v2992 = vadd.f32 0.0, %v2991
    %v2993 = vpop.f32.mrb[0].mxu0
    %v2994 = vpop.f32.mrb[0].mxu0
    %v2995 = vadd.f32 0.0, %v2994
    %v2996 = vpop.f32.mrb[0].mxu0
    %2997 = vmatprep.mubr.bf16.mxu0 0
    %2998 = vmatmul.mubr.bf16.gmra.mrb[0].mxu0 %v2932
    %v2999 = vpop.f32.mrb[0].mxu0
    %v3000 = vadd.f32 0.0, %v2999
    %v3001 = vpop.f32.mrb[0].mxu0
    %v3002 = vpop.f32.mrb[0].mxu0
    %v3003 = vadd.f32 0.0, %v3002
    %v3004 = vpop.f32.mrb[0].mxu0
    %3005 = vmatprep.mubr.bf16.mxu0 0
    %3006 = vmatmul.mubr.bf16.gmra.mrb[0].mxu0 %v2935
    %v3007 = vpop.f32.mrb[0].mxu0
    %v3008 = vadd.f32 0.0, %v3007
    %v3009 = vpop.f32.mrb[0].mxu0
    %v3010 = vpop.f32.mrb[0].mxu0
    %v3011 = vadd.f32 0.0, %v3010
    %v3012 = vpop.f32.mrb[0].mxu0
    %3013 = vmatprep.mubr.bf16.mxu0 0
    %3014 = vmatmul.mubr.bf16.gmra.mrb[0].mxu0 %v2938
    %v3015 = vpop.f32.mrb[0].mxu0
    %v3016 = vadd.f32 0.0, %v3015
    %v3017 = vpop.f32.mrb[0].mxu0
    %v3018 = vpop.f32.mrb[0].mxu0
    %v3019 = vadd.f32 0.0, %v3018
    %v3020 = vpop.f32.mrb[0].mxu0
    %3021 = vmatprep.mubr.bf16.mxu0 0
    %3022 = vmatmul.mubr.bf16.gmra.mrb[0].mxu0 %v2941
    %v3023 = vpop.f32.mrb[0].mxu0
    %v3024 = vadd.f32 0.0, %v3023
    %v3025 = vpop.f32.mrb[0].mxu0
    %v3026 = vpop.f32.mrb[0].mxu0
    %v3027 = vadd.f32 0.0, %v3026
    %v3028 = vpop.f32.mrb[0].mxu0
    %3029 = vmatprep.mubr.bf16.mxu0 0
    %3030 = vmatmul.mubr.bf16.gmra.mrb[0].mxu0 %v2944
    %v3031 = vpop.f32.mrb[0].mxu0
    %v3032 = vadd.f32 0.0, %v3031
    %v3033 = vpop.f32.mrb[0].mxu0
    %v3034 = vpop.f32.mrb[0].mxu0
    %v3035 = vadd.f32 0.0, %v3034
    %v3036 = vpop.f32.mrb[0].mxu0
    %3037 = vmatprep.mubr.bf16.mxu0 0
    %3038 = vmatmul.mubr.bf16.gmra.mrb[0].mxu0 %v2947
    %v3039 = vpop.f32.mrb[0].mxu0
    %v3040 = vadd.f32 0.0, %v3039
    %v3041 = vpop.f32.mrb[0].mxu0
    %v3042 = vpop.f32.mrb[0].mxu0
    %v3043 = vadd.f32 0.0, %v3042
    %v3044 = vpop.f32.mrb[0].mxu0
    %3045 = vdwg.mxu0
    %v3046 = vadd.f32 %v2706, %v2984
    %v3047 = vadd.f32 %v2709, %v2987
    %v3048 = vadd.f32 %v2714, %v2992
    %v3049 = vadd.f32 %v2717, %v2995
    %v3050 = vadd.f32 %v2722, %v3000
    %v3051 = vadd.f32 %v2725, %v3003
    %v3052 = vadd.f32 %v2730, %v3008
    %v3053 = vadd.f32 %v2733, %v3011
    %v3054 = vadd.f32 %v2738, %v3016
    %v3055 = vadd.f32 %v2741, %v3019
    %v3056 = vadd.f32 %v2746, %v3024
    %v3057 = vadd.f32 %v2749, %v3027
    %v3058 = vadd.f32 %v2754, %v3032
    %v3059 = vadd.f32 %v2757, %v3035
    %v3060 = vadd.f32 %v2762, %v3040
    %v3061 = vadd.f32 %v2765, %v3043
    %3062 = vrot.lane.b32.xlu0 %v900, 32
    %v3063 = vpop.permute.xlu0 %3062
    %3064 = vrot.lane.b32.xlu0 %v901, 32
    %v3065 = vpop.permute.xlu0 %3064
    %3066 = vrot.lane.b32.xlu0 %v902, 32
    %v3067 = vpop.permute.xlu0 %3066
    %3068 = vrot.lane.b32.xlu0 %v903, 32
    %v3069 = vpop.permute.xlu0 %3068
    %3070 = vrot.lane.b32.xlu0 %v904, 32
    %v3071 = vpop.permute.xlu0 %3070
    %3072 = vrot.lane.b32.xlu0 %v905, 32
    %v3073 = vpop.permute.xlu0 %3072
    %3074 = vrot.lane.b32.xlu0 %v906, 32
    %v3075 = vpop.permute.xlu0 %3074
    %3076 = vrot.lane.b32.xlu0 %v907, 32
    %v3077 = vpop.permute.xlu0 %3076
    %3086 = vmatprep.subr.bf16.mxu0 0
    %3087 = vmatpush1.bf16.msra.mxu0 %v3063
    %3088 = vmatprep.subr.bf16.mxu0 0
    %3089 = vmatpush1.bf16.msra.mxu0 %v3065
    %3090 = vmatprep.subr.bf16.mxu0 0
    %3091 = vmatpush1.bf16.msra.mxu0 %v3067
    %3092 = vmatprep.subr.bf16.mxu0 0
    %3093 = vmatpush1.bf16.msra.mxu0 %v3069
    %3094 = vmatprep.subr.bf16.mxu0 0
    %3095 = vmatpush1.bf16.msra.mxu0 %v3071
    %3096 = vmatprep.subr.bf16.mxu0 0
    %3097 = vmatpush1.bf16.msra.mxu0 %v3073
    %3098 = vmatprep.subr.bf16.mxu0 0
    %3099 = vmatpush1.bf16.msra.mxu0 %v3075
    %3100 = vmatprep.subr.bf16.mxu0 0
    %3101 = vmatpush1.bf16.msra.mxu0 %v3077
    %3102 = vmatprep.subr.bf16.mxu0 0
    %3103 = vmatpush1.bf16.msra.mxu0 0
    %3104 = vmatprep.subr.bf16.mxu0 0
    %3105 = vmatpush1.bf16.msra.mxu0 0
    %3106 = vmatprep.subr.bf16.mxu0 0
    %3107 = vmatpush1.bf16.msra.mxu0 0
    %3108 = vmatprep.subr.bf16.mxu0 0
    %3109 = vmatpush1.bf16.msra.mxu0 0
    %3110 = vmatprep.subr.bf16.mxu0 0
    %3111 = vmatpush1.bf16.msra.mxu0 0
    %3112 = vmatprep.subr.bf16.mxu0 0
    %3113 = vmatpush1.bf16.msra.mxu0 0
    %3114 = vmatprep.subr.bf16.mxu0 0
    %3115 = vmatpush1.bf16.msra.mxu0 0
    %3116 = vmatprep.subr.bf16.mxu0 0
    %3117 = vmatpush1.bf16.msra.mxu0 0
    %3118 = vmatprep.mubr.bf16.mxu0 0
    %3119 = vmatmul.mubr.bf16.gmra.mrb[0].mxu0 %v2204
    %v3120 = vpop.f32.mrb[0].mxu0
    %v3121 = vadd.f32 0.0, %v3120
    %v3122 = vpop.f32.mrb[0].mxu0
    %v3123 = vpop.f32.mrb[0].mxu0
    %v3124 = vadd.f32 0.0, %v3123
    %v3125 = vpop.f32.mrb[0].mxu0
    %3126 = vmatprep.mubr.bf16.mxu0 0
    %3127 = vmatmul.mubr.bf16.gmra.mrb[0].mxu0 %v2205
    %v3128 = vpop.f32.mrb[0].mxu0
    %v3129 = vadd.f32 0.0, %v3128
    %v3130 = vpop.f32.mrb[0].mxu0
    %v3131 = vpop.f32.mrb[0].mxu0
    %v3132 = vadd.f32 0.0, %v3131
    %v3133 = vpop.f32.mrb[0].mxu0
    %3134 = vmatprep.mubr.bf16.mxu0 0
    %3135 = vmatmul.mubr.bf16.gmra.mrb[0].mxu0 %v2206
    %v3136 = vpop.f32.mrb[0].mxu0
    %v3137 = vadd.f32 0.0, %v3136
    %v3138 = vpop.f32.mrb[0].mxu0
    %v3139 = vpop.f32.mrb[0].mxu0
    %v3140 = vadd.f32 0.0, %v3139
    %v3141 = vpop.f32.mrb[0].mxu0
    %3142 = vmatprep.mubr.bf16.mxu0 0
    %3143 = vmatmul.mubr.bf16.gmra.mrb[0].mxu0 %v2207
    %v3144 = vpop.f32.mrb[0].mxu0
    %v3145 = vadd.f32 0.0, %v3144
    %v3146 = vpop.f32.mrb[0].mxu0
    %v3147 = vpop.f32.mrb[0].mxu0
    %v3148 = vadd.f32 0.0, %v3147
    %v3149 = vpop.f32.mrb[0].mxu0
    %3150 = vmatprep.mubr.bf16.mxu0 0
    %3151 = vmatmul.mubr.bf16.gmra.mrb[0].mxu0 %v2208
    %v3152 = vpop.f32.mrb[0].mxu0
    %v3153 = vadd.f32 0.0, %v3152
    %v3154 = vpop.f32.mrb[0].mxu0
    %v3155 = vpop.f32.mrb[0].mxu0
    %v3156 = vadd.f32 0.0, %v3155
    %v3157 = vpop.f32.mrb[0].mxu0
    %3158 = vmatprep.mubr.bf16.mxu0 0
    %3159 = vmatmul.mubr.bf16.gmra.mrb[0].mxu0 %v2209
    %v3160 = vpop.f32.mrb[0].mxu0
    %v3161 = vadd.f32 0.0, %v3160
    %v3162 = vpop.f32.mrb[0].mxu0
    %v3163 = vpop.f32.mrb[0].mxu0
    %v3164 = vadd.f32 0.0, %v3163
    %v3165 = vpop.f32.mrb[0].mxu0
    %3166 = vmatprep.mubr.bf16.mxu0 0
    %3167 = vmatmul.mubr.bf16.gmra.mrb[0].mxu0 %v2210
    %v3168 = vpop.f32.mrb[0].mxu0
    %v3169 = vadd.f32 0.0, %v3168
    %v3170 = vpop.f32.mrb[0].mxu0
    %v3171 = vpop.f32.mrb[0].mxu0
    %v3172 = vadd.f32 0.0, %v3171
    %v3173 = vpop.f32.mrb[0].mxu0
    %3174 = vmatprep.mubr.bf16.mxu0 0
    %3175 = vmatmul.mubr.bf16.gmra.mrb[0].mxu0 %v2211
    %v3176 = vpop.f32.mrb[0].mxu0
    %v3177 = vadd.f32 0.0, %v3176
    %v3178 = vpop.f32.mrb[0].mxu0
    %v3179 = vpop.f32.mrb[0].mxu0
    %v3180 = vadd.f32 0.0, %v3179
    %v3181 = vpop.f32.mrb[0].mxu0
    %3182 = vdwg.mxu0
    %v3183 = vmul.f32 %v3121, %v2212
    %v3184 = vmul.f32 %v3124, %v2213
    %v3185 = vmul.f32 %v3129, %v2214
    %v3186 = vmul.f32 %v3132, %v2215
    %v3187 = vmul.f32 %v3137, %v2216
    %v3188 = vmul.f32 %v3140, %v2217
    %v3189 = vmul.f32 %v3145, %v2218
    %v3190 = vmul.f32 %v3148, %v2219
    %v3191 = vmul.f32 %v3153, %v2220
    %v3192 = vmul.f32 %v3156, %v2221
    %v3193 = vmul.f32 %v3161, %v2222
    %v3194 = vmul.f32 %v3164, %v2223
    %v3195 = vmul.f32 %v3169, %v2224
    %v3196 = vmul.f32 %v3172, %v2225
    %v3197 = vmul.f32 %v3177, %v2226
    %v3198 = vmul.f32 %v3180, %v2227
    %v3199 = vpack.c.bf16 %v3184, %v3183
    %v3200 = vpack.c.bf16 %v3186, %v3185
    %v3201 = vpack.c.bf16 %v3188, %v3187
    %v3202 = vpack.c.bf16 %v3190, %v3189
    %v3203 = vpack.c.bf16 %v3192, %v3191
    %v3204 = vpack.c.bf16 %v3194, %v3193
    %v3205 = vpack.c.bf16 %v3196, %v3195
    %v3206 = vpack.c.bf16 %v3198, %v3197
    %v3211 = vunpack.c.l.b16 %v204
    %v3212 = vunpack.c.l.b16 %v205
    %v3213 = vunpack.c.l.b16 %v206
    %v3214 = vunpack.c.l.b16 %v207
    %v3215 = vpack.c.b16 %v3212, %v3211
    %v3216 = vpack.c.b16 %v3214, %v3213
    %v3220 = vsel %vm991, %v3199, 0
    %v3223 = vsel %vm991, %v3200, 0
    %v3226 = vsel %vm991, %v3201, 0
    %v3229 = vsel %vm991, %v3202, 0
    %v3232 = vsel %vm991, %v3203, 0
    %v3235 = vsel %vm991, %v3204, 0
    %v3238 = vsel %vm991, %v3205, 0
    %v3241 = vsel %vm991, %v3206, 0
    %3243 = vmatprep.subr.bf16.mxu0 0
    %3244 = vmatpush1.bf16.msra.mxu0 %v3215
    %3245 = vmatprep.subr.bf16.mxu0 0
    %3246 = vmatpush1.bf16.msra.mxu0 %v3216
    %3247 = vmatprep.subr.bf16.mxu0 0
    %3248 = vmatpush1.bf16.msra.mxu0 0
    %3249 = vmatprep.subr.bf16.mxu0 0
    %3250 = vmatpush1.bf16.msra.mxu0 0
    %3251 = vmatprep.subr.bf16.mxu0 0
    %3252 = vmatpush1.bf16.msra.mxu0 0
    %3253 = vmatprep.subr.bf16.mxu0 0
    %3254 = vmatpush1.bf16.msra.mxu0 0
    %3255 = vmatprep.subr.bf16.mxu0 0
    %3256 = vmatpush1.bf16.msra.mxu0 0
    %3257 = vmatprep.subr.bf16.mxu0 0
    %3258 = vmatpush1.bf16.msra.mxu0 0
    %3259 = vmatprep.subr.bf16.mxu0 0
    %3260 = vmatpush1.bf16.msra.mxu0 0
    %3261 = vmatprep.subr.bf16.mxu0 0
    %3262 = vmatpush1.bf16.msra.mxu0 0
    %3263 = vmatprep.subr.bf16.mxu0 0
    %3264 = vmatpush1.bf16.msra.mxu0 0
    %3265 = vmatprep.subr.bf16.mxu0 0
    %3266 = vmatpush1.bf16.msra.mxu0 0
    %3267 = vmatprep.subr.bf16.mxu0 0
    %3268 = vmatpush1.bf16.msra.mxu0 0
    %3269 = vmatprep.subr.bf16.mxu0 0
    %3270 = vmatpush1.bf16.msra.mxu0 0
    %3271 = vmatprep.subr.bf16.mxu0 0
    %3272 = vmatpush1.bf16.msra.mxu0 0
    %3273 = vmatprep.subr.bf16.mxu0 0
    %3274 = vmatpush1.bf16.msra.mxu0 0
    %3275 = vmatprep.mubr.bf16.mxu0 0
    %3276 = vmatmul.mubr.bf16.gmra.mrb[0].mxu0 %v3220
    %v3277 = vpop.f32.mrb[0].mxu0
    %v3278 = vadd.f32 0.0, %v3277
    %v3279 = vpop.f32.mrb[0].mxu0
    %v3280 = vpop.f32.mrb[0].mxu0
    %v3281 = vadd.f32 0.0, %v3280
    %v3282 = vpop.f32.mrb[0].mxu0
    %3283 = vmatprep.mubr.bf16.mxu0 0
    %3284 = vmatmul.mubr.bf16.gmra.mrb[0].mxu0 %v3223
    %v3285 = vpop.f32.mrb[0].mxu0
    %v3286 = vadd.f32 0.0, %v3285
    %v3287 = vpop.f32.mrb[0].mxu0
    %v3288 = vpop.f32.mrb[0].mxu0
    %v3289 = vadd.f32 0.0, %v3288
    %v3290 = vpop.f32.mrb[0].mxu0
    %3291 = vmatprep.mubr.bf16.mxu0 0
    %3292 = vmatmul.mubr.bf16.gmra.mrb[0].mxu0 %v3226
    %v3293 = vpop.f32.mrb[0].mxu0
    %v3294 = vadd.f32 0.0, %v3293
    %v3295 = vpop.f32.mrb[0].mxu0
    %v3296 = vpop.f32.mrb[0].mxu0
    %v3297 = vadd.f32 0.0, %v3296
    %v3298 = vpop.f32.mrb[0].mxu0
    %3299 = vmatprep.mubr.bf16.mxu0 0
    %3300 = vmatmul.mubr.bf16.gmra.mrb[0].mxu0 %v3229
    %v3301 = vpop.f32.mrb[0].mxu0
    %v3302 = vadd.f32 0.0, %v3301
    %v3303 = vpop.f32.mrb[0].mxu0
    %v3304 = vpop.f32.mrb[0].mxu0
    %v3305 = vadd.f32 0.0, %v3304
    %v3306 = vpop.f32.mrb[0].mxu0
    %3307 = vmatprep.mubr.bf16.mxu0 0
    %3308 = vmatmul.mubr.bf16.gmra.mrb[0].mxu0 %v3232
    %v3309 = vpop.f32.mrb[0].mxu0
    %v3310 = vadd.f32 0.0, %v3309
    %v3311 = vpop.f32.mrb[0].mxu0
    %v3312 = vpop.f32.mrb[0].mxu0
    %v3313 = vadd.f32 0.0, %v3312
    %v3314 = vpop.f32.mrb[0].mxu0
    %3315 = vmatprep.mubr.bf16.mxu0 0
    %3316 = vmatmul.mubr.bf16.gmra.mrb[0].mxu0 %v3235
    %v3317 = vpop.f32.mrb[0].mxu0
    %v3318 = vadd.f32 0.0, %v3317
    %v3319 = vpop.f32.mrb[0].mxu0
    %v3320 = vpop.f32.mrb[0].mxu0
    %v3321 = vadd.f32 0.0, %v3320
    %v3322 = vpop.f32.mrb[0].mxu0
    %3323 = vmatprep.mubr.bf16.mxu0 0
    %3324 = vmatmul.mubr.bf16.gmra.mrb[0].mxu0 %v3238
    %v3325 = vpop.f32.mrb[0].mxu0
    %v3326 = vadd.f32 0.0, %v3325
    %v3327 = vpop.f32.mrb[0].mxu0
    %v3328 = vpop.f32.mrb[0].mxu0
    %v3329 = vadd.f32 0.0, %v3328
    %v3330 = vpop.f32.mrb[0].mxu0
    %3331 = vmatprep.mubr.bf16.mxu0 0
    %3332 = vmatmul.mubr.bf16.gmra.mrb[0].mxu0 %v3241
    %v3333 = vpop.f32.mrb[0].mxu0
    %v3334 = vadd.f32 0.0, %v3333
    %v3335 = vpop.f32.mrb[0].mxu0
    %v3336 = vpop.f32.mrb[0].mxu0
    %v3337 = vadd.f32 0.0, %v3336
    %v3338 = vpop.f32.mrb[0].mxu0
    %3339 = vdwg.mxu0
    %v3340 = vadd.f32 %v3046, %v3278
    %v3341 = vadd.f32 %v3047, %v3281
    %v3342 = vadd.f32 %v3048, %v3286
    %v3343 = vadd.f32 %v3049, %v3289
    %v3344 = vadd.f32 %v3050, %v3294
    %v3345 = vadd.f32 %v3051, %v3297
    %v3346 = vadd.f32 %v3052, %v3302
    %v3347 = vadd.f32 %v3053, %v3305
    %v3348 = vadd.f32 %v3054, %v3310
    %v3349 = vadd.f32 %v3055, %v3313
    %v3350 = vadd.f32 %v3056, %v3318
    %v3351 = vadd.f32 %v3057, %v3321
    %v3352 = vadd.f32 %v3058, %v3326
    %v3353 = vadd.f32 %v3059, %v3329
    %v3354 = vadd.f32 %v3060, %v3334
    %v3355 = vadd.f32 %v3061, %v3337
    %v3357 = vlaneseq
    %v3358 = vshrl.u32 %v3357, 7
    %v3359 = vsub.s32 0, %v3358
    %v3360 = vrot.slane %v208, %v3359
    %v3362 = vadd.f32 %v3340, %v3360
    %v3363 = vadd.f32 %v3341, %v3360
    %v3364 = vadd.f32 %v3342, %v3360
    %v3365 = vadd.f32 %v3343, %v3360
    %v3366 = vadd.f32 %v3344, %v3360
    %v3367 = vadd.f32 %v3345, %v3360
    %v3368 = vadd.f32 %v3346, %v3360
    %v3369 = vadd.f32 %v3347, %v3360
    %v3370 = vadd.f32 %v3348, %v3360
    %v3371 = vadd.f32 %v3349, %v3360
    %v3372 = vadd.f32 %v3350, %v3360
    %v3373 = vadd.f32 %v3351, %v3360
    %v3374 = vadd.f32 %v3352, %v3360
    %v3375 = vadd.f32 %v3353, %v3360
    %v3376 = vadd.f32 %v3354, %v3360
    %v3377 = vadd.f32 %v3355, %v3360
    %3378 = vst [vmem:[#allocation11] sm:$0xff] %v3362
    %3379 = vst [vmem:[#allocation11 + $0x8] sm:$0xff] %v3363
    %3380 = vst [vmem:[#allocation11 + $0x10] sm:$0xff] %v3364
    %3381 = vst [vmem:[#allocation11 + $0x18] sm:$0xff] %v3365
    %3382 = vst [vmem:[#allocation11 + $0x20] sm:$0xff] %v3366
    %3383 = vst [vmem:[#allocation11 + $0x28] sm:$0xff] %v3367
    %3384 = vst [vmem:[#allocation11 + $0x30] sm:$0xff] %v3368
    %3385 = vst [vmem:[#allocation11 + $0x38] sm:$0xff] %v3369
    %3386 = vst [vmem:[#allocation11 + $0x40] sm:$0xff] %v3370
    %3387 = vst [vmem:[#allocation11 + $0x48] sm:$0xff] %v3371
    %3388 = vst [vmem:[#allocation11 + $0x50] sm:$0xff] %v3372
    %3389 = vst [vmem:[#allocation11 + $0x58] sm:$0xff] %v3373
    %3390 = vst [vmem:[#allocation11 + $0x60] sm:$0xff] %v3374
    %3391 = vst [vmem:[#allocation11 + $0x68] sm:$0xff] %v3375
    %3392 = vst [vmem:[#allocation11 + $0x70] sm:$0xff] %v3376
    %3393 = vst [vmem:[#allocation11 + $0x78] sm:$0xff] %v3377
    %s3394 = scalar_lea.vmem %s1, 1
    %v3395 = vld [vmem:[%s3394] sm:$0x1]
    %vm3396 = vcmp.gt.f32.partialorder %v3395, 0.0
    %v3397 = vsel %vm3396, 1, 0
    %v3398 = vlaneseq
    %v3399 = vshrl.u32 %v3398, 7
    %v3400 = vsub.s32 0, %v3399
    %v3401 = vrot.slane %v3397, %v3400
    %vm3402 = vcmp.eq.s32.totalorder %v3401, 1
    %vm3403 = vmand %vm3402, %vm935
    %vm3404 = vmand %vm3402, %vm936
    %vm3405 = vmand %vm3402, %vm937
    %vm3406 = vmand %vm3402, %vm938
    %vm3407 = vmand %vm3402, %vm939
    %vm3408 = vmand %vm3402, %vm940
    %vm3409 = vmand %vm3402, %vm941
    %vm3410 = vmand %vm3402, %vm942
    %vm3411 = vmand %vm3402, %vm943
    %vm3412 = vmand %vm3402, %vm944
    %vm3413 = vmand %vm3402, %vm945
    %vm3414 = vmand %vm3402, %vm946
    %vm3415 = vmand %vm3402, %vm947
    %vm3416 = vmand %vm3402, %vm948
    %vm3417 = vmand %vm3402, %vm949
    %vm3418 = vmand %vm3402, %vm950
    %v3419 = vsel %vm3403, 0.0, -1e+30
    %v3420 = vsel %vm3404, 0.0, -1e+30
    %v3421 = vsel %vm3405, 0.0, -1e+30
    %v3422 = vsel %vm3406, 0.0, -1e+30
    %v3423 = vsel %vm3407, 0.0, -1e+30
    %v3424 = vsel %vm3408, 0.0, -1e+30
    %v3425 = vsel %vm3409, 0.0, -1e+30
    %v3426 = vsel %vm3410, 0.0, -1e+30
    %v3427 = vsel %vm3411, 0.0, -1e+30
    %v3428 = vsel %vm3412, 0.0, -1e+30
    %v3429 = vsel %vm3413, 0.0, -1e+30
    %v3430 = vsel %vm3414, 0.0, -1e+30
    %v3431 = vsel %vm3415, 0.0, -1e+30
    %v3432 = vsel %vm3416, 0.0, -1e+30
    %v3433 = vsel %vm3417, 0.0, -1e+30
    %v3434 = vsel %vm3418, 0.0, -1e+30
    %v3436 = vsel %vm991, %v876, 0
    %v3439 = vsel %vm991, %v877, 0
    %v3442 = vsel %vm991, %v878, 0
    %v3445 = vsel %vm991, %v879, 0
    %v3448 = vsel %vm991, %v880, 0
    %v3451 = vsel %vm991, %v881, 0
    %v3454 = vsel %vm991, %v882, 0
    %v3457 = vsel %vm991, %v883, 0
    %v3460 = vsel %vm991, %v892, 0
    %v3463 = vsel %vm991, %v893, 0
    %v3466 = vsel %vm991, %v894, 0
    %v3469 = vsel %vm991, %v895, 0
    %v3472 = vsel %vm991, %v896, 0
    %v3475 = vsel %vm991, %v897, 0
    %v3478 = vsel %vm991, %v898, 0
    %v3481 = vsel %vm991, %v899, 0
    %3483 = vmatprep.subr.bf16.mxu0 0
    %3484 = vmatpush1.bf16.xpose.msra.mxu0 %v3460
    %3485 = vmatprep.subr.bf16.mxu0 0
    %3486 = vmatpush1.bf16.xpose.msra.mxu0 %v3463
    %3487 = vmatprep.subr.bf16.mxu0 0
    %3488 = vmatpush1.bf16.xpose.msra.mxu0 %v3466
    %3489 = vmatprep.subr.bf16.mxu0 0
    %3490 = vmatpush1.bf16.xpose.msra.mxu0 %v3469
    %3491 = vmatprep.subr.bf16.mxu0 0
    %3492 = vmatpush1.bf16.xpose.msra.mxu0 %v3472
    %3493 = vmatprep.subr.bf16.mxu0 0
    %3494 = vmatpush1.bf16.xpose.msra.mxu0 %v3475
    %3495 = vmatprep.subr.bf16.mxu0 0
    %3496 = vmatpush1.bf16.xpose.msra.mxu0 %v3478
    %3497 = vmatprep.subr.bf16.mxu0 0
    %3498 = vmatpush1.bf16.xpose.msra.mxu0 %v3481
    %3499 = vmatprep.subr.bf16.mxu0 0
    %3500 = vmatpush1.bf16.xpose.msra.mxu0 0
    %3501 = vmatprep.subr.bf16.mxu0 0
    %3502 = vmatpush1.bf16.xpose.msra.mxu0 0
    %3503 = vmatprep.subr.bf16.mxu0 0
    %3504 = vmatpush1.bf16.xpose.msra.mxu0 0
    %3505 = vmatprep.subr.bf16.mxu0 0
    %3506 = vmatpush1.bf16.xpose.msra.mxu0 0
    %3507 = vmatprep.subr.bf16.mxu0 0
    %3508 = vmatpush1.bf16.xpose.msra.mxu0 0
    %3509 = vmatprep.subr.bf16.mxu0 0
    %3510 = vmatpush1.bf16.xpose.msra.mxu0 0
    %3511 = vmatprep.subr.bf16.mxu0 0
    %3512 = vmatpush1.bf16.xpose.msra.mxu0 0
    %3513 = vmatprep.subr.bf16.mxu0 0
    %3514 = vmatpush1.bf16.xpose.msra.mxu0 0
    %3515 = vmatprep.mubr.bf16.mxu0 0
    %3516 = vmatmul.mubr.bf16.gmra.mrb[0].mxu0 %v3436
    %v3517 = vpop.f32.mrb[0].mxu0
    %v3518 = vadd.f32 %v3419, %v3517
    %v3519 = vpop.f32.mrb[0].mxu0
    %v3520 = vpop.f32.mrb[0].mxu0
    %v3521 = vadd.f32 %v3420, %v3520
    %v3522 = vpop.f32.mrb[0].mxu0
    %3523 = vmatprep.mubr.bf16.mxu0 0
    %3524 = vmatmul.mubr.bf16.gmra.mrb[0].mxu0 %v3439
    %v3525 = vpop.f32.mrb[0].mxu0
    %v3526 = vadd.f32 %v3421, %v3525
    %v3527 = vpop.f32.mrb[0].mxu0
    %v3528 = vpop.f32.mrb[0].mxu0
    %v3529 = vadd.f32 %v3422, %v3528
    %v3530 = vpop.f32.mrb[0].mxu0
    %3531 = vmatprep.mubr.bf16.mxu0 0
    %3532 = vmatmul.mubr.bf16.gmra.mrb[0].mxu0 %v3442
    %v3533 = vpop.f32.mrb[0].mxu0
    %v3534 = vadd.f32 %v3423, %v3533
    %v3535 = vpop.f32.mrb[0].mxu0
    %v3536 = vpop.f32.mrb[0].mxu0
    %v3537 = vadd.f32 %v3424, %v3536
    %v3538 = vpop.f32.mrb[0].mxu0
    %3539 = vmatprep.mubr.bf16.mxu0 0
    %3540 = vmatmul.mubr.bf16.gmra.mrb[0].mxu0 %v3445
    %v3541 = vpop.f32.mrb[0].mxu0
    %v3542 = vadd.f32 %v3425, %v3541
    %v3543 = vpop.f32.mrb[0].mxu0
    %v3544 = vpop.f32.mrb[0].mxu0
    %v3545 = vadd.f32 %v3426, %v3544
    %v3546 = vpop.f32.mrb[0].mxu0
    %3547 = vmatprep.mubr.bf16.mxu0 0
    %3548 = vmatmul.mubr.bf16.gmra.mrb[0].mxu0 %v3448
    %v3549 = vpop.f32.mrb[0].mxu0
    %v3550 = vadd.f32 %v3427, %v3549
    %v3551 = vpop.f32.mrb[0].mxu0
    %v3552 = vpop.f32.mrb[0].mxu0
    %v3553 = vadd.f32 %v3428, %v3552
    %v3554 = vpop.f32.mrb[0].mxu0
    %3555 = vmatprep.mubr.bf16.mxu0 0
    %3556 = vmatmul.mubr.bf16.gmra.mrb[0].mxu0 %v3451
    %v3557 = vpop.f32.mrb[0].mxu0
    %v3558 = vadd.f32 %v3429, %v3557
    %v3559 = vpop.f32.mrb[0].mxu0
    %v3560 = vpop.f32.mrb[0].mxu0
    %v3561 = vadd.f32 %v3430, %v3560
    %v3562 = vpop.f32.mrb[0].mxu0
    %3563 = vmatprep.mubr.bf16.mxu0 0
    %3564 = vmatmul.mubr.bf16.gmra.mrb[0].mxu0 %v3454
    %v3565 = vpop.f32.mrb[0].mxu0
    %v3566 = vadd.f32 %v3431, %v3565
    %v3567 = vpop.f32.mrb[0].mxu0
    %v3568 = vpop.f32.mrb[0].mxu0
    %v3569 = vadd.f32 %v3432, %v3568
    %v3570 = vpop.f32.mrb[0].mxu0
    %3571 = vmatprep.mubr.bf16.mxu0 0
    %3572 = vmatmul.mubr.bf16.gmra.mrb[0].mxu0 %v3457
    %v3573 = vpop.f32.mrb[0].mxu0
    %v3574 = vadd.f32 %v3433, %v3573
    %v3575 = vpop.f32.mrb[0].mxu0
    %v3576 = vpop.f32.mrb[0].mxu0
    %v3577 = vadd.f32 %v3434, %v3576
    %v3578 = vpop.f32.mrb[0].mxu0
    %3579 = vdwg.mxu0
    %3588 = vrot.lane.b32.xlu0 %v876, 96
    %v3589 = vpop.permute.xlu0 %3588
    %3590 = vrot.lane.b32.xlu0 %v877, 96
    %v3591 = vpop.permute.xlu0 %3590
    %3592 = vrot.lane.b32.xlu0 %v878, 96
    %v3593 = vpop.permute.xlu0 %3592
    %3594 = vrot.lane.b32.xlu0 %v879, 96
    %v3595 = vpop.permute.xlu0 %3594
    %3596 = vrot.lane.b32.xlu0 %v880, 96
    %v3597 = vpop.permute.xlu0 %3596
    %3598 = vrot.lane.b32.xlu0 %v881, 96
    %v3599 = vpop.permute.xlu0 %3598
    %3600 = vrot.lane.b32.xlu0 %v882, 96
    %v3601 = vpop.permute.xlu0 %3600
    %3602 = vrot.lane.b32.xlu0 %v883, 96
    %v3603 = vpop.permute.xlu0 %3602
    %3612 = vrot.lane.b32.xlu0 %v892, 96
    %v3613 = vpop.permute.xlu0 %3612
    %3614 = vrot.lane.b32.xlu0 %v893, 96
    %v3615 = vpop.permute.xlu0 %3614
    %3616 = vrot.lane.b32.xlu0 %v894, 96
    %v3617 = vpop.permute.xlu0 %3616
    %3618 = vrot.lane.b32.xlu0 %v895, 96
    %v3619 = vpop.permute.xlu0 %3618
    %3620 = vrot.lane.b32.xlu0 %v896, 96
    %v3621 = vpop.permute.xlu0 %3620
    %3622 = vrot.lane.b32.xlu0 %v897, 96
    %v3623 = vpop.permute.xlu0 %3622
    %3624 = vrot.lane.b32.xlu0 %v898, 96
    %v3625 = vpop.permute.xlu0 %3624
    %3626 = vrot.lane.b32.xlu0 %v899, 96
    %v3627 = vpop.permute.xlu0 %3626
    %v3629 = vsel %vm991, %v3589, 0
    %v3632 = vsel %vm991, %v3591, 0
    %v3635 = vsel %vm991, %v3593, 0
    %v3638 = vsel %vm991, %v3595, 0
    %v3641 = vsel %vm991, %v3597, 0
    %v3644 = vsel %vm991, %v3599, 0
    %v3647 = vsel %vm991, %v3601, 0
    %v3650 = vsel %vm991, %v3603, 0
    %v3653 = vsel %vm991, %v3613, 0
    %v3656 = vsel %vm991, %v3615, 0
    %v3659 = vsel %vm991, %v3617, 0
    %v3662 = vsel %vm991, %v3619, 0
    %v3665 = vsel %vm991, %v3621, 0
    %v3668 = vsel %vm991, %v3623, 0
    %v3671 = vsel %vm991, %v3625, 0
    %v3674 = vsel %vm991, %v3627, 0
    %3676 = vmatprep.subr.bf16.mxu0 0
    %3677 = vmatpush1.bf16.xpose.msra.mxu0 %v3653
    %3678 = vmatprep.subr.bf16.mxu0 0
    %3679 = vmatpush1.bf16.xpose.msra.mxu0 %v3656
    %3680 = vmatprep.subr.bf16.mxu0 0
    %3681 = vmatpush1.bf16.xpose.msra.mxu0 %v3659
    %3682 = vmatprep.subr.bf16.mxu0 0
    %3683 = vmatpush1.bf16.xpose.msra.mxu0 %v3662
    %3684 = vmatprep.subr.bf16.mxu0 0
    %3685 = vmatpush1.bf16.xpose.msra.mxu0 %v3665
    %3686 = vmatprep.subr.bf16.mxu0 0
    %3687 = vmatpush1.bf16.xpose.msra.mxu0 %v3668
    %3688 = vmatprep.subr.bf16.mxu0 0
    %3689 = vmatpush1.bf16.xpose.msra.mxu0 %v3671
    %3690 = vmatprep.subr.bf16.mxu0 0
    %3691 = vmatpush1.bf16.xpose.msra.mxu0 %v3674
    %3692 = vmatprep.subr.bf16.mxu0 0
    %3693 = vmatpush1.bf16.xpose.msra.mxu0 0
    %3694 = vmatprep.subr.bf16.mxu0 0
    %3695 = vmatpush1.bf16.xpose.msra.mxu0 0
    %3696 = vmatprep.subr.bf16.mxu0 0
    %3697 = vmatpush1.bf16.xpose.msra.mxu0 0
    %3698 = vmatprep.subr.bf16.mxu0 0
    %3699 = vmatpush1.bf16.xpose.msra.mxu0 0
    %3700 = vmatprep.subr.bf16.mxu0 0
    %3701 = vmatpush1.bf16.xpose.msra.mxu0 0
    %3702 = vmatprep.subr.bf16.mxu0 0
    %3703 = vmatpush1.bf16.xpose.msra.mxu0 0
    %3704 = vmatprep.subr.bf16.mxu0 0
    %3705 = vmatpush1.bf16.xpose.msra.mxu0 0
    %3706 = vmatprep.subr.bf16.mxu0 0
    %3707 = vmatpush1.bf16.xpose.msra.mxu0 0
    %3708 = vmatprep.mubr.bf16.mxu0 0
    %3709 = vmatmul.mubr.bf16.gmra.mrb[0].mxu0 %v3629
    %v3710 = vpop.f32.mrb[0].mxu0
    %v3711 = vadd.f32 %v3419, %v3710
    %v3712 = vpop.f32.mrb[0].mxu0
    %v3713 = vpop.f32.mrb[0].mxu0
    %v3714 = vadd.f32 %v3420, %v3713
    %v3715 = vpop.f32.mrb[0].mxu0
    %3716 = vmatprep.mubr.bf16.mxu0 0
    %3717 = vmatmul.mubr.bf16.gmra.mrb[0].mxu0 %v3632
    %v3718 = vpop.f32.mrb[0].mxu0
    %v3719 = vadd.f32 %v3421, %v3718
    %v3720 = vpop.f32.mrb[0].mxu0
    %v3721 = vpop.f32.mrb[0].mxu0
    %v3722 = vadd.f32 %v3422, %v3721
    %v3723 = vpop.f32.mrb[0].mxu0
    %3724 = vmatprep.mubr.bf16.mxu0 0
    %3725 = vmatmul.mubr.bf16.gmra.mrb[0].mxu0 %v3635
    %v3726 = vpop.f32.mrb[0].mxu0
    %v3727 = vadd.f32 %v3423, %v3726
    %v3728 = vpop.f32.mrb[0].mxu0
    %v3729 = vpop.f32.mrb[0].mxu0
    %v3730 = vadd.f32 %v3424, %v3729
    %v3731 = vpop.f32.mrb[0].mxu0
    %3732 = vmatprep.mubr.bf16.mxu0 0
    %3733 = vmatmul.mubr.bf16.gmra.mrb[0].mxu0 %v3638
    %v3734 = vpop.f32.mrb[0].mxu0
    %v3735 = vadd.f32 %v3425, %v3734
    %v3736 = vpop.f32.mrb[0].mxu0
    %v3737 = vpop.f32.mrb[0].mxu0
    %v3738 = vadd.f32 %v3426, %v3737
    %v3739 = vpop.f32.mrb[0].mxu0
    %3740 = vmatprep.mubr.bf16.mxu0 0
    %3741 = vmatmul.mubr.bf16.gmra.mrb[0].mxu0 %v3641
    %v3742 = vpop.f32.mrb[0].mxu0
    %v3743 = vadd.f32 %v3427, %v3742
    %v3744 = vpop.f32.mrb[0].mxu0
    %v3745 = vpop.f32.mrb[0].mxu0
    %v3746 = vadd.f32 %v3428, %v3745
    %v3747 = vpop.f32.mrb[0].mxu0
    %3748 = vmatprep.mubr.bf16.mxu0 0
    %3749 = vmatmul.mubr.bf16.gmra.mrb[0].mxu0 %v3644
    %v3750 = vpop.f32.mrb[0].mxu0
    %v3751 = vadd.f32 %v3429, %v3750
    %v3752 = vpop.f32.mrb[0].mxu0
    %v3753 = vpop.f32.mrb[0].mxu0
    %v3754 = vadd.f32 %v3430, %v3753
    %v3755 = vpop.f32.mrb[0].mxu0
    %3756 = vmatprep.mubr.bf16.mxu0 0
    %3757 = vmatmul.mubr.bf16.gmra.mrb[0].mxu0 %v3647
    %v3758 = vpop.f32.mrb[0].mxu0
    %v3759 = vadd.f32 %v3431, %v3758
    %v3760 = vpop.f32.mrb[0].mxu0
    %v3761 = vpop.f32.mrb[0].mxu0
    %v3762 = vadd.f32 %v3432, %v3761
    %v3763 = vpop.f32.mrb[0].mxu0
    %3764 = vmatprep.mubr.bf16.mxu0 0
    %3765 = vmatmul.mubr.bf16.gmra.mrb[0].mxu0 %v3650
    %v3766 = vpop.f32.mrb[0].mxu0
    %v3767 = vadd.f32 %v3433, %v3766
    %v3768 = vpop.f32.mrb[0].mxu0
    %v3769 = vpop.f32.mrb[0].mxu0
    %v3770 = vadd.f32 %v3434, %v3769
    %v3771 = vpop.f32.mrb[0].mxu0
    %3772 = vdwg.mxu0
    %3773 = vrot.lane.b32.xlu0 %v876, 64
    %v3774 = vpop.permute.xlu0 %3773
    %3775 = vrot.lane.b32.xlu0 %v877, 64
    %v3776 = vpop.permute.xlu0 %3775
    %3777 = vrot.lane.b32.xlu0 %v878, 64
    %v3778 = vpop.permute.xlu0 %3777
    %3779 = vrot.lane.b32.xlu0 %v879, 64
    %v3780 = vpop.permute.xlu0 %3779
    %3781 = vrot.lane.b32.xlu0 %v880, 64
    %v3782 = vpop.permute.xlu0 %3781
    %3783 = vrot.lane.b32.xlu0 %v881, 64
    %v3784 = vpop.permute.xlu0 %3783
    %3785 = vrot.lane.b32.xlu0 %v882, 64
    %v3786 = vpop.permute.xlu0 %3785
    %3787 = vrot.lane.b32.xlu0 %v883, 64
    %v3788 = vpop.permute.xlu0 %3787
    %3789 = vrot.lane.b32.xlu0 %v892, 64
    %v3790 = vpop.permute.xlu0 %3789
    %3791 = vrot.lane.b32.xlu0 %v893, 64
    %v3792 = vpop.permute.xlu0 %3791
    %3793 = vrot.lane.b32.xlu0 %v894, 64
    %v3794 = vpop.permute.xlu0 %3793
    %3795 = vrot.lane.b32.xlu0 %v895, 64
    %v3796 = vpop.permute.xlu0 %3795
    %3797 = vrot.lane.b32.xlu0 %v896, 64
    %v3798 = vpop.permute.xlu0 %3797
    %3799 = vrot.lane.b32.xlu0 %v897, 64
    %v3800 = vpop.permute.xlu0 %3799
    %3801 = vrot.lane.b32.xlu0 %v898, 64
    %v3802 = vpop.permute.xlu0 %3801
    %3803 = vrot.lane.b32.xlu0 %v899, 64
    %v3804 = vpop.permute.xlu0 %3803
    %v3806 = vsel %vm991, %v3774, 0
    %v3809 = vsel %vm991, %v3776, 0
    %v3812 = vsel %vm991, %v3778, 0
    %v3815 = vsel %vm991, %v3780, 0
    %v3818 = vsel %vm991, %v3782, 0
    %v3821 = vsel %vm991, %v3784, 0
    %v3824 = vsel %vm991, %v3786, 0
    %v3827 = vsel %vm991, %v3788, 0
    %v3830 = vsel %vm991, %v3790, 0
    %v3833 = vsel %vm991, %v3792, 0
    %v3836 = vsel %vm991, %v3794, 0
    %v3839 = vsel %vm991, %v3796, 0
    %v3842 = vsel %vm991, %v3798, 0
    %v3845 = vsel %vm991, %v3800, 0
    %v3848 = vsel %vm991, %v3802, 0
    %v3851 = vsel %vm991, %v3804, 0
    %3853 = vmatprep.subr.bf16.mxu0 0
    %3854 = vmatpush1.bf16.xpose.msra.mxu0 %v3830
    %3855 = vmatprep.subr.bf16.mxu0 0
    %3856 = vmatpush1.bf16.xpose.msra.mxu0 %v3833
    %3857 = vmatprep.subr.bf16.mxu0 0
    %3858 = vmatpush1.bf16.xpose.msra.mxu0 %v3836
    %3859 = vmatprep.subr.bf16.mxu0 0
    %3860 = vmatpush1.bf16.xpose.msra.mxu0 %v3839
    %3861 = vmatprep.subr.bf16.mxu0 0
    %3862 = vmatpush1.bf16.xpose.msra.mxu0 %v3842
    %3863 = vmatprep.subr.bf16.mxu0 0
    %3864 = vmatpush1.bf16.xpose.msra.mxu0 %v3845
    %3865 = vmatprep.subr.bf16.mxu0 0
    %3866 = vmatpush1.bf16.xpose.msra.mxu0 %v3848
    %3867 = vmatprep.subr.bf16.mxu0 0
    %3868 = vmatpush1.bf16.xpose.msra.mxu0 %v3851
    %3869 = vmatprep.subr.bf16.mxu0 0
    %3870 = vmatpush1.bf16.xpose.msra.mxu0 0
    %3871 = vmatprep.subr.bf16.mxu0 0
    %3872 = vmatpush1.bf16.xpose.msra.mxu0 0
    %3873 = vmatprep.subr.bf16.mxu0 0
    %3874 = vmatpush1.bf16.xpose.msra.mxu0 0
    %3875 = vmatprep.subr.bf16.mxu0 0
    %3876 = vmatpush1.bf16.xpose.msra.mxu0 0
    %3877 = vmatprep.subr.bf16.mxu0 0
    %3878 = vmatpush1.bf16.xpose.msra.mxu0 0
    %3879 = vmatprep.subr.bf16.mxu0 0
    %3880 = vmatpush1.bf16.xpose.msra.mxu0 0
    %3881 = vmatprep.subr.bf16.mxu0 0
    %3882 = vmatpush1.bf16.xpose.msra.mxu0 0
    %3883 = vmatprep.subr.bf16.mxu0 0
    %3884 = vmatpush1.bf16.xpose.msra.mxu0 0
    %3885 = vmatprep.mubr.bf16.mxu0 0
    %3886 = vmatmul.mubr.bf16.gmra.mrb[0].mxu0 %v3806
    %v3887 = vpop.f32.mrb[0].mxu0
    %v3888 = vadd.f32 %v3419, %v3887
    %v3889 = vpop.f32.mrb[0].mxu0
    %v3890 = vpop.f32.mrb[0].mxu0
    %v3891 = vadd.f32 %v3420, %v3890
    %v3892 = vpop.f32.mrb[0].mxu0
    %3893 = vmatprep.mubr.bf16.mxu0 0
    %3894 = vmatmul.mubr.bf16.gmra.mrb[0].mxu0 %v3809
    %v3895 = vpop.f32.mrb[0].mxu0
    %v3896 = vadd.f32 %v3421, %v3895
    %v3897 = vpop.f32.mrb[0].mxu0
    %v3898 = vpop.f32.mrb[0].mxu0
    %v3899 = vadd.f32 %v3422, %v3898
    %v3900 = vpop.f32.mrb[0].mxu0
    %3901 = vmatprep.mubr.bf16.mxu0 0
    %3902 = vmatmul.mubr.bf16.gmra.mrb[0].mxu0 %v3812
    %v3903 = vpop.f32.mrb[0].mxu0
    %v3904 = vadd.f32 %v3423, %v3903
    %v3905 = vpop.f32.mrb[0].mxu0
    %v3906 = vpop.f32.mrb[0].mxu0
    %v3907 = vadd.f32 %v3424, %v3906
    %v3908 = vpop.f32.mrb[0].mxu0
    %3909 = vmatprep.mubr.bf16.mxu0 0
    %3910 = vmatmul.mubr.bf16.gmra.mrb[0].mxu0 %v3815
    %v3911 = vpop.f32.mrb[0].mxu0
    %v3912 = vadd.f32 %v3425, %v3911
    %v3913 = vpop.f32.mrb[0].mxu0
    %v3914 = vpop.f32.mrb[0].mxu0
    %v3915 = vadd.f32 %v3426, %v3914
    %v3916 = vpop.f32.mrb[0].mxu0
    %3917 = vmatprep.mubr.bf16.mxu0 0
    %3918 = vmatmul.mubr.bf16.gmra.mrb[0].mxu0 %v3818
    %v3919 = vpop.f32.mrb[0].mxu0
    %v3920 = vadd.f32 %v3427, %v3919
    %v3921 = vpop.f32.mrb[0].mxu0
    %v3922 = vpop.f32.mrb[0].mxu0
    %v3923 = vadd.f32 %v3428, %v3922
    %v3924 = vpop.f32.mrb[0].mxu0
    %3925 = vmatprep.mubr.bf16.mxu0 0
    %3926 = vmatmul.mubr.bf16.gmra.mrb[0].mxu0 %v3821
    %v3927 = vpop.f32.mrb[0].mxu0
    %v3928 = vadd.f32 %v3429, %v3927
    %v3929 = vpop.f32.mrb[0].mxu0
    %v3930 = vpop.f32.mrb[0].mxu0
    %v3931 = vadd.f32 %v3430, %v3930
    %v3932 = vpop.f32.mrb[0].mxu0
    %3933 = vmatprep.mubr.bf16.mxu0 0
    %3934 = vmatmul.mubr.bf16.gmra.mrb[0].mxu0 %v3824
    %v3935 = vpop.f32.mrb[0].mxu0
    %v3936 = vadd.f32 %v3431, %v3935
    %v3937 = vpop.f32.mrb[0].mxu0
    %v3938 = vpop.f32.mrb[0].mxu0
    %v3939 = vadd.f32 %v3432, %v3938
    %v3940 = vpop.f32.mrb[0].mxu0
    %3941 = vmatprep.mubr.bf16.mxu0 0
    %3942 = vmatmul.mubr.bf16.gmra.mrb[0].mxu0 %v3827
    %v3943 = vpop.f32.mrb[0].mxu0
    %v3944 = vadd.f32 %v3433, %v3943
    %v3945 = vpop.f32.mrb[0].mxu0
    %v3946 = vpop.f32.mrb[0].mxu0
    %v3947 = vadd.f32 %v3434, %v3946
    %v3948 = vpop.f32.mrb[0].mxu0
    %3949 = vdwg.mxu0
    %3950 = vrot.lane.b32.xlu0 %v876, 32
    %v3951 = vpop.permute.xlu0 %3950
    %3952 = vrot.lane.b32.xlu0 %v877, 32
    %v3953 = vpop.permute.xlu0 %3952
    %3954 = vrot.lane.b32.xlu0 %v878, 32
    %v3955 = vpop.permute.xlu0 %3954
    %3956 = vrot.lane.b32.xlu0 %v879, 32
    %v3957 = vpop.permute.xlu0 %3956
    %3958 = vrot.lane.b32.xlu0 %v880, 32
    %v3959 = vpop.permute.xlu0 %3958
    %3960 = vrot.lane.b32.xlu0 %v881, 32
    %v3961 = vpop.permute.xlu0 %3960
    %3962 = vrot.lane.b32.xlu0 %v882, 32
    %v3963 = vpop.permute.xlu0 %3962
    %3964 = vrot.lane.b32.xlu0 %v883, 32
    %v3965 = vpop.permute.xlu0 %3964
    %3966 = vrot.lane.b32.xlu0 %v892, 32
    %v3967 = vpop.permute.xlu0 %3966
    %3968 = vrot.lane.b32.xlu0 %v893, 32
    %v3969 = vpop.permute.xlu0 %3968
    %3970 = vrot.lane.b32.xlu0 %v894, 32
    %v3971 = vpop.permute.xlu0 %3970
    %3972 = vrot.lane.b32.xlu0 %v895, 32
    %v3973 = vpop.permute.xlu0 %3972
    %3974 = vrot.lane.b32.xlu0 %v896, 32
    %v3975 = vpop.permute.xlu0 %3974
    %3976 = vrot.lane.b32.xlu0 %v897, 32
    %v3977 = vpop.permute.xlu0 %3976
    %3978 = vrot.lane.b32.xlu0 %v898, 32
    %v3979 = vpop.permute.xlu0 %3978
    %3980 = vrot.lane.b32.xlu0 %v899, 32
    %v3981 = vpop.permute.xlu0 %3980
    %v3983 = vsel %vm991, %v3951, 0
    %v3986 = vsel %vm991, %v3953, 0
    %v3989 = vsel %vm991, %v3955, 0
    %v3992 = vsel %vm991, %v3957, 0
    %v3995 = vsel %vm991, %v3959, 0
    %v3998 = vsel %vm991, %v3961, 0
    %v4001 = vsel %vm991, %v3963, 0
    %v4004 = vsel %vm991, %v3965, 0
    %v4007 = vsel %vm991, %v3967, 0
    %v4010 = vsel %vm991, %v3969, 0
    %v4013 = vsel %vm991, %v3971, 0
    %v4016 = vsel %vm991, %v3973, 0
    %v4019 = vsel %vm991, %v3975, 0
    %v4022 = vsel %vm991, %v3977, 0
    %v4025 = vsel %vm991, %v3979, 0
    %v4028 = vsel %vm991, %v3981, 0
    %4030 = vmatprep.subr.bf16.mxu0 0
    %4031 = vmatpush1.bf16.xpose.msra.mxu0 %v4007
    %4032 = vmatprep.subr.bf16.mxu0 0
    %4033 = vmatpush1.bf16.xpose.msra.mxu0 %v4010
    %4034 = vmatprep.subr.bf16.mxu0 0
    %4035 = vmatpush1.bf16.xpose.msra.mxu0 %v4013
    %4036 = vmatprep.subr.bf16.mxu0 0
    %4037 = vmatpush1.bf16.xpose.msra.mxu0 %v4016
    %4038 = vmatprep.subr.bf16.mxu0 0
    %4039 = vmatpush1.bf16.xpose.msra.mxu0 %v4019
    %4040 = vmatprep.subr.bf16.mxu0 0
    %4041 = vmatpush1.bf16.xpose.msra.mxu0 %v4022
    %4042 = vmatprep.subr.bf16.mxu0 0
    %4043 = vmatpush1.bf16.xpose.msra.mxu0 %v4025
    %4044 = vmatprep.subr.bf16.mxu0 0
    %4045 = vmatpush1.bf16.xpose.msra.mxu0 %v4028
    %4046 = vmatprep.subr.bf16.mxu0 0
    %4047 = vmatpush1.bf16.xpose.msra.mxu0 0
    %4048 = vmatprep.subr.bf16.mxu0 0
    %4049 = vmatpush1.bf16.xpose.msra.mxu0 0
    %4050 = vmatprep.subr.bf16.mxu0 0
    %4051 = vmatpush1.bf16.xpose.msra.mxu0 0
    %4052 = vmatprep.subr.bf16.mxu0 0
    %4053 = vmatpush1.bf16.xpose.msra.mxu0 0
    %4054 = vmatprep.subr.bf16.mxu0 0
    %4055 = vmatpush1.bf16.xpose.msra.mxu0 0
    %4056 = vmatprep.subr.bf16.mxu0 0
    %4057 = vmatpush1.bf16.xpose.msra.mxu0 0
    %4058 = vmatprep.subr.bf16.mxu0 0
    %4059 = vmatpush1.bf16.xpose.msra.mxu0 0
    %4060 = vmatprep.subr.bf16.mxu0 0
    %4061 = vmatpush1.bf16.xpose.msra.mxu0 0
    %4062 = vmatprep.mubr.bf16.mxu0 0
    %4063 = vmatmul.mubr.bf16.gmra.mrb[0].mxu0 %v3983
    %v4064 = vpop.f32.mrb[0].mxu0
    %v4065 = vadd.f32 %v3419, %v4064
    %v4066 = vpop.f32.mrb[0].mxu0
    %v4067 = vpop.f32.mrb[0].mxu0
    %v4068 = vadd.f32 %v3420, %v4067
    %v4069 = vpop.f32.mrb[0].mxu0
    %4070 = vmatprep.mubr.bf16.mxu0 0
    %4071 = vmatmul.mubr.bf16.gmra.mrb[0].mxu0 %v3986
    %v4072 = vpop.f32.mrb[0].mxu0
    %v4073 = vadd.f32 %v3421, %v4072
    %v4074 = vpop.f32.mrb[0].mxu0
    %v4075 = vpop.f32.mrb[0].mxu0
    %v4076 = vadd.f32 %v3422, %v4075
    %v4077 = vpop.f32.mrb[0].mxu0
    %4078 = vmatprep.mubr.bf16.mxu0 0
    %4079 = vmatmul.mubr.bf16.gmra.mrb[0].mxu0 %v3989
    %v4080 = vpop.f32.mrb[0].mxu0
    %v4081 = vadd.f32 %v3423, %v4080
    %v4082 = vpop.f32.mrb[0].mxu0
    %v4083 = vpop.f32.mrb[0].mxu0
    %v4084 = vadd.f32 %v3424, %v4083
    %v4085 = vpop.f32.mrb[0].mxu0
    %4086 = vmatprep.mubr.bf16.mxu0 0
    %4087 = vmatmul.mubr.bf16.gmra.mrb[0].mxu0 %v3992
    %v4088 = vpop.f32.mrb[0].mxu0
    %v4089 = vadd.f32 %v3425, %v4088
    %v4090 = vpop.f32.mrb[0].mxu0
    %v4091 = vpop.f32.mrb[0].mxu0
    %v4092 = vadd.f32 %v3426, %v4091
    %v4093 = vpop.f32.mrb[0].mxu0
    %4094 = vmatprep.mubr.bf16.mxu0 0
    %4095 = vmatmul.mubr.bf16.gmra.mrb[0].mxu0 %v3995
    %v4096 = vpop.f32.mrb[0].mxu0
    %v4097 = vadd.f32 %v3427, %v4096
    %v4098 = vpop.f32.mrb[0].mxu0
    %v4099 = vpop.f32.mrb[0].mxu0
    %v4100 = vadd.f32 %v3428, %v4099
    %v4101 = vpop.f32.mrb[0].mxu0
    %4102 = vmatprep.mubr.bf16.mxu0 0
    %4103 = vmatmul.mubr.bf16.gmra.mrb[0].mxu0 %v3998
    %v4104 = vpop.f32.mrb[0].mxu0
    %v4105 = vadd.f32 %v3429, %v4104
    %v4106 = vpop.f32.mrb[0].mxu0
    %v4107 = vpop.f32.mrb[0].mxu0
    %v4108 = vadd.f32 %v3430, %v4107
    %v4109 = vpop.f32.mrb[0].mxu0
    %4110 = vmatprep.mubr.bf16.mxu0 0
    %4111 = vmatmul.mubr.bf16.gmra.mrb[0].mxu0 %v4001
    %v4112 = vpop.f32.mrb[0].mxu0
    %v4113 = vadd.f32 %v3431, %v4112
    %v4114 = vpop.f32.mrb[0].mxu0
    %v4115 = vpop.f32.mrb[0].mxu0
    %v4116 = vadd.f32 %v3432, %v4115
    %v4117 = vpop.f32.mrb[0].mxu0
    %4118 = vmatprep.mubr.bf16.mxu0 0
    %4119 = vmatmul.mubr.bf16.gmra.mrb[0].mxu0 %v4004
    %v4120 = vpop.f32.mrb[0].mxu0
    %v4121 = vadd.f32 %v3433, %v4120
    %v4122 = vpop.f32.mrb[0].mxu0
    %v4123 = vpop.f32.mrb[0].mxu0
    %v4124 = vadd.f32 %v3434, %v4123
    %v4125 = vpop.f32.mrb[0].mxu0
    %4126 = vdwg.mxu0
    %4127 = vmax.xlane.f32.xlu0 %v3518
    %v4128 = vpop.xlane.xlu0 %4127
    %4129 = vmax.xlane.f32.xlu0 %v3521
    %v4130 = vpop.xlane.xlu0 %4129
    %4131 = vmax.xlane.f32.xlu0 %v3526
    %v4132 = vpop.xlane.xlu0 %4131
    %4133 = vmax.xlane.f32.xlu0 %v3529
    %v4134 = vpop.xlane.xlu0 %4133
    %4135 = vmax.xlane.f32.xlu0 %v3534
    %v4136 = vpop.xlane.xlu0 %4135
    %4137 = vmax.xlane.f32.xlu0 %v3537
    %v4138 = vpop.xlane.xlu0 %4137
    %4139 = vmax.xlane.f32.xlu0 %v3542
    %v4140 = vpop.xlane.xlu0 %4139
    %4141 = vmax.xlane.f32.xlu0 %v3545
    %v4142 = vpop.xlane.xlu0 %4141
    %4143 = vmax.xlane.f32.xlu0 %v3550
    %v4144 = vpop.xlane.xlu0 %4143
    %4145 = vmax.xlane.f32.xlu0 %v3553
    %v4146 = vpop.xlane.xlu0 %4145
    %4147 = vmax.xlane.f32.xlu0 %v3558
    %v4148 = vpop.xlane.xlu0 %4147
    %4149 = vmax.xlane.f32.xlu0 %v3561
    %v4150 = vpop.xlane.xlu0 %4149
    %4151 = vmax.xlane.f32.xlu0 %v3566
    %v4152 = vpop.xlane.xlu0 %4151
    %4153 = vmax.xlane.f32.xlu0 %v3569
    %v4154 = vpop.xlane.xlu0 %4153
    %4155 = vmax.xlane.f32.xlu0 %v3574
    %v4156 = vpop.xlane.xlu0 %4155
    %4157 = vmax.xlane.f32.xlu0 %v3577
    %v4158 = vpop.xlane.xlu0 %4157
    %v4159 = vsub.f32 %v3518, %v4128
    %v4160 = vsub.f32 %v3521, %v4130
    %v4161 = vsub.f32 %v3526, %v4132
    %v4162 = vsub.f32 %v3529, %v4134
    %v4163 = vsub.f32 %v3534, %v4136
    %v4164 = vsub.f32 %v3537, %v4138
    %v4165 = vsub.f32 %v3542, %v4140
    %v4166 = vsub.f32 %v3545, %v4142
    %v4167 = vsub.f32 %v3550, %v4144
    %v4168 = vsub.f32 %v3553, %v4146
    %v4169 = vsub.f32 %v3558, %v4148
    %v4170 = vsub.f32 %v3561, %v4150
    %v4171 = vsub.f32 %v3566, %v4152
    %v4172 = vsub.f32 %v3569, %v4154
    %v4173 = vsub.f32 %v3574, %v4156
    %v4174 = vsub.f32 %v3577, %v4158
    %v4175 = vmul.f32 %v4159, 1.442695
    %v4176 = vpow.pop %v4175
    %v4177 = vmul.f32 %v4160, 1.442695
    %v4178 = vpow.pop %v4177
    %v4179 = vmul.f32 %v4161, 1.442695
    %v4180 = vpow.pop %v4179
    %v4181 = vmul.f32 %v4162, 1.442695
    %v4182 = vpow.pop %v4181
    %v4183 = vmul.f32 %v4163, 1.442695
    %v4184 = vpow.pop %v4183
    %v4185 = vmul.f32 %v4164, 1.442695
    %v4186 = vpow.pop %v4185
    %v4187 = vmul.f32 %v4165, 1.442695
    %v4188 = vpow.pop %v4187
    %v4189 = vmul.f32 %v4166, 1.442695
    %v4190 = vpow.pop %v4189
    %v4191 = vmul.f32 %v4167, 1.442695
    %v4192 = vpow.pop %v4191
    %v4193 = vmul.f32 %v4168, 1.442695
    %v4194 = vpow.pop %v4193
    %v4195 = vmul.f32 %v4169, 1.442695
    %v4196 = vpow.pop %v4195
    %v4197 = vmul.f32 %v4170, 1.442695
    %v4198 = vpow.pop %v4197
    %v4199 = vmul.f32 %v4171, 1.442695
    %v4200 = vpow.pop %v4199
    %v4201 = vmul.f32 %v4172, 1.442695
    %v4202 = vpow.pop %v4201
    %v4203 = vmul.f32 %v4173, 1.442695
    %v4204 = vpow.pop %v4203
    %v4205 = vmul.f32 %v4174, 1.442695
    %v4206 = vpow.pop %v4205
    %4207 = vadd.xlane.f32.xlu0 %v4176
    %v4208 = vpop.xlane.xlu0 %4207
    %4209 = vadd.xlane.f32.xlu0 %v4178
    %v4210 = vpop.xlane.xlu0 %4209
    %4211 = vadd.xlane.f32.xlu0 %v4180
    %v4212 = vpop.xlane.xlu0 %4211
    %4213 = vadd.xlane.f32.xlu0 %v4182
    %v4214 = vpop.xlane.xlu0 %4213
    %4215 = vadd.xlane.f32.xlu0 %v4184
    %v4216 = vpop.xlane.xlu0 %4215
    %4217 = vadd.xlane.f32.xlu0 %v4186
    %v4218 = vpop.xlane.xlu0 %4217
    %4219 = vadd.xlane.f32.xlu0 %v4188
    %v4220 = vpop.xlane.xlu0 %4219
    %4221 = vadd.xlane.f32.xlu0 %v4190
    %v4222 = vpop.xlane.xlu0 %4221
    %4223 = vadd.xlane.f32.xlu0 %v4192
    %v4224 = vpop.xlane.xlu0 %4223
    %4225 = vadd.xlane.f32.xlu0 %v4194
    %v4226 = vpop.xlane.xlu0 %4225
    %4227 = vadd.xlane.f32.xlu0 %v4196
    %v4228 = vpop.xlane.xlu0 %4227
    %4229 = vadd.xlane.f32.xlu0 %v4198
    %v4230 = vpop.xlane.xlu0 %4229
    %4231 = vadd.xlane.f32.xlu0 %v4200
    %v4232 = vpop.xlane.xlu0 %4231
    %4233 = vadd.xlane.f32.xlu0 %v4202
    %v4234 = vpop.xlane.xlu0 %4233
    %4235 = vadd.xlane.f32.xlu0 %v4204
    %v4236 = vpop.xlane.xlu0 %4235
    %4237 = vadd.xlane.f32.xlu0 %v4206
    %v4238 = vpop.xlane.xlu0 %4237
    %v4239 = vpack.c.bf16 %v4178, %v4176
    %v4240 = vpack.c.bf16 %v4182, %v4180
    %v4241 = vpack.c.bf16 %v4186, %v4184
    %v4242 = vpack.c.bf16 %v4190, %v4188
    %v4243 = vpack.c.bf16 %v4194, %v4192
    %v4244 = vpack.c.bf16 %v4198, %v4196
    %v4245 = vpack.c.bf16 %v4202, %v4200
    %v4246 = vpack.c.bf16 %v4206, %v4204
    %v4247 = vrcp.pop %v4208
    %v4248 = vrcp.pop %v4210
    %v4249 = vrcp.pop %v4212
    %v4250 = vrcp.pop %v4214
    %v4251 = vrcp.pop %v4216
    %v4252 = vrcp.pop %v4218
    %v4253 = vrcp.pop %v4220
    %v4254 = vrcp.pop %v4222
    %v4255 = vrcp.pop %v4224
    %v4256 = vrcp.pop %v4226
    %v4257 = vrcp.pop %v4228
    %v4258 = vrcp.pop %v4230
    %v4259 = vrcp.pop %v4232
    %v4260 = vrcp.pop %v4234
    %v4261 = vrcp.pop %v4236
    %v4262 = vrcp.pop %v4238
    %4263 = vmax.xlane.f32.xlu0 %v3711
    %v4264 = vpop.xlane.xlu0 %4263
    %4265 = vmax.xlane.f32.xlu0 %v3714
    %v4266 = vpop.xlane.xlu0 %4265
    %4267 = vmax.xlane.f32.xlu0 %v3719
    %v4268 = vpop.xlane.xlu0 %4267
    %4269 = vmax.xlane.f32.xlu0 %v3722
    %v4270 = vpop.xlane.xlu0 %4269
    %4271 = vmax.xlane.f32.xlu0 %v3727
    %v4272 = vpop.xlane.xlu0 %4271
    %4273 = vmax.xlane.f32.xlu0 %v3730
    %v4274 = vpop.xlane.xlu0 %4273
    %4275 = vmax.xlane.f32.xlu0 %v3735
    %v4276 = vpop.xlane.xlu0 %4275
    %4277 = vmax.xlane.f32.xlu0 %v3738
    %v4278 = vpop.xlane.xlu0 %4277
    %4279 = vmax.xlane.f32.xlu0 %v3743
    %v4280 = vpop.xlane.xlu0 %4279
    %4281 = vmax.xlane.f32.xlu0 %v3746
    %v4282 = vpop.xlane.xlu0 %4281
    %4283 = vmax.xlane.f32.xlu0 %v3751
    %v4284 = vpop.xlane.xlu0 %4283
    %4285 = vmax.xlane.f32.xlu0 %v3754
    %v4286 = vpop.xlane.xlu0 %4285
    %4287 = vmax.xlane.f32.xlu0 %v3759
    %v4288 = vpop.xlane.xlu0 %4287
    %4289 = vmax.xlane.f32.xlu0 %v3762
    %v4290 = vpop.xlane.xlu0 %4289
    %4291 = vmax.xlane.f32.xlu0 %v3767
    %v4292 = vpop.xlane.xlu0 %4291
    %4293 = vmax.xlane.f32.xlu0 %v3770
    %v4294 = vpop.xlane.xlu0 %4293
    %v4295 = vsub.f32 %v3711, %v4264
    %v4296 = vsub.f32 %v3714, %v4266
    %v4297 = vsub.f32 %v3719, %v4268
    %v4298 = vsub.f32 %v3722, %v4270
    %v4299 = vsub.f32 %v3727, %v4272
    %v4300 = vsub.f32 %v3730, %v4274
    %v4301 = vsub.f32 %v3735, %v4276
    %v4302 = vsub.f32 %v3738, %v4278
    %v4303 = vsub.f32 %v3743, %v4280
    %v4304 = vsub.f32 %v3746, %v4282
    %v4305 = vsub.f32 %v3751, %v4284
    %v4306 = vsub.f32 %v3754, %v4286
    %v4307 = vsub.f32 %v3759, %v4288
    %v4308 = vsub.f32 %v3762, %v4290
    %v4309 = vsub.f32 %v3767, %v4292
    %v4310 = vsub.f32 %v3770, %v4294
    %v4311 = vmul.f32 %v4295, 1.442695
    %v4312 = vpow.pop %v4311
    %v4313 = vmul.f32 %v4296, 1.442695
    %v4314 = vpow.pop %v4313
    %v4315 = vmul.f32 %v4297, 1.442695
    %v4316 = vpow.pop %v4315
    %v4317 = vmul.f32 %v4298, 1.442695
    %v4318 = vpow.pop %v4317
    %v4319 = vmul.f32 %v4299, 1.442695
    %v4320 = vpow.pop %v4319
    %v4321 = vmul.f32 %v4300, 1.442695
    %v4322 = vpow.pop %v4321
    %v4323 = vmul.f32 %v4301, 1.442695
    %v4324 = vpow.pop %v4323
    %v4325 = vmul.f32 %v4302, 1.442695
    %v4326 = vpow.pop %v4325
    %v4327 = vmul.f32 %v4303, 1.442695
    %v4328 = vpow.pop %v4327
    %v4329 = vmul.f32 %v4304, 1.442695
    %v4330 = vpow.pop %v4329
    %v4331 = vmul.f32 %v4305, 1.442695
    %v4332 = vpow.pop %v4331
    %v4333 = vmul.f32 %v4306, 1.442695
    %v4334 = vpow.pop %v4333
    %v4335 = vmul.f32 %v4307, 1.442695
    %v4336 = vpow.pop %v4335
    %v4337 = vmul.f32 %v4308, 1.442695
    %v4338 = vpow.pop %v4337
    %v4339 = vmul.f32 %v4309, 1.442695
    %v4340 = vpow.pop %v4339
    %v4341 = vmul.f32 %v4310, 1.442695
    %v4342 = vpow.pop %v4341
    %4343 = vadd.xlane.f32.xlu0 %v4312
    %v4344 = vpop.xlane.xlu0 %4343
    %4345 = vadd.xlane.f32.xlu0 %v4314
    %v4346 = vpop.xlane.xlu0 %4345
    %4347 = vadd.xlane.f32.xlu0 %v4316
    %v4348 = vpop.xlane.xlu0 %4347
    %4349 = vadd.xlane.f32.xlu0 %v4318
    %v4350 = vpop.xlane.xlu0 %4349
    %4351 = vadd.xlane.f32.xlu0 %v4320
    %v4352 = vpop.xlane.xlu0 %4351
    %4353 = vadd.xlane.f32.xlu0 %v4322
    %v4354 = vpop.xlane.xlu0 %4353
    %4355 = vadd.xlane.f32.xlu0 %v4324
    %v4356 = vpop.xlane.xlu0 %4355
    %4357 = vadd.xlane.f32.xlu0 %v4326
    %v4358 = vpop.xlane.xlu0 %4357
    %4359 = vadd.xlane.f32.xlu0 %v4328
    %v4360 = vpop.xlane.xlu0 %4359
    %4361 = vadd.xlane.f32.xlu0 %v4330
    %v4362 = vpop.xlane.xlu0 %4361
    %4363 = vadd.xlane.f32.xlu0 %v4332
    %v4364 = vpop.xlane.xlu0 %4363
    %4365 = vadd.xlane.f32.xlu0 %v4334
    %v4366 = vpop.xlane.xlu0 %4365
    %4367 = vadd.xlane.f32.xlu0 %v4336
    %v4368 = vpop.xlane.xlu0 %4367
    %4369 = vadd.xlane.f32.xlu0 %v4338
    %v4370 = vpop.xlane.xlu0 %4369
    %4371 = vadd.xlane.f32.xlu0 %v4340
    %v4372 = vpop.xlane.xlu0 %4371
    %4373 = vadd.xlane.f32.xlu0 %v4342
    %v4374 = vpop.xlane.xlu0 %4373
    %v4375 = vpack.c.bf16 %v4314, %v4312
    %v4376 = vpack.c.bf16 %v4318, %v4316
    %v4377 = vpack.c.bf16 %v4322, %v4320
    %v4378 = vpack.c.bf16 %v4326, %v4324
    %v4379 = vpack.c.bf16 %v4330, %v4328
    %v4380 = vpack.c.bf16 %v4334, %v4332
    %v4381 = vpack.c.bf16 %v4338, %v4336
    %v4382 = vpack.c.bf16 %v4342, %v4340
    %v4383 = vrcp.pop %v4344
    %v4384 = vrcp.pop %v4346
    %v4385 = vrcp.pop %v4348
    %v4386 = vrcp.pop %v4350
    %v4387 = vrcp.pop %v4352
    %v4388 = vrcp.pop %v4354
    %v4389 = vrcp.pop %v4356
    %v4390 = vrcp.pop %v4358
    %v4391 = vrcp.pop %v4360
    %v4392 = vrcp.pop %v4362
    %v4393 = vrcp.pop %v4364
    %v4394 = vrcp.pop %v4366
    %v4395 = vrcp.pop %v4368
    %v4396 = vrcp.pop %v4370
    %v4397 = vrcp.pop %v4372
    %v4398 = vrcp.pop %v4374
    %4399 = vmax.xlane.f32.xlu0 %v3888
    %v4400 = vpop.xlane.xlu0 %4399
    %4401 = vmax.xlane.f32.xlu0 %v3891
    %v4402 = vpop.xlane.xlu0 %4401
    %4403 = vmax.xlane.f32.xlu0 %v3896
    %v4404 = vpop.xlane.xlu0 %4403
    %4405 = vmax.xlane.f32.xlu0 %v3899
    %v4406 = vpop.xlane.xlu0 %4405
    %4407 = vmax.xlane.f32.xlu0 %v3904
    %v4408 = vpop.xlane.xlu0 %4407
    %4409 = vmax.xlane.f32.xlu0 %v3907
    %v4410 = vpop.xlane.xlu0 %4409
    %4411 = vmax.xlane.f32.xlu0 %v3912
    %v4412 = vpop.xlane.xlu0 %4411
    %4413 = vmax.xlane.f32.xlu0 %v3915
    %v4414 = vpop.xlane.xlu0 %4413
    %4415 = vmax.xlane.f32.xlu0 %v3920
    %v4416 = vpop.xlane.xlu0 %4415
    %4417 = vmax.xlane.f32.xlu0 %v3923
    %v4418 = vpop.xlane.xlu0 %4417
    %4419 = vmax.xlane.f32.xlu0 %v3928
    %v4420 = vpop.xlane.xlu0 %4419
    %4421 = vmax.xlane.f32.xlu0 %v3931
    %v4422 = vpop.xlane.xlu0 %4421
    %4423 = vmax.xlane.f32.xlu0 %v3936
    %v4424 = vpop.xlane.xlu0 %4423
    %4425 = vmax.xlane.f32.xlu0 %v3939
    %v4426 = vpop.xlane.xlu0 %4425
    %4427 = vmax.xlane.f32.xlu0 %v3944
    %v4428 = vpop.xlane.xlu0 %4427
    %4429 = vmax.xlane.f32.xlu0 %v3947
    %v4430 = vpop.xlane.xlu0 %4429
    %v4431 = vsub.f32 %v3888, %v4400
    %v4432 = vsub.f32 %v3891, %v4402
    %v4433 = vsub.f32 %v3896, %v4404
    %v4434 = vsub.f32 %v3899, %v4406
    %v4435 = vsub.f32 %v3904, %v4408
    %v4436 = vsub.f32 %v3907, %v4410
    %v4437 = vsub.f32 %v3912, %v4412
    %v4438 = vsub.f32 %v3915, %v4414
    %v4439 = vsub.f32 %v3920, %v4416
    %v4440 = vsub.f32 %v3923, %v4418
    %v4441 = vsub.f32 %v3928, %v4420
    %v4442 = vsub.f32 %v3931, %v4422
    %v4443 = vsub.f32 %v3936, %v4424
    %v4444 = vsub.f32 %v3939, %v4426
    %v4445 = vsub.f32 %v3944, %v4428
    %v4446 = vsub.f32 %v3947, %v4430
    %v4447 = vmul.f32 %v4431, 1.442695
    %v4448 = vpow.pop %v4447
    %v4449 = vmul.f32 %v4432, 1.442695
    %v4450 = vpow.pop %v4449
    %v4451 = vmul.f32 %v4433, 1.442695
    %v4452 = vpow.pop %v4451
    %v4453 = vmul.f32 %v4434, 1.442695
    %v4454 = vpow.pop %v4453
    %v4455 = vmul.f32 %v4435, 1.442695
    %v4456 = vpow.pop %v4455
    %v4457 = vmul.f32 %v4436, 1.442695
    %v4458 = vpow.pop %v4457
    %v4459 = vmul.f32 %v4437, 1.442695
    %v4460 = vpow.pop %v4459
    %v4461 = vmul.f32 %v4438, 1.442695
    %v4462 = vpow.pop %v4461
    %v4463 = vmul.f32 %v4439, 1.442695
    %v4464 = vpow.pop %v4463
    %v4465 = vmul.f32 %v4440, 1.442695
    %v4466 = vpow.pop %v4465
    %v4467 = vmul.f32 %v4441, 1.442695
    %v4468 = vpow.pop %v4467
    %v4469 = vmul.f32 %v4442, 1.442695
    %v4470 = vpow.pop %v4469
    %v4471 = vmul.f32 %v4443, 1.442695
    %v4472 = vpow.pop %v4471
    %v4473 = vmul.f32 %v4444, 1.442695
    %v4474 = vpow.pop %v4473
    %v4475 = vmul.f32 %v4445, 1.442695
    %v4476 = vpow.pop %v4475
    %v4477 = vmul.f32 %v4446, 1.442695
    %v4478 = vpow.pop %v4477
    %4479 = vadd.xlane.f32.xlu0 %v4448
    %v4480 = vpop.xlane.xlu0 %4479
    %4481 = vadd.xlane.f32.xlu0 %v4450
    %v4482 = vpop.xlane.xlu0 %4481
    %4483 = vadd.xlane.f32.xlu0 %v4452
    %v4484 = vpop.xlane.xlu0 %4483
    %4485 = vadd.xlane.f32.xlu0 %v4454
    %v4486 = vpop.xlane.xlu0 %4485
    %4487 = vadd.xlane.f32.xlu0 %v4456
    %v4488 = vpop.xlane.xlu0 %4487
    %4489 = vadd.xlane.f32.xlu0 %v4458
    %v4490 = vpop.xlane.xlu0 %4489
    %4491 = vadd.xlane.f32.xlu0 %v4460
    %v4492 = vpop.xlane.xlu0 %4491
    %4493 = vadd.xlane.f32.xlu0 %v4462
    %v4494 = vpop.xlane.xlu0 %4493
    %4495 = vadd.xlane.f32.xlu0 %v4464
    %v4496 = vpop.xlane.xlu0 %4495
    %4497 = vadd.xlane.f32.xlu0 %v4466
    %v4498 = vpop.xlane.xlu0 %4497
    %4499 = vadd.xlane.f32.xlu0 %v4468
    %v4500 = vpop.xlane.xlu0 %4499
    %4501 = vadd.xlane.f32.xlu0 %v4470
    %v4502 = vpop.xlane.xlu0 %4501
    %4503 = vadd.xlane.f32.xlu0 %v4472
    %v4504 = vpop.xlane.xlu0 %4503
    %4505 = vadd.xlane.f32.xlu0 %v4474
    %v4506 = vpop.xlane.xlu0 %4505
    %4507 = vadd.xlane.f32.xlu0 %v4476
    %v4508 = vpop.xlane.xlu0 %4507
    %4509 = vadd.xlane.f32.xlu0 %v4478
    %v4510 = vpop.xlane.xlu0 %4509
    %v4511 = vpack.c.bf16 %v4450, %v4448
    %v4512 = vpack.c.bf16 %v4454, %v4452
    %v4513 = vpack.c.bf16 %v4458, %v4456
    %v4514 = vpack.c.bf16 %v4462, %v4460
    %v4515 = vpack.c.bf16 %v4466, %v4464
    %v4516 = vpack.c.bf16 %v4470, %v4468
    %v4517 = vpack.c.bf16 %v4474, %v4472
    %v4518 = vpack.c.bf16 %v4478, %v4476
    %v4519 = vrcp.pop %v4480
    %v4520 = vrcp.pop %v4482
    %v4521 = vrcp.pop %v4484
    %v4522 = vrcp.pop %v4486
    %v4523 = vrcp.pop %v4488
    %v4524 = vrcp.pop %v4490
    %v4525 = vrcp.pop %v4492
    %v4526 = vrcp.pop %v4494
    %v4527 = vrcp.pop %v4496
    %v4528 = vrcp.pop %v4498
    %v4529 = vrcp.pop %v4500
    %v4530 = vrcp.pop %v4502
    %v4531 = vrcp.pop %v4504
    %v4532 = vrcp.pop %v4506
    %v4533 = vrcp.pop %v4508
    %v4534 = vrcp.pop %v4510
    %4535 = vmax.xlane.f32.xlu0 %v4065
    %v4536 = vpop.xlane.xlu0 %4535
    %4537 = vmax.xlane.f32.xlu0 %v4068
    %v4538 = vpop.xlane.xlu0 %4537
    %4539 = vmax.xlane.f32.xlu0 %v4073
    %v4540 = vpop.xlane.xlu0 %4539
    %4541 = vmax.xlane.f32.xlu0 %v4076
    %v4542 = vpop.xlane.xlu0 %4541
    %4543 = vmax.xlane.f32.xlu0 %v4081
    %v4544 = vpop.xlane.xlu0 %4543
    %4545 = vmax.xlane.f32.xlu0 %v4084
    %v4546 = vpop.xlane.xlu0 %4545
    %4547 = vmax.xlane.f32.xlu0 %v4089
    %v4548 = vpop.xlane.xlu0 %4547
    %4549 = vmax.xlane.f32.xlu0 %v4092
    %v4550 = vpop.xlane.xlu0 %4549
    %4551 = vmax.xlane.f32.xlu0 %v4097
    %v4552 = vpop.xlane.xlu0 %4551
    %4553 = vmax.xlane.f32.xlu0 %v4100
    %v4554 = vpop.xlane.xlu0 %4553
    %4555 = vmax.xlane.f32.xlu0 %v4105
    %v4556 = vpop.xlane.xlu0 %4555
    %4557 = vmax.xlane.f32.xlu0 %v4108
    %v4558 = vpop.xlane.xlu0 %4557
    %4559 = vmax.xlane.f32.xlu0 %v4113
    %v4560 = vpop.xlane.xlu0 %4559
    %4561 = vmax.xlane.f32.xlu0 %v4116
    %v4562 = vpop.xlane.xlu0 %4561
    %4563 = vmax.xlane.f32.xlu0 %v4121
    %v4564 = vpop.xlane.xlu0 %4563
    %4565 = vmax.xlane.f32.xlu0 %v4124
    %v4566 = vpop.xlane.xlu0 %4565
    %v4567 = vsub.f32 %v4065, %v4536
    %v4568 = vsub.f32 %v4068, %v4538
    %v4569 = vsub.f32 %v4073, %v4540
    %v4570 = vsub.f32 %v4076, %v4542
    %v4571 = vsub.f32 %v4081, %v4544
    %v4572 = vsub.f32 %v4084, %v4546
    %v4573 = vsub.f32 %v4089, %v4548
    %v4574 = vsub.f32 %v4092, %v4550
    %v4575 = vsub.f32 %v4097, %v4552
    %v4576 = vsub.f32 %v4100, %v4554
    %v4577 = vsub.f32 %v4105, %v4556
    %v4578 = vsub.f32 %v4108, %v4558
    %v4579 = vsub.f32 %v4113, %v4560
    %v4580 = vsub.f32 %v4116, %v4562
    %v4581 = vsub.f32 %v4121, %v4564
    %v4582 = vsub.f32 %v4124, %v4566
    %v4583 = vmul.f32 %v4567, 1.442695
    %v4584 = vpow.pop %v4583
    %v4585 = vmul.f32 %v4568, 1.442695
    %v4586 = vpow.pop %v4585
    %v4587 = vmul.f32 %v4569, 1.442695
    %v4588 = vpow.pop %v4587
    %v4589 = vmul.f32 %v4570, 1.442695
    %v4590 = vpow.pop %v4589
    %v4591 = vmul.f32 %v4571, 1.442695
    %v4592 = vpow.pop %v4591
    %v4593 = vmul.f32 %v4572, 1.442695
    %v4594 = vpow.pop %v4593
    %v4595 = vmul.f32 %v4573, 1.442695
    %v4596 = vpow.pop %v4595
    %v4597 = vmul.f32 %v4574, 1.442695
    %v4598 = vpow.pop %v4597
    %v4599 = vmul.f32 %v4575, 1.442695
    %v4600 = vpow.pop %v4599
    %v4601 = vmul.f32 %v4576, 1.442695
    %v4602 = vpow.pop %v4601
    %v4603 = vmul.f32 %v4577, 1.442695
    %v4604 = vpow.pop %v4603
    %v4605 = vmul.f32 %v4578, 1.442695
    %v4606 = vpow.pop %v4605
    %v4607 = vmul.f32 %v4579, 1.442695
    %v4608 = vpow.pop %v4607
    %v4609 = vmul.f32 %v4580, 1.442695
    %v4610 = vpow.pop %v4609
    %v4611 = vmul.f32 %v4581, 1.442695
    %v4612 = vpow.pop %v4611
    %v4613 = vmul.f32 %v4582, 1.442695
    %v4614 = vpow.pop %v4613
    %4615 = vadd.xlane.f32.xlu0 %v4584
    %v4616 = vpop.xlane.xlu0 %4615
    %4617 = vadd.xlane.f32.xlu0 %v4586
    %v4618 = vpop.xlane.xlu0 %4617
    %4619 = vadd.xlane.f32.xlu0 %v4588
    %v4620 = vpop.xlane.xlu0 %4619
    %4621 = vadd.xlane.f32.xlu0 %v4590
    %v4622 = vpop.xlane.xlu0 %4621
    %4623 = vadd.xlane.f32.xlu0 %v4592
    %v4624 = vpop.xlane.xlu0 %4623
    %4625 = vadd.xlane.f32.xlu0 %v4594
    %v4626 = vpop.xlane.xlu0 %4625
    %4627 = vadd.xlane.f32.xlu0 %v4596
    %v4628 = vpop.xlane.xlu0 %4627
    %4629 = vadd.xlane.f32.xlu0 %v4598
    %v4630 = vpop.xlane.xlu0 %4629
    %4631 = vadd.xlane.f32.xlu0 %v4600
    %v4632 = vpop.xlane.xlu0 %4631
    %4633 = vadd.xlane.f32.xlu0 %v4602
    %v4634 = vpop.xlane.xlu0 %4633
    %4635 = vadd.xlane.f32.xlu0 %v4604
    %v4636 = vpop.xlane.xlu0 %4635
    %4637 = vadd.xlane.f32.xlu0 %v4606
    %v4638 = vpop.xlane.xlu0 %4637
    %4639 = vadd.xlane.f32.xlu0 %v4608
    %v4640 = vpop.xlane.xlu0 %4639
    %4641 = vadd.xlane.f32.xlu0 %v4610
    %v4642 = vpop.xlane.xlu0 %4641
    %4643 = vadd.xlane.f32.xlu0 %v4612
    %v4644 = vpop.xlane.xlu0 %4643
    %4645 = vadd.xlane.f32.xlu0 %v4614
    %v4646 = vpop.xlane.xlu0 %4645
    %v4647 = vpack.c.bf16 %v4586, %v4584
    %v4648 = vpack.c.bf16 %v4590, %v4588
    %v4649 = vpack.c.bf16 %v4594, %v4592
    %v4650 = vpack.c.bf16 %v4598, %v4596
    %v4651 = vpack.c.bf16 %v4602, %v4600
    %v4652 = vpack.c.bf16 %v4606, %v4604
    %v4653 = vpack.c.bf16 %v4610, %v4608
    %v4654 = vpack.c.bf16 %v4614, %v4612
    %v4655 = vrcp.pop %v4616
    %v4656 = vrcp.pop %v4618
    %v4657 = vrcp.pop %v4620
    %v4658 = vrcp.pop %v4622
    %v4659 = vrcp.pop %v4624
    %v4660 = vrcp.pop %v4626
    %v4661 = vrcp.pop %v4628
    %v4662 = vrcp.pop %v4630
    %v4663 = vrcp.pop %v4632
    %v4664 = vrcp.pop %v4634
    %v4665 = vrcp.pop %v4636
    %v4666 = vrcp.pop %v4638
    %v4667 = vrcp.pop %v4640
    %v4668 = vrcp.pop %v4642
    %v4669 = vrcp.pop %v4644
    %v4670 = vrcp.pop %v4646
    %4671 = vmatprep.subr.bf16.mxu0 0
    %4672 = vmatpush1.bf16.msra.mxu0 %v908
    %4673 = vmatprep.subr.bf16.mxu0 0
    %4674 = vmatpush1.bf16.msra.mxu0 %v909
    %4675 = vmatprep.subr.bf16.mxu0 0
    %4676 = vmatpush1.bf16.msra.mxu0 %v910
    %4677 = vmatprep.subr.bf16.mxu0 0
    %4678 = vmatpush1.bf16.msra.mxu0 %v911
    %4679 = vmatprep.subr.bf16.mxu0 0
    %4680 = vmatpush1.bf16.msra.mxu0 %v912
    %4681 = vmatprep.subr.bf16.mxu0 0
    %4682 = vmatpush1.bf16.msra.mxu0 %v913
    %4683 = vmatprep.subr.bf16.mxu0 0
    %4684 = vmatpush1.bf16.msra.mxu0 %v914
    %4685 = vmatprep.subr.bf16.mxu0 0
    %4686 = vmatpush1.bf16.msra.mxu0 %v915
    %4687 = vmatprep.subr.bf16.mxu0 0
    %4688 = vmatpush1.bf16.msra.mxu0 0
    %4689 = vmatprep.subr.bf16.mxu0 0
    %4690 = vmatpush1.bf16.msra.mxu0 0
    %4691 = vmatprep.subr.bf16.mxu0 0
    %4692 = vmatpush1.bf16.msra.mxu0 0
    %4693 = vmatprep.subr.bf16.mxu0 0
    %4694 = vmatpush1.bf16.msra.mxu0 0
    %4695 = vmatprep.subr.bf16.mxu0 0
    %4696 = vmatpush1.bf16.msra.mxu0 0
    %4697 = vmatprep.subr.bf16.mxu0 0
    %4698 = vmatpush1.bf16.msra.mxu0 0
    %4699 = vmatprep.subr.bf16.mxu0 0
    %4700 = vmatpush1.bf16.msra.mxu0 0
    %4701 = vmatprep.subr.bf16.mxu0 0
    %4702 = vmatpush1.bf16.msra.mxu0 0
    %4703 = vmatprep.mubr.bf16.mxu0 0
    %4704 = vmatmul.mubr.bf16.gmra.mrb[0].mxu0 %v4239
    %v4705 = vpop.f32.mrb[0].mxu0
    %v4706 = vadd.f32 0.0, %v4705
    %v4707 = vpop.f32.mrb[0].mxu0
    %v4708 = vpop.f32.mrb[0].mxu0
    %v4709 = vadd.f32 0.0, %v4708
    %v4710 = vpop.f32.mrb[0].mxu0
    %4711 = vmatprep.mubr.bf16.mxu0 0
    %4712 = vmatmul.mubr.bf16.gmra.mrb[0].mxu0 %v4240
    %v4713 = vpop.f32.mrb[0].mxu0
    %v4714 = vadd.f32 0.0, %v4713
    %v4715 = vpop.f32.mrb[0].mxu0
    %v4716 = vpop.f32.mrb[0].mxu0
    %v4717 = vadd.f32 0.0, %v4716
    %v4718 = vpop.f32.mrb[0].mxu0
    %4719 = vmatprep.mubr.bf16.mxu0 0
    %4720 = vmatmul.mubr.bf16.gmra.mrb[0].mxu0 %v4241
    %v4721 = vpop.f32.mrb[0].mxu0
    %v4722 = vadd.f32 0.0, %v4721
    %v4723 = vpop.f32.mrb[0].mxu0
    %v4724 = vpop.f32.mrb[0].mxu0
    %v4725 = vadd.f32 0.0, %v4724
    %v4726 = vpop.f32.mrb[0].mxu0
    %4727 = vmatprep.mubr.bf16.mxu0 0
    %4728 = vmatmul.mubr.bf16.gmra.mrb[0].mxu0 %v4242
    %v4729 = vpop.f32.mrb[0].mxu0
    %v4730 = vadd.f32 0.0, %v4729
    %v4731 = vpop.f32.mrb[0].mxu0
    %v4732 = vpop.f32.mrb[0].mxu0
    %v4733 = vadd.f32 0.0, %v4732
    %v4734 = vpop.f32.mrb[0].mxu0
    %4735 = vmatprep.mubr.bf16.mxu0 0
    %4736 = vmatmul.mubr.bf16.gmra.mrb[0].mxu0 %v4243
    %v4737 = vpop.f32.mrb[0].mxu0
    %v4738 = vadd.f32 0.0, %v4737
    %v4739 = vpop.f32.mrb[0].mxu0
    %v4740 = vpop.f32.mrb[0].mxu0
    %v4741 = vadd.f32 0.0, %v4740
    %v4742 = vpop.f32.mrb[0].mxu0
    %4743 = vmatprep.mubr.bf16.mxu0 0
    %4744 = vmatmul.mubr.bf16.gmra.mrb[0].mxu0 %v4244
    %v4745 = vpop.f32.mrb[0].mxu0
    %v4746 = vadd.f32 0.0, %v4745
    %v4747 = vpop.f32.mrb[0].mxu0
    %v4748 = vpop.f32.mrb[0].mxu0
    %v4749 = vadd.f32 0.0, %v4748
    %v4750 = vpop.f32.mrb[0].mxu0
    %4751 = vmatprep.mubr.bf16.mxu0 0
    %4752 = vmatmul.mubr.bf16.gmra.mrb[0].mxu0 %v4245
    %v4753 = vpop.f32.mrb[0].mxu0
    %v4754 = vadd.f32 0.0, %v4753
    %v4755 = vpop.f32.mrb[0].mxu0
    %v4756 = vpop.f32.mrb[0].mxu0
    %v4757 = vadd.f32 0.0, %v4756
    %v4758 = vpop.f32.mrb[0].mxu0
    %4759 = vmatprep.mubr.bf16.mxu0 0
    %4760 = vmatmul.mubr.bf16.gmra.mrb[0].mxu0 %v4246
    %v4761 = vpop.f32.mrb[0].mxu0
    %v4762 = vadd.f32 0.0, %v4761
    %v4763 = vpop.f32.mrb[0].mxu0
    %v4764 = vpop.f32.mrb[0].mxu0
    %v4765 = vadd.f32 0.0, %v4764
    %v4766 = vpop.f32.mrb[0].mxu0
    %4767 = vdwg.mxu0
    %v4768 = vmul.f32 %v4706, %v4247
    %v4769 = vmul.f32 %v4709, %v4248
    %v4770 = vmul.f32 %v4714, %v4249
    %v4771 = vmul.f32 %v4717, %v4250
    %v4772 = vmul.f32 %v4722, %v4251
    %v4773 = vmul.f32 %v4725, %v4252
    %v4774 = vmul.f32 %v4730, %v4253
    %v4775 = vmul.f32 %v4733, %v4254
    %v4776 = vmul.f32 %v4738, %v4255
    %v4777 = vmul.f32 %v4741, %v4256
    %v4778 = vmul.f32 %v4746, %v4257
    %v4779 = vmul.f32 %v4749, %v4258
    %v4780 = vmul.f32 %v4754, %v4259
    %v4781 = vmul.f32 %v4757, %v4260
    %v4782 = vmul.f32 %v4762, %v4261
    %v4783 = vmul.f32 %v4765, %v4262
    %v4784 = vpack.c.bf16 %v4769, %v4768
    %v4785 = vpack.c.bf16 %v4771, %v4770
    %v4786 = vpack.c.bf16 %v4773, %v4772
    %v4787 = vpack.c.bf16 %v4775, %v4774
    %v4788 = vpack.c.bf16 %v4777, %v4776
    %v4789 = vpack.c.bf16 %v4779, %v4778
    %v4790 = vpack.c.bf16 %v4781, %v4780
    %v4791 = vpack.c.bf16 %v4783, %v4782
    %4800 = vrot.lane.b32.xlu0 %v908, 96
    %v4801 = vpop.permute.xlu0 %4800
    %4802 = vrot.lane.b32.xlu0 %v909, 96
    %v4803 = vpop.permute.xlu0 %4802
    %4804 = vrot.lane.b32.xlu0 %v910, 96
    %v4805 = vpop.permute.xlu0 %4804
    %4806 = vrot.lane.b32.xlu0 %v911, 96
    %v4807 = vpop.permute.xlu0 %4806
    %4808 = vrot.lane.b32.xlu0 %v912, 96
    %v4809 = vpop.permute.xlu0 %4808
    %4810 = vrot.lane.b32.xlu0 %v913, 96
    %v4811 = vpop.permute.xlu0 %4810
    %4812 = vrot.lane.b32.xlu0 %v914, 96
    %v4813 = vpop.permute.xlu0 %4812
    %4814 = vrot.lane.b32.xlu0 %v915, 96
    %v4815 = vpop.permute.xlu0 %4814
    %4824 = vmatprep.subr.bf16.mxu0 0
    %4825 = vmatpush1.bf16.msra.mxu0 %v4801
    %4826 = vmatprep.subr.bf16.mxu0 0
    %4827 = vmatpush1.bf16.msra.mxu0 %v4803
    %4828 = vmatprep.subr.bf16.mxu0 0
    %4829 = vmatpush1.bf16.msra.mxu0 %v4805
    %4830 = vmatprep.subr.bf16.mxu0 0
    %4831 = vmatpush1.bf16.msra.mxu0 %v4807
    %4832 = vmatprep.subr.bf16.mxu0 0
    %4833 = vmatpush1.bf16.msra.mxu0 %v4809
    %4834 = vmatprep.subr.bf16.mxu0 0
    %4835 = vmatpush1.bf16.msra.mxu0 %v4811
    %4836 = vmatprep.subr.bf16.mxu0 0
    %4837 = vmatpush1.bf16.msra.mxu0 %v4813
    %4838 = vmatprep.subr.bf16.mxu0 0
    %4839 = vmatpush1.bf16.msra.mxu0 %v4815
    %4840 = vmatprep.subr.bf16.mxu0 0
    %4841 = vmatpush1.bf16.msra.mxu0 0
    %4842 = vmatprep.subr.bf16.mxu0 0
    %4843 = vmatpush1.bf16.msra.mxu0 0
    %4844 = vmatprep.subr.bf16.mxu0 0
    %4845 = vmatpush1.bf16.msra.mxu0 0
    %4846 = vmatprep.subr.bf16.mxu0 0
    %4847 = vmatpush1.bf16.msra.mxu0 0
    %4848 = vmatprep.subr.bf16.mxu0 0
    %4849 = vmatpush1.bf16.msra.mxu0 0
    %4850 = vmatprep.subr.bf16.mxu0 0
    %4851 = vmatpush1.bf16.msra.mxu0 0
    %4852 = vmatprep.subr.bf16.mxu0 0
    %4853 = vmatpush1.bf16.msra.mxu0 0
    %4854 = vmatprep.subr.bf16.mxu0 0
    %4855 = vmatpush1.bf16.msra.mxu0 0
    %4856 = vmatprep.mubr.bf16.mxu0 0
    %4857 = vmatmul.mubr.bf16.gmra.mrb[0].mxu0 %v4375
    %v4858 = vpop.f32.mrb[0].mxu0
    %v4859 = vadd.f32 0.0, %v4858
    %v4860 = vpop.f32.mrb[0].mxu0
    %v4861 = vpop.f32.mrb[0].mxu0
    %v4862 = vadd.f32 0.0, %v4861
    %v4863 = vpop.f32.mrb[0].mxu0
    %4864 = vmatprep.mubr.bf16.mxu0 0
    %4865 = vmatmul.mubr.bf16.gmra.mrb[0].mxu0 %v4376
    %v4866 = vpop.f32.mrb[0].mxu0
    %v4867 = vadd.f32 0.0, %v4866
    %v4868 = vpop.f32.mrb[0].mxu0
    %v4869 = vpop.f32.mrb[0].mxu0
    %v4870 = vadd.f32 0.0, %v4869
    %v4871 = vpop.f32.mrb[0].mxu0
    %4872 = vmatprep.mubr.bf16.mxu0 0
    %4873 = vmatmul.mubr.bf16.gmra.mrb[0].mxu0 %v4377
    %v4874 = vpop.f32.mrb[0].mxu0
    %v4875 = vadd.f32 0.0, %v4874
    %v4876 = vpop.f32.mrb[0].mxu0
    %v4877 = vpop.f32.mrb[0].mxu0
    %v4878 = vadd.f32 0.0, %v4877
    %v4879 = vpop.f32.mrb[0].mxu0
    %4880 = vmatprep.mubr.bf16.mxu0 0
    %4881 = vmatmul.mubr.bf16.gmra.mrb[0].mxu0 %v4378
    %v4882 = vpop.f32.mrb[0].mxu0
    %v4883 = vadd.f32 0.0, %v4882
    %v4884 = vpop.f32.mrb[0].mxu0
    %v4885 = vpop.f32.mrb[0].mxu0
    %v4886 = vadd.f32 0.0, %v4885
    %v4887 = vpop.f32.mrb[0].mxu0
    %4888 = vmatprep.mubr.bf16.mxu0 0
    %4889 = vmatmul.mubr.bf16.gmra.mrb[0].mxu0 %v4379
    %v4890 = vpop.f32.mrb[0].mxu0
    %v4891 = vadd.f32 0.0, %v4890
    %v4892 = vpop.f32.mrb[0].mxu0
    %v4893 = vpop.f32.mrb[0].mxu0
    %v4894 = vadd.f32 0.0, %v4893
    %v4895 = vpop.f32.mrb[0].mxu0
    %4896 = vmatprep.mubr.bf16.mxu0 0
    %4897 = vmatmul.mubr.bf16.gmra.mrb[0].mxu0 %v4380
    %v4898 = vpop.f32.mrb[0].mxu0
    %v4899 = vadd.f32 0.0, %v4898
    %v4900 = vpop.f32.mrb[0].mxu0
    %v4901 = vpop.f32.mrb[0].mxu0
    %v4902 = vadd.f32 0.0, %v4901
    %v4903 = vpop.f32.mrb[0].mxu0
    %4904 = vmatprep.mubr.bf16.mxu0 0
    %4905 = vmatmul.mubr.bf16.gmra.mrb[0].mxu0 %v4381
    %v4906 = vpop.f32.mrb[0].mxu0
    %v4907 = vadd.f32 0.0, %v4906
    %v4908 = vpop.f32.mrb[0].mxu0
    %v4909 = vpop.f32.mrb[0].mxu0
    %v4910 = vadd.f32 0.0, %v4909
    %v4911 = vpop.f32.mrb[0].mxu0
    %4912 = vmatprep.mubr.bf16.mxu0 0
    %4913 = vmatmul.mubr.bf16.gmra.mrb[0].mxu0 %v4382
    %v4914 = vpop.f32.mrb[0].mxu0
    %v4915 = vadd.f32 0.0, %v4914
    %v4916 = vpop.f32.mrb[0].mxu0
    %v4917 = vpop.f32.mrb[0].mxu0
    %v4918 = vadd.f32 0.0, %v4917
    %v4919 = vpop.f32.mrb[0].mxu0
    %4920 = vdwg.mxu0
    %v4921 = vmul.f32 %v4859, %v4383
    %v4922 = vmul.f32 %v4862, %v4384
    %v4923 = vmul.f32 %v4867, %v4385
    %v4924 = vmul.f32 %v4870, %v4386
    %v4925 = vmul.f32 %v4875, %v4387
    %v4926 = vmul.f32 %v4878, %v4388
    %v4927 = vmul.f32 %v4883, %v4389
    %v4928 = vmul.f32 %v4886, %v4390
    %v4929 = vmul.f32 %v4891, %v4391
    %v4930 = vmul.f32 %v4894, %v4392
    %v4931 = vmul.f32 %v4899, %v4393
    %v4932 = vmul.f32 %v4902, %v4394
    %v4933 = vmul.f32 %v4907, %v4395
    %v4934 = vmul.f32 %v4910, %v4396
    %v4935 = vmul.f32 %v4915, %v4397
    %v4936 = vmul.f32 %v4918, %v4398
    %v4937 = vpack.c.bf16 %v4922, %v4921
    %v4938 = vpack.c.bf16 %v4924, %v4923
    %v4939 = vpack.c.bf16 %v4926, %v4925
    %v4940 = vpack.c.bf16 %v4928, %v4927
    %v4941 = vpack.c.bf16 %v4930, %v4929
    %v4942 = vpack.c.bf16 %v4932, %v4931
    %v4943 = vpack.c.bf16 %v4934, %v4933
    %v4944 = vpack.c.bf16 %v4936, %v4935
    %v4946 = vsel %vm991, %v4937, 0
    %v4949 = vsel %vm991, %v4938, 0
    %v4952 = vsel %vm991, %v4939, 0
    %v4955 = vsel %vm991, %v4940, 0
    %v4958 = vsel %vm991, %v4941, 0
    %v4961 = vsel %vm991, %v4942, 0
    %v4964 = vsel %vm991, %v4943, 0
    %v4967 = vsel %vm991, %v4944, 0
    %4969 = vmatprep.subr.bf16.mxu0 0
    %4970 = vmatpush1.bf16.msra.mxu0 %v2510
    %4971 = vmatprep.subr.bf16.mxu0 0
    %4972 = vmatpush1.bf16.msra.mxu0 %v2511
    %4973 = vmatprep.subr.bf16.mxu0 0
    %4974 = vmatpush1.bf16.msra.mxu0 0
    %4975 = vmatprep.subr.bf16.mxu0 0
    %4976 = vmatpush1.bf16.msra.mxu0 0
    %4977 = vmatprep.subr.bf16.mxu0 0
    %4978 = vmatpush1.bf16.msra.mxu0 0
    %4979 = vmatprep.subr.bf16.mxu0 0
    %4980 = vmatpush1.bf16.msra.mxu0 0
    %4981 = vmatprep.subr.bf16.mxu0 0
    %4982 = vmatpush1.bf16.msra.mxu0 0
    %4983 = vmatprep.subr.bf16.mxu0 0
    %4984 = vmatpush1.bf16.msra.mxu0 0
    %4985 = vmatprep.subr.bf16.mxu0 0
    %4986 = vmatpush1.bf16.msra.mxu0 0
    %4987 = vmatprep.subr.bf16.mxu0 0
    %4988 = vmatpush1.bf16.msra.mxu0 0
    %4989 = vmatprep.subr.bf16.mxu0 0
    %4990 = vmatpush1.bf16.msra.mxu0 0
    %4991 = vmatprep.subr.bf16.mxu0 0
    %4992 = vmatpush1.bf16.msra.mxu0 0
    %4993 = vmatprep.subr.bf16.mxu0 0
    %4994 = vmatpush1.bf16.msra.mxu0 0
    %4995 = vmatprep.subr.bf16.mxu0 0
    %4996 = vmatpush1.bf16.msra.mxu0 0
    %4997 = vmatprep.subr.bf16.mxu0 0
    %4998 = vmatpush1.bf16.msra.mxu0 0
    %4999 = vmatprep.subr.bf16.mxu0 0
    %5000 = vmatpush1.bf16.msra.mxu0 0
    %5001 = vmatprep.mubr.bf16.mxu0 0
    %5002 = vmatmul.mubr.bf16.gmra.mrb[0].mxu0 %v4946
    %v5003 = vpop.f32.mrb[0].mxu0
    %v5004 = vadd.f32 0.0, %v5003
    %v5005 = vpop.f32.mrb[0].mxu0
    %v5006 = vpop.f32.mrb[0].mxu0
    %v5007 = vadd.f32 0.0, %v5006
    %v5008 = vpop.f32.mrb[0].mxu0
    %5009 = vmatprep.mubr.bf16.mxu0 0
    %5010 = vmatmul.mubr.bf16.gmra.mrb[0].mxu0 %v4949
    %v5011 = vpop.f32.mrb[0].mxu0
    %v5012 = vadd.f32 0.0, %v5011
    %v5013 = vpop.f32.mrb[0].mxu0
    %v5014 = vpop.f32.mrb[0].mxu0
    %v5015 = vadd.f32 0.0, %v5014
    %v5016 = vpop.f32.mrb[0].mxu0
    %5017 = vmatprep.mubr.bf16.mxu0 0
    %5018 = vmatmul.mubr.bf16.gmra.mrb[0].mxu0 %v4952
    %v5019 = vpop.f32.mrb[0].mxu0
    %v5020 = vadd.f32 0.0, %v5019
    %v5021 = vpop.f32.mrb[0].mxu0
    %v5022 = vpop.f32.mrb[0].mxu0
    %v5023 = vadd.f32 0.0, %v5022
    %v5024 = vpop.f32.mrb[0].mxu0
    %5025 = vmatprep.mubr.bf16.mxu0 0
    %5026 = vmatmul.mubr.bf16.gmra.mrb[0].mxu0 %v4955
    %v5027 = vpop.f32.mrb[0].mxu0
    %v5028 = vadd.f32 0.0, %v5027
    %v5029 = vpop.f32.mrb[0].mxu0
    %v5030 = vpop.f32.mrb[0].mxu0
    %v5031 = vadd.f32 0.0, %v5030
    %v5032 = vpop.f32.mrb[0].mxu0
    %5033 = vmatprep.mubr.bf16.mxu0 0
    %5034 = vmatmul.mubr.bf16.gmra.mrb[0].mxu0 %v4958
    %v5035 = vpop.f32.mrb[0].mxu0
    %v5036 = vadd.f32 0.0, %v5035
    %v5037 = vpop.f32.mrb[0].mxu0
    %v5038 = vpop.f32.mrb[0].mxu0
    %v5039 = vadd.f32 0.0, %v5038
    %v5040 = vpop.f32.mrb[0].mxu0
    %5041 = vmatprep.mubr.bf16.mxu0 0
    %5042 = vmatmul.mubr.bf16.gmra.mrb[0].mxu0 %v4961
    %v5043 = vpop.f32.mrb[0].mxu0
    %v5044 = vadd.f32 0.0, %v5043
    %v5045 = vpop.f32.mrb[0].mxu0
    %v5046 = vpop.f32.mrb[0].mxu0
    %v5047 = vadd.f32 0.0, %v5046
    %v5048 = vpop.f32.mrb[0].mxu0
    %5049 = vmatprep.mubr.bf16.mxu0 0
    %5050 = vmatmul.mubr.bf16.gmra.mrb[0].mxu0 %v4964
    %v5051 = vpop.f32.mrb[0].mxu0
    %v5052 = vadd.f32 0.0, %v5051
    %v5053 = vpop.f32.mrb[0].mxu0
    %v5054 = vpop.f32.mrb[0].mxu0
    %v5055 = vadd.f32 0.0, %v5054
    %v5056 = vpop.f32.mrb[0].mxu0
    %5057 = vmatprep.mubr.bf16.mxu0 0
    %5058 = vmatmul.mubr.bf16.gmra.mrb[0].mxu0 %v4967
    %v5059 = vpop.f32.mrb[0].mxu0
    %v5060 = vadd.f32 0.0, %v5059
    %v5061 = vpop.f32.mrb[0].mxu0
    %v5062 = vpop.f32.mrb[0].mxu0
    %v5063 = vadd.f32 0.0, %v5062
    %v5064 = vpop.f32.mrb[0].mxu0
    %5065 = vdwg.mxu0
    %v5067 = vsel %vm991, %v4784, 0
    %v5070 = vsel %vm991, %v4785, 0
    %v5073 = vsel %vm991, %v4786, 0
    %v5076 = vsel %vm991, %v4787, 0
    %v5079 = vsel %vm991, %v4788, 0
    %v5082 = vsel %vm991, %v4789, 0
    %v5085 = vsel %vm991, %v4790, 0
    %v5088 = vsel %vm991, %v4791, 0
    %5090 = vmatprep.subr.bf16.mxu0 0
    %5091 = vmatpush1.bf16.msra.mxu0 %v2643
    %5092 = vmatprep.subr.bf16.mxu0 0
    %5093 = vmatpush1.bf16.msra.mxu0 %v2644
    %5094 = vmatprep.subr.bf16.mxu0 0
    %5095 = vmatpush1.bf16.msra.mxu0 0
    %5096 = vmatprep.subr.bf16.mxu0 0
    %5097 = vmatpush1.bf16.msra.mxu0 0
    %5098 = vmatprep.subr.bf16.mxu0 0
    %5099 = vmatpush1.bf16.msra.mxu0 0
    %5100 = vmatprep.subr.bf16.mxu0 0
    %5101 = vmatpush1.bf16.msra.mxu0 0
    %5102 = vmatprep.subr.bf16.mxu0 0
    %5103 = vmatpush1.bf16.msra.mxu0 0
    %5104 = vmatprep.subr.bf16.mxu0 0
    %5105 = vmatpush1.bf16.msra.mxu0 0
    %5106 = vmatprep.subr.bf16.mxu0 0
    %5107 = vmatpush1.bf16.msra.mxu0 0
    %5108 = vmatprep.subr.bf16.mxu0 0
    %5109 = vmatpush1.bf16.msra.mxu0 0
    %5110 = vmatprep.subr.bf16.mxu0 0
    %5111 = vmatpush1.bf16.msra.mxu0 0
    %5112 = vmatprep.subr.bf16.mxu0 0
    %5113 = vmatpush1.bf16.msra.mxu0 0
    %5114 = vmatprep.subr.bf16.mxu0 0
    %5115 = vmatpush1.bf16.msra.mxu0 0
    %5116 = vmatprep.subr.bf16.mxu0 0
    %5117 = vmatpush1.bf16.msra.mxu0 0
    %5118 = vmatprep.subr.bf16.mxu0 0
    %5119 = vmatpush1.bf16.msra.mxu0 0
    %5120 = vmatprep.subr.bf16.mxu0 0
    %5121 = vmatpush1.bf16.msra.mxu0 0
    %5122 = vmatprep.mubr.bf16.mxu0 0
    %5123 = vmatmul.mubr.bf16.gmra.mrb[0].mxu0 %v5067
    %v5124 = vpop.f32.mrb[0].mxu0
    %v5125 = vadd.f32 %v5004, %v5124
    %v5126 = vpop.f32.mrb[0].mxu0
    %v5127 = vpop.f32.mrb[0].mxu0
    %v5128 = vadd.f32 %v5007, %v5127
    %v5129 = vpop.f32.mrb[0].mxu0
    %5130 = vmatprep.mubr.bf16.mxu0 0
    %5131 = vmatmul.mubr.bf16.gmra.mrb[0].mxu0 %v5070
    %v5132 = vpop.f32.mrb[0].mxu0
    %v5133 = vadd.f32 %v5012, %v5132
    %v5134 = vpop.f32.mrb[0].mxu0
    %v5135 = vpop.f32.mrb[0].mxu0
    %v5136 = vadd.f32 %v5015, %v5135
    %v5137 = vpop.f32.mrb[0].mxu0
    %5138 = vmatprep.mubr.bf16.mxu0 0
    %5139 = vmatmul.mubr.bf16.gmra.mrb[0].mxu0 %v5073
    %v5140 = vpop.f32.mrb[0].mxu0
    %v5141 = vadd.f32 %v5020, %v5140
    %v5142 = vpop.f32.mrb[0].mxu0
    %v5143 = vpop.f32.mrb[0].mxu0
    %v5144 = vadd.f32 %v5023, %v5143
    %v5145 = vpop.f32.mrb[0].mxu0
    %5146 = vmatprep.mubr.bf16.mxu0 0
    %5147 = vmatmul.mubr.bf16.gmra.mrb[0].mxu0 %v5076
    %v5148 = vpop.f32.mrb[0].mxu0
    %v5149 = vadd.f32 %v5028, %v5148
    %v5150 = vpop.f32.mrb[0].mxu0
    %v5151 = vpop.f32.mrb[0].mxu0
    %v5152 = vadd.f32 %v5031, %v5151
    %v5153 = vpop.f32.mrb[0].mxu0
    %5154 = vmatprep.mubr.bf16.mxu0 0
    %5155 = vmatmul.mubr.bf16.gmra.mrb[0].mxu0 %v5079
    %v5156 = vpop.f32.mrb[0].mxu0
    %v5157 = vadd.f32 %v5036, %v5156
    %v5158 = vpop.f32.mrb[0].mxu0
    %v5159 = vpop.f32.mrb[0].mxu0
    %v5160 = vadd.f32 %v5039, %v5159
    %v5161 = vpop.f32.mrb[0].mxu0
    %5162 = vmatprep.mubr.bf16.mxu0 0
    %5163 = vmatmul.mubr.bf16.gmra.mrb[0].mxu0 %v5082
    %v5164 = vpop.f32.mrb[0].mxu0
    %v5165 = vadd.f32 %v5044, %v5164
    %v5166 = vpop.f32.mrb[0].mxu0
    %v5167 = vpop.f32.mrb[0].mxu0
    %v5168 = vadd.f32 %v5047, %v5167
    %v5169 = vpop.f32.mrb[0].mxu0
    %5170 = vmatprep.mubr.bf16.mxu0 0
    %5171 = vmatmul.mubr.bf16.gmra.mrb[0].mxu0 %v5085
    %v5172 = vpop.f32.mrb[0].mxu0
    %v5173 = vadd.f32 %v5052, %v5172
    %v5174 = vpop.f32.mrb[0].mxu0
    %v5175 = vpop.f32.mrb[0].mxu0
    %v5176 = vadd.f32 %v5055, %v5175
    %v5177 = vpop.f32.mrb[0].mxu0
    %5178 = vmatprep.mubr.bf16.mxu0 0
    %5179 = vmatmul.mubr.bf16.gmra.mrb[0].mxu0 %v5088
    %v5180 = vpop.f32.mrb[0].mxu0
    %v5181 = vadd.f32 %v5060, %v5180
    %v5182 = vpop.f32.mrb[0].mxu0
    %v5183 = vpop.f32.mrb[0].mxu0
    %v5184 = vadd.f32 %v5063, %v5183
    %v5185 = vpop.f32.mrb[0].mxu0
    %5186 = vdwg.mxu0
    %5187 = vrot.lane.b32.xlu0 %v908, 64
    %v5188 = vpop.permute.xlu0 %5187
    %5189 = vrot.lane.b32.xlu0 %v909, 64
    %v5190 = vpop.permute.xlu0 %5189
    %5191 = vrot.lane.b32.xlu0 %v910, 64
    %v5192 = vpop.permute.xlu0 %5191
    %5193 = vrot.lane.b32.xlu0 %v911, 64
    %v5194 = vpop.permute.xlu0 %5193
    %5195 = vrot.lane.b32.xlu0 %v912, 64
    %v5196 = vpop.permute.xlu0 %5195
    %5197 = vrot.lane.b32.xlu0 %v913, 64
    %v5198 = vpop.permute.xlu0 %5197
    %5199 = vrot.lane.b32.xlu0 %v914, 64
    %v5200 = vpop.permute.xlu0 %5199
    %5201 = vrot.lane.b32.xlu0 %v915, 64
    %v5202 = vpop.permute.xlu0 %5201
    %5211 = vmatprep.subr.bf16.mxu0 0
    %5212 = vmatpush1.bf16.msra.mxu0 %v5188
    %5213 = vmatprep.subr.bf16.mxu0 0
    %5214 = vmatpush1.bf16.msra.mxu0 %v5190
    %5215 = vmatprep.subr.bf16.mxu0 0
    %5216 = vmatpush1.bf16.msra.mxu0 %v5192
    %5217 = vmatprep.subr.bf16.mxu0 0
    %5218 = vmatpush1.bf16.msra.mxu0 %v5194
    %5219 = vmatprep.subr.bf16.mxu0 0
    %5220 = vmatpush1.bf16.msra.mxu0 %v5196
    %5221 = vmatprep.subr.bf16.mxu0 0
    %5222 = vmatpush1.bf16.msra.mxu0 %v5198
    %5223 = vmatprep.subr.bf16.mxu0 0
    %5224 = vmatpush1.bf16.msra.mxu0 %v5200
    %5225 = vmatprep.subr.bf16.mxu0 0
    %5226 = vmatpush1.bf16.msra.mxu0 %v5202
    %5227 = vmatprep.subr.bf16.mxu0 0
    %5228 = vmatpush1.bf16.msra.mxu0 0
    %5229 = vmatprep.subr.bf16.mxu0 0
    %5230 = vmatpush1.bf16.msra.mxu0 0
    %5231 = vmatprep.subr.bf16.mxu0 0
    %5232 = vmatpush1.bf16.msra.mxu0 0
    %5233 = vmatprep.subr.bf16.mxu0 0
    %5234 = vmatpush1.bf16.msra.mxu0 0
    %5235 = vmatprep.subr.bf16.mxu0 0
    %5236 = vmatpush1.bf16.msra.mxu0 0
    %5237 = vmatprep.subr.bf16.mxu0 0
    %5238 = vmatpush1.bf16.msra.mxu0 0
    %5239 = vmatprep.subr.bf16.mxu0 0
    %5240 = vmatpush1.bf16.msra.mxu0 0
    %5241 = vmatprep.subr.bf16.mxu0 0
    %5242 = vmatpush1.bf16.msra.mxu0 0
    %5243 = vmatprep.mubr.bf16.mxu0 0
    %5244 = vmatmul.mubr.bf16.gmra.mrb[0].mxu0 %v4511
    %v5245 = vpop.f32.mrb[0].mxu0
    %v5246 = vadd.f32 0.0, %v5245
    %v5247 = vpop.f32.mrb[0].mxu0
    %v5248 = vpop.f32.mrb[0].mxu0
    %v5249 = vadd.f32 0.0, %v5248
    %v5250 = vpop.f32.mrb[0].mxu0
    %5251 = vmatprep.mubr.bf16.mxu0 0
    %5252 = vmatmul.mubr.bf16.gmra.mrb[0].mxu0 %v4512
    %v5253 = vpop.f32.mrb[0].mxu0
    %v5254 = vadd.f32 0.0, %v5253
    %v5255 = vpop.f32.mrb[0].mxu0
    %v5256 = vpop.f32.mrb[0].mxu0
    %v5257 = vadd.f32 0.0, %v5256
    %v5258 = vpop.f32.mrb[0].mxu0
    %5259 = vmatprep.mubr.bf16.mxu0 0
    %5260 = vmatmul.mubr.bf16.gmra.mrb[0].mxu0 %v4513
    %v5261 = vpop.f32.mrb[0].mxu0
    %v5262 = vadd.f32 0.0, %v5261
    %v5263 = vpop.f32.mrb[0].mxu0
    %v5264 = vpop.f32.mrb[0].mxu0
    %v5265 = vadd.f32 0.0, %v5264
    %v5266 = vpop.f32.mrb[0].mxu0
    %5267 = vmatprep.mubr.bf16.mxu0 0
    %5268 = vmatmul.mubr.bf16.gmra.mrb[0].mxu0 %v4514
    %v5269 = vpop.f32.mrb[0].mxu0
    %v5270 = vadd.f32 0.0, %v5269
    %v5271 = vpop.f32.mrb[0].mxu0
    %v5272 = vpop.f32.mrb[0].mxu0
    %v5273 = vadd.f32 0.0, %v5272
    %v5274 = vpop.f32.mrb[0].mxu0
    %5275 = vmatprep.mubr.bf16.mxu0 0
    %5276 = vmatmul.mubr.bf16.gmra.mrb[0].mxu0 %v4515
    %v5277 = vpop.f32.mrb[0].mxu0
    %v5278 = vadd.f32 0.0, %v5277
    %v5279 = vpop.f32.mrb[0].mxu0
    %v5280 = vpop.f32.mrb[0].mxu0
    %v5281 = vadd.f32 0.0, %v5280
    %v5282 = vpop.f32.mrb[0].mxu0
    %5283 = vmatprep.mubr.bf16.mxu0 0
    %5284 = vmatmul.mubr.bf16.gmra.mrb[0].mxu0 %v4516
    %v5285 = vpop.f32.mrb[0].mxu0
    %v5286 = vadd.f32 0.0, %v5285
    %v5287 = vpop.f32.mrb[0].mxu0
    %v5288 = vpop.f32.mrb[0].mxu0
    %v5289 = vadd.f32 0.0, %v5288
    %v5290 = vpop.f32.mrb[0].mxu0
    %5291 = vmatprep.mubr.bf16.mxu0 0
    %5292 = vmatmul.mubr.bf16.gmra.mrb[0].mxu0 %v4517
    %v5293 = vpop.f32.mrb[0].mxu0
    %v5294 = vadd.f32 0.0, %v5293
    %v5295 = vpop.f32.mrb[0].mxu0
    %v5296 = vpop.f32.mrb[0].mxu0
    %v5297 = vadd.f32 0.0, %v5296
    %v5298 = vpop.f32.mrb[0].mxu0
    %5299 = vmatprep.mubr.bf16.mxu0 0
    %5300 = vmatmul.mubr.bf16.gmra.mrb[0].mxu0 %v4518
    %v5301 = vpop.f32.mrb[0].mxu0
    %v5302 = vadd.f32 0.0, %v5301
    %v5303 = vpop.f32.mrb[0].mxu0
    %v5304 = vpop.f32.mrb[0].mxu0
    %v5305 = vadd.f32 0.0, %v5304
    %v5306 = vpop.f32.mrb[0].mxu0
    %5307 = vdwg.mxu0
    %v5308 = vmul.f32 %v5246, %v4519
    %v5309 = vmul.f32 %v5249, %v4520
    %v5310 = vmul.f32 %v5254, %v4521
    %v5311 = vmul.f32 %v5257, %v4522
    %v5312 = vmul.f32 %v5262, %v4523
    %v5313 = vmul.f32 %v5265, %v4524
    %v5314 = vmul.f32 %v5270, %v4525
    %v5315 = vmul.f32 %v5273, %v4526
    %v5316 = vmul.f32 %v5278, %v4527
    %v5317 = vmul.f32 %v5281, %v4528
    %v5318 = vmul.f32 %v5286, %v4529
    %v5319 = vmul.f32 %v5289, %v4530
    %v5320 = vmul.f32 %v5294, %v4531
    %v5321 = vmul.f32 %v5297, %v4532
    %v5322 = vmul.f32 %v5302, %v4533
    %v5323 = vmul.f32 %v5305, %v4534
    %v5324 = vpack.c.bf16 %v5309, %v5308
    %v5325 = vpack.c.bf16 %v5311, %v5310
    %v5326 = vpack.c.bf16 %v5313, %v5312
    %v5327 = vpack.c.bf16 %v5315, %v5314
    %v5328 = vpack.c.bf16 %v5317, %v5316
    %v5329 = vpack.c.bf16 %v5319, %v5318
    %v5330 = vpack.c.bf16 %v5321, %v5320
    %v5331 = vpack.c.bf16 %v5323, %v5322
    %v5333 = vsel %vm991, %v5324, 0
    %v5336 = vsel %vm991, %v5325, 0
    %v5339 = vsel %vm991, %v5326, 0
    %v5342 = vsel %vm991, %v5327, 0
    %v5345 = vsel %vm991, %v5328, 0
    %v5348 = vsel %vm991, %v5329, 0
    %v5351 = vsel %vm991, %v5330, 0
    %v5354 = vsel %vm991, %v5331, 0
    %5356 = vmatprep.subr.bf16.mxu0 0
    %5357 = vmatpush1.bf16.msra.mxu0 %v2921
    %5358 = vmatprep.subr.bf16.mxu0 0
    %5359 = vmatpush1.bf16.msra.mxu0 %v2922
    %5360 = vmatprep.subr.bf16.mxu0 0
    %5361 = vmatpush1.bf16.msra.mxu0 0
    %5362 = vmatprep.subr.bf16.mxu0 0
    %5363 = vmatpush1.bf16.msra.mxu0 0
    %5364 = vmatprep.subr.bf16.mxu0 0
    %5365 = vmatpush1.bf16.msra.mxu0 0
    %5366 = vmatprep.subr.bf16.mxu0 0
    %5367 = vmatpush1.bf16.msra.mxu0 0
    %5368 = vmatprep.subr.bf16.mxu0 0
    %5369 = vmatpush1.bf16.msra.mxu0 0
    %5370 = vmatprep.subr.bf16.mxu0 0
    %5371 = vmatpush1.bf16.msra.mxu0 0
    %5372 = vmatprep.subr.bf16.mxu0 0
    %5373 = vmatpush1.bf16.msra.mxu0 0
    %5374 = vmatprep.subr.bf16.mxu0 0
    %5375 = vmatpush1.bf16.msra.mxu0 0
    %5376 = vmatprep.subr.bf16.mxu0 0
    %5377 = vmatpush1.bf16.msra.mxu0 0
    %5378 = vmatprep.subr.bf16.mxu0 0
    %5379 = vmatpush1.bf16.msra.mxu0 0
    %5380 = vmatprep.subr.bf16.mxu0 0
    %5381 = vmatpush1.bf16.msra.mxu0 0
    %5382 = vmatprep.subr.bf16.mxu0 0
    %5383 = vmatpush1.bf16.msra.mxu0 0
    %5384 = vmatprep.subr.bf16.mxu0 0
    %5385 = vmatpush1.bf16.msra.mxu0 0
    %5386 = vmatprep.subr.bf16.mxu0 0
    %5387 = vmatpush1.bf16.msra.mxu0 0
    %5388 = vmatprep.mubr.bf16.mxu0 0
    %5389 = vmatmul.mubr.bf16.gmra.mrb[0].mxu0 %v5333
    %v5390 = vpop.f32.mrb[0].mxu0
    %v5391 = vadd.f32 0.0, %v5390
    %v5392 = vpop.f32.mrb[0].mxu0
    %v5393 = vpop.f32.mrb[0].mxu0
    %v5394 = vadd.f32 0.0, %v5393
    %v5395 = vpop.f32.mrb[0].mxu0
    %5396 = vmatprep.mubr.bf16.mxu0 0
    %5397 = vmatmul.mubr.bf16.gmra.mrb[0].mxu0 %v5336
    %v5398 = vpop.f32.mrb[0].mxu0
    %v5399 = vadd.f32 0.0, %v5398
    %v5400 = vpop.f32.mrb[0].mxu0
    %v5401 = vpop.f32.mrb[0].mxu0
    %v5402 = vadd.f32 0.0, %v5401
    %v5403 = vpop.f32.mrb[0].mxu0
    %5404 = vmatprep.mubr.bf16.mxu0 0
    %5405 = vmatmul.mubr.bf16.gmra.mrb[0].mxu0 %v5339
    %v5406 = vpop.f32.mrb[0].mxu0
    %v5407 = vadd.f32 0.0, %v5406
    %v5408 = vpop.f32.mrb[0].mxu0
    %v5409 = vpop.f32.mrb[0].mxu0
    %v5410 = vadd.f32 0.0, %v5409
    %v5411 = vpop.f32.mrb[0].mxu0
    %5412 = vmatprep.mubr.bf16.mxu0 0
    %5413 = vmatmul.mubr.bf16.gmra.mrb[0].mxu0 %v5342
    %v5414 = vpop.f32.mrb[0].mxu0
    %v5415 = vadd.f32 0.0, %v5414
    %v5416 = vpop.f32.mrb[0].mxu0
    %v5417 = vpop.f32.mrb[0].mxu0
    %v5418 = vadd.f32 0.0, %v5417
    %v5419 = vpop.f32.mrb[0].mxu0
    %5420 = vmatprep.mubr.bf16.mxu0 0
    %5421 = vmatmul.mubr.bf16.gmra.mrb[0].mxu0 %v5345
    %v5422 = vpop.f32.mrb[0].mxu0
    %v5423 = vadd.f32 0.0, %v5422
    %v5424 = vpop.f32.mrb[0].mxu0
    %v5425 = vpop.f32.mrb[0].mxu0
    %v5426 = vadd.f32 0.0, %v5425
    %v5427 = vpop.f32.mrb[0].mxu0
    %5428 = vmatprep.mubr.bf16.mxu0 0
    %5429 = vmatmul.mubr.bf16.gmra.mrb[0].mxu0 %v5348
    %v5430 = vpop.f32.mrb[0].mxu0
    %v5431 = vadd.f32 0.0, %v5430
    %v5432 = vpop.f32.mrb[0].mxu0
    %v5433 = vpop.f32.mrb[0].mxu0
    %v5434 = vadd.f32 0.0, %v5433
    %v5435 = vpop.f32.mrb[0].mxu0
    %5436 = vmatprep.mubr.bf16.mxu0 0
    %5437 = vmatmul.mubr.bf16.gmra.mrb[0].mxu0 %v5351
    %v5438 = vpop.f32.mrb[0].mxu0
    %v5439 = vadd.f32 0.0, %v5438
    %v5440 = vpop.f32.mrb[0].mxu0
    %v5441 = vpop.f32.mrb[0].mxu0
    %v5442 = vadd.f32 0.0, %v5441
    %v5443 = vpop.f32.mrb[0].mxu0
    %5444 = vmatprep.mubr.bf16.mxu0 0
    %5445 = vmatmul.mubr.bf16.gmra.mrb[0].mxu0 %v5354
    %v5446 = vpop.f32.mrb[0].mxu0
    %v5447 = vadd.f32 0.0, %v5446
    %v5448 = vpop.f32.mrb[0].mxu0
    %v5449 = vpop.f32.mrb[0].mxu0
    %v5450 = vadd.f32 0.0, %v5449
    %v5451 = vpop.f32.mrb[0].mxu0
    %5452 = vdwg.mxu0
    %v5453 = vadd.f32 %v5125, %v5391
    %v5454 = vadd.f32 %v5128, %v5394
    %v5455 = vadd.f32 %v5133, %v5399
    %v5456 = vadd.f32 %v5136, %v5402
    %v5457 = vadd.f32 %v5141, %v5407
    %v5458 = vadd.f32 %v5144, %v5410
    %v5459 = vadd.f32 %v5149, %v5415
    %v5460 = vadd.f32 %v5152, %v5418
    %v5461 = vadd.f32 %v5157, %v5423
    %v5462 = vadd.f32 %v5160, %v5426
    %v5463 = vadd.f32 %v5165, %v5431
    %v5464 = vadd.f32 %v5168, %v5434
    %v5465 = vadd.f32 %v5173, %v5439
    %v5466 = vadd.f32 %v5176, %v5442
    %v5467 = vadd.f32 %v5181, %v5447
    %v5468 = vadd.f32 %v5184, %v5450
    %5469 = vrot.lane.b32.xlu0 %v908, 32
    %v5470 = vpop.permute.xlu0 %5469
    %5471 = vrot.lane.b32.xlu0 %v909, 32
    %v5472 = vpop.permute.xlu0 %5471
    %5473 = vrot.lane.b32.xlu0 %v910, 32
    %v5474 = vpop.permute.xlu0 %5473
    %5475 = vrot.lane.b32.xlu0 %v911, 32
    %v5476 = vpop.permute.xlu0 %5475
    %5477 = vrot.lane.b32.xlu0 %v912, 32
    %v5478 = vpop.permute.xlu0 %5477
    %5479 = vrot.lane.b32.xlu0 %v913, 32
    %v5480 = vpop.permute.xlu0 %5479
    %5481 = vrot.lane.b32.xlu0 %v914, 32
    %v5482 = vpop.permute.xlu0 %5481
    %5483 = vrot.lane.b32.xlu0 %v915, 32
    %v5484 = vpop.permute.xlu0 %5483
    %5493 = vmatprep.subr.bf16.mxu0 0
    %5494 = vmatpush1.bf16.msra.mxu0 %v5470
    %5495 = vmatprep.subr.bf16.mxu0 0
    %5496 = vmatpush1.bf16.msra.mxu0 %v5472
    %5497 = vmatprep.subr.bf16.mxu0 0
    %5498 = vmatpush1.bf16.msra.mxu0 %v5474
    %5499 = vmatprep.subr.bf16.mxu0 0
    %5500 = vmatpush1.bf16.msra.mxu0 %v5476
    %5501 = vmatprep.subr.bf16.mxu0 0
    %5502 = vmatpush1.bf16.msra.mxu0 %v5478
    %5503 = vmatprep.subr.bf16.mxu0 0
    %5504 = vmatpush1.bf16.msra.mxu0 %v5480
    %5505 = vmatprep.subr.bf16.mxu0 0
    %5506 = vmatpush1.bf16.msra.mxu0 %v5482
    %5507 = vmatprep.subr.bf16.mxu0 0
    %5508 = vmatpush1.bf16.msra.mxu0 %v5484
    %5509 = vmatprep.subr.bf16.mxu0 0
    %5510 = vmatpush1.bf16.msra.mxu0 0
    %5511 = vmatprep.subr.bf16.mxu0 0
    %5512 = vmatpush1.bf16.msra.mxu0 0
    %5513 = vmatprep.subr.bf16.mxu0 0
    %5514 = vmatpush1.bf16.msra.mxu0 0
    %5515 = vmatprep.subr.bf16.mxu0 0
    %5516 = vmatpush1.bf16.msra.mxu0 0
    %5517 = vmatprep.subr.bf16.mxu0 0
    %5518 = vmatpush1.bf16.msra.mxu0 0
    %5519 = vmatprep.subr.bf16.mxu0 0
    %5520 = vmatpush1.bf16.msra.mxu0 0
    %5521 = vmatprep.subr.bf16.mxu0 0
    %5522 = vmatpush1.bf16.msra.mxu0 0
    %5523 = vmatprep.subr.bf16.mxu0 0
    %5524 = vmatpush1.bf16.msra.mxu0 0
    %5525 = vmatprep.mubr.bf16.mxu0 0
    %5526 = vmatmul.mubr.bf16.gmra.mrb[0].mxu0 %v4647
    %v5527 = vpop.f32.mrb[0].mxu0
    %v5528 = vadd.f32 0.0, %v5527
    %v5529 = vpop.f32.mrb[0].mxu0
    %v5530 = vpop.f32.mrb[0].mxu0
    %v5531 = vadd.f32 0.0, %v5530
    %v5532 = vpop.f32.mrb[0].mxu0
    %5533 = vmatprep.mubr.bf16.mxu0 0
    %5534 = vmatmul.mubr.bf16.gmra.mrb[0].mxu0 %v4648
    %v5535 = vpop.f32.mrb[0].mxu0
    %v5536 = vadd.f32 0.0, %v5535
    %v5537 = vpop.f32.mrb[0].mxu0
    %v5538 = vpop.f32.mrb[0].mxu0
    %v5539 = vadd.f32 0.0, %v5538
    %v5540 = vpop.f32.mrb[0].mxu0
    %5541 = vmatprep.mubr.bf16.mxu0 0
    %5542 = vmatmul.mubr.bf16.gmra.mrb[0].mxu0 %v4649
    %v5543 = vpop.f32.mrb[0].mxu0
    %v5544 = vadd.f32 0.0, %v5543
    %v5545 = vpop.f32.mrb[0].mxu0
    %v5546 = vpop.f32.mrb[0].mxu0
    %v5547 = vadd.f32 0.0, %v5546
    %v5548 = vpop.f32.mrb[0].mxu0
    %5549 = vmatprep.mubr.bf16.mxu0 0
    %5550 = vmatmul.mubr.bf16.gmra.mrb[0].mxu0 %v4650
    %v5551 = vpop.f32.mrb[0].mxu0
    %v5552 = vadd.f32 0.0, %v5551
    %v5553 = vpop.f32.mrb[0].mxu0
    %v5554 = vpop.f32.mrb[0].mxu0
    %v5555 = vadd.f32 0.0, %v5554
    %v5556 = vpop.f32.mrb[0].mxu0
    %5557 = vmatprep.mubr.bf16.mxu0 0
    %5558 = vmatmul.mubr.bf16.gmra.mrb[0].mxu0 %v4651
    %v5559 = vpop.f32.mrb[0].mxu0
    %v5560 = vadd.f32 0.0, %v5559
    %v5561 = vpop.f32.mrb[0].mxu0
    %v5562 = vpop.f32.mrb[0].mxu0
    %v5563 = vadd.f32 0.0, %v5562
    %v5564 = vpop.f32.mrb[0].mxu0
    %5565 = vmatprep.mubr.bf16.mxu0 0
    %5566 = vmatmul.mubr.bf16.gmra.mrb[0].mxu0 %v4652
    %v5567 = vpop.f32.mrb[0].mxu0
    %v5568 = vadd.f32 0.0, %v5567
    %v5569 = vpop.f32.mrb[0].mxu0
    %v5570 = vpop.f32.mrb[0].mxu0
    %v5571 = vadd.f32 0.0, %v5570
    %v5572 = vpop.f32.mrb[0].mxu0
    %5573 = vmatprep.mubr.bf16.mxu0 0
    %5574 = vmatmul.mubr.bf16.gmra.mrb[0].mxu0 %v4653
    %v5575 = vpop.f32.mrb[0].mxu0
    %v5576 = vadd.f32 0.0, %v5575
    %v5577 = vpop.f32.mrb[0].mxu0
    %v5578 = vpop.f32.mrb[0].mxu0
    %v5579 = vadd.f32 0.0, %v5578
    %v5580 = vpop.f32.mrb[0].mxu0
    %5581 = vmatprep.mubr.bf16.mxu0 0
    %5582 = vmatmul.mubr.bf16.gmra.mrb[0].mxu0 %v4654
    %v5583 = vpop.f32.mrb[0].mxu0
    %v5584 = vadd.f32 0.0, %v5583
    %v5585 = vpop.f32.mrb[0].mxu0
    %v5586 = vpop.f32.mrb[0].mxu0
    %v5587 = vadd.f32 0.0, %v5586
    %v5588 = vpop.f32.mrb[0].mxu0
    %5589 = vdwg.mxu0
    %v5590 = vmul.f32 %v5528, %v4655
    %v5591 = vmul.f32 %v5531, %v4656
    %v5592 = vmul.f32 %v5536, %v4657
    %v5593 = vmul.f32 %v5539, %v4658
    %v5594 = vmul.f32 %v5544, %v4659
    %v5595 = vmul.f32 %v5547, %v4660
    %v5596 = vmul.f32 %v5552, %v4661
    %v5597 = vmul.f32 %v5555, %v4662
    %v5598 = vmul.f32 %v5560, %v4663
    %v5599 = vmul.f32 %v5563, %v4664
    %v5600 = vmul.f32 %v5568, %v4665
    %v5601 = vmul.f32 %v5571, %v4666
    %v5602 = vmul.f32 %v5576, %v4667
    %v5603 = vmul.f32 %v5579, %v4668
    %v5604 = vmul.f32 %v5584, %v4669
    %v5605 = vmul.f32 %v5587, %v4670
    %v5606 = vpack.c.bf16 %v5591, %v5590
    %v5607 = vpack.c.bf16 %v5593, %v5592
    %v5608 = vpack.c.bf16 %v5595, %v5594
    %v5609 = vpack.c.bf16 %v5597, %v5596
    %v5610 = vpack.c.bf16 %v5599, %v5598
    %v5611 = vpack.c.bf16 %v5601, %v5600
    %v5612 = vpack.c.bf16 %v5603, %v5602
    %v5613 = vpack.c.bf16 %v5605, %v5604
    %v5615 = vsel %vm991, %v5606, 0
    %v5618 = vsel %vm991, %v5607, 0
    %v5621 = vsel %vm991, %v5608, 0
    %v5624 = vsel %vm991, %v5609, 0
    %v5627 = vsel %vm991, %v5610, 0
    %v5630 = vsel %vm991, %v5611, 0
    %v5633 = vsel %vm991, %v5612, 0
    %v5636 = vsel %vm991, %v5613, 0
    %5638 = vmatprep.subr.bf16.mxu0 0
    %5639 = vmatpush1.bf16.msra.mxu0 %v3215
    %5640 = vmatprep.subr.bf16.mxu0 0
    %5641 = vmatpush1.bf16.msra.mxu0 %v3216
    %5642 = vmatprep.subr.bf16.mxu0 0
    %5643 = vmatpush1.bf16.msra.mxu0 0
    %5644 = vmatprep.subr.bf16.mxu0 0
    %5645 = vmatpush1.bf16.msra.mxu0 0
    %5646 = vmatprep.subr.bf16.mxu0 0
    %5647 = vmatpush1.bf16.msra.mxu0 0
    %5648 = vmatprep.subr.bf16.mxu0 0
    %5649 = vmatpush1.bf16.msra.mxu0 0
    %5650 = vmatprep.subr.bf16.mxu0 0
    %5651 = vmatpush1.bf16.msra.mxu0 0
    %5652 = vmatprep.subr.bf16.mxu0 0
    %5653 = vmatpush1.bf16.msra.mxu0 0
    %5654 = vmatprep.subr.bf16.mxu0 0
    %5655 = vmatpush1.bf16.msra.mxu0 0
    %5656 = vmatprep.subr.bf16.mxu0 0
    %5657 = vmatpush1.bf16.msra.mxu0 0
    %5658 = vmatprep.subr.bf16.mxu0 0
    %5659 = vmatpush1.bf16.msra.mxu0 0
    %5660 = vmatprep.subr.bf16.mxu0 0
    %5661 = vmatpush1.bf16.msra.mxu0 0
    %5662 = vmatprep.subr.bf16.mxu0 0
    %5663 = vmatpush1.bf16.msra.mxu0 0
    %5664 = vmatprep.subr.bf16.mxu0 0
    %5665 = vmatpush1.bf16.msra.mxu0 0
    %5666 = vmatprep.subr.bf16.mxu0 0
    %5667 = vmatpush1.bf16.msra.mxu0 0
    %5668 = vmatprep.subr.bf16.mxu0 0
    %5669 = vmatpush1.bf16.msra.mxu0 0
    %5670 = vmatprep.mubr.bf16.mxu0 0
    %5671 = vmatmul.mubr.bf16.gmra.mrb[0].mxu0 %v5615
    %v5672 = vpop.f32.mrb[0].mxu0
    %v5673 = vadd.f32 0.0, %v5672
    %v5674 = vpop.f32.mrb[0].mxu0
    %v5675 = vpop.f32.mrb[0].mxu0
    %v5676 = vadd.f32 0.0, %v5675
    %v5677 = vpop.f32.mrb[0].mxu0
    %5678 = vmatprep.mubr.bf16.mxu0 0
    %5679 = vmatmul.mubr.bf16.gmra.mrb[0].mxu0 %v5618
    %v5680 = vpop.f32.mrb[0].mxu0
    %v5681 = vadd.f32 0.0, %v5680
    %v5682 = vpop.f32.mrb[0].mxu0
    %v5683 = vpop.f32.mrb[0].mxu0
    %v5684 = vadd.f32 0.0, %v5683
    %v5685 = vpop.f32.mrb[0].mxu0
    %5686 = vmatprep.mubr.bf16.mxu0 0
    %5687 = vmatmul.mubr.bf16.gmra.mrb[0].mxu0 %v5621
    %v5688 = vpop.f32.mrb[0].mxu0
    %v5689 = vadd.f32 0.0, %v5688
    %v5690 = vpop.f32.mrb[0].mxu0
    %v5691 = vpop.f32.mrb[0].mxu0
    %v5692 = vadd.f32 0.0, %v5691
    %v5693 = vpop.f32.mrb[0].mxu0
    %5694 = vmatprep.mubr.bf16.mxu0 0
    %5695 = vmatmul.mubr.bf16.gmra.mrb[0].mxu0 %v5624
    %v5696 = vpop.f32.mrb[0].mxu0
    %v5697 = vadd.f32 0.0, %v5696
    %v5698 = vpop.f32.mrb[0].mxu0
    %v5699 = vpop.f32.mrb[0].mxu0
    %v5700 = vadd.f32 0.0, %v5699
    %v5701 = vpop.f32.mrb[0].mxu0
    %5702 = vmatprep.mubr.bf16.mxu0 0
    %5703 = vmatmul.mubr.bf16.gmra.mrb[0].mxu0 %v5627
    %v5704 = vpop.f32.mrb[0].mxu0
    %v5705 = vadd.f32 0.0, %v5704
    %v5706 = vpop.f32.mrb[0].mxu0
    %v5707 = vpop.f32.mrb[0].mxu0
    %v5708 = vadd.f32 0.0, %v5707
    %v5709 = vpop.f32.mrb[0].mxu0
    %5710 = vmatprep.mubr.bf16.mxu0 0
    %5711 = vmatmul.mubr.bf16.gmra.mrb[0].mxu0 %v5630
    %v5712 = vpop.f32.mrb[0].mxu0
    %v5713 = vadd.f32 0.0, %v5712
    %v5714 = vpop.f32.mrb[0].mxu0
    %v5715 = vpop.f32.mrb[0].mxu0
    %v5716 = vadd.f32 0.0, %v5715
    %v5717 = vpop.f32.mrb[0].mxu0
    %5718 = vmatprep.mubr.bf16.mxu0 0
    %5719 = vmatmul.mubr.bf16.gmra.mrb[0].mxu0 %v5633
    %v5720 = vpop.f32.mrb[0].mxu0
    %v5721 = vadd.f32 0.0, %v5720
    %v5722 = vpop.f32.mrb[0].mxu0
    %v5723 = vpop.f32.mrb[0].mxu0
    %v5724 = vadd.f32 0.0, %v5723
    %v5725 = vpop.f32.mrb[0].mxu0
    %5726 = vmatprep.mubr.bf16.mxu0 0
    %5727 = vmatmul.mubr.bf16.gmra.mrb[0].mxu0 %v5636
    %v5728 = vpop.f32.mrb[0].mxu0
    %v5729 = vadd.f32 0.0, %v5728
    %v5730 = vpop.f32.mrb[0].mxu0
    %v5731 = vpop.f32.mrb[0].mxu0
    %v5732 = vadd.f32 0.0, %v5731
    %v5733 = vpop.f32.mrb[0].mxu0
    %5734 = vdwg.mxu0
    %v5735 = vadd.f32 %v5453, %v5673
    %v5736 = vadd.f32 %v5454, %v5676
    %v5737 = vadd.f32 %v5455, %v5681
    %v5738 = vadd.f32 %v5456, %v5684
    %v5739 = vadd.f32 %v5457, %v5689
    %v5740 = vadd.f32 %v5458, %v5692
    %v5741 = vadd.f32 %v5459, %v5697
    %v5742 = vadd.f32 %v5460, %v5700
    %v5743 = vadd.f32 %v5461, %v5705
    %v5744 = vadd.f32 %v5462, %v5708
    %v5745 = vadd.f32 %v5463, %v5713
    %v5746 = vadd.f32 %v5464, %v5716
    %v5747 = vadd.f32 %v5465, %v5721
    %v5748 = vadd.f32 %v5466, %v5724
    %v5749 = vadd.f32 %v5467, %v5729
    %v5750 = vadd.f32 %v5468, %v5732
    %v5751 = vadd.f32 %v5735, %v3360
    %v5752 = vadd.f32 %v5736, %v3360
    %v5753 = vadd.f32 %v5737, %v3360
    %v5754 = vadd.f32 %v5738, %v3360
    %v5755 = vadd.f32 %v5739, %v3360
    %v5756 = vadd.f32 %v5740, %v3360
    %v5757 = vadd.f32 %v5741, %v3360
    %v5758 = vadd.f32 %v5742, %v3360
    %v5759 = vadd.f32 %v5743, %v3360
    %v5760 = vadd.f32 %v5744, %v3360
    %v5761 = vadd.f32 %v5745, %v3360
    %v5762 = vadd.f32 %v5746, %v3360
    %v5763 = vadd.f32 %v5747, %v3360
    %v5764 = vadd.f32 %v5748, %v3360
    %v5765 = vadd.f32 %v5749, %v3360
    %v5766 = vadd.f32 %v5750, %v3360
    %s5767 = scalar_lea.vmem [#allocation11], 128
    %5768 = vst [vmem:[%s5767] sm:$0xff] %v5751
    %5769 = vst [vmem:[%s5767 + $0x8] sm:$0xff] %v5752
    %5770 = vst [vmem:[%s5767 + $0x10] sm:$0xff] %v5753
    %5771 = vst [vmem:[%s5767 + $0x18] sm:$0xff] %v5754
    %5772 = vst [vmem:[%s5767 + $0x20] sm:$0xff] %v5755
    %5773 = vst [vmem:[%s5767 + $0x28] sm:$0xff] %v5756
    %5774 = vst [vmem:[%s5767 + $0x30] sm:$0xff] %v5757
    %5775 = vst [vmem:[%s5767 + $0x38] sm:$0xff] %v5758
    %5776 = vst [vmem:[%s5767 + $0x40] sm:$0xff] %v5759
    %5777 = vst [vmem:[%s5767 + $0x48] sm:$0xff] %v5760
    %5778 = vst [vmem:[%s5767 + $0x50] sm:$0xff] %v5761
    %5779 = vst [vmem:[%s5767 + $0x58] sm:$0xff] %v5762
    %5780 = vst [vmem:[%s5767 + $0x60] sm:$0xff] %v5763
    %5781 = vst [vmem:[%s5767 + $0x68] sm:$0xff] %v5764
    %5782 = vst [vmem:[%s5767 + $0x70] sm:$0xff] %v5765
    %5783 = vst [vmem:[%s5767 + $0x78] sm:$0xff] %v5766
    // Predicated region
    $region50: #{tpu_custom_call.1} parent=1 // pred_check
      _
    $region51: #{tpu_custom_call.1} parent=1 // pred_check_branch
      %5785 = sbr.rel (0) target = $region53
    $region52: #{tpu_custom_call.1} parent=1 // pred_region
      %s5787 = ssub.s32 4096, 4096
      %5788 = vsyncadd [#allocation4], %s5787
      %s5789 = sshll.u32 [#allocation11], 4
      %s5790 = int_to_ptr.vmem [resolvable:$true] %s5789
      %5795 = dma.vmem_to_hbm [thread:$0]  %s5790, 4096, %s7, [#allocation4], 128, 128, 8
    $region53: #{tpu_custom_call.1} parent=1 // pred_fallthru
      _
    // Predicated region
    $region54: #{tpu_custom_call.1} parent=1 // pred_check
      _
    $region55: #{tpu_custom_call.1} parent=1 // pred_check_branch
      %5797 = sbr.rel (0) target = $region57
    $region56: #{tpu_custom_call.1} parent=1 // pred_region
      %5798 = dma.done [#allocation4], 4096
    $region57: #{tpu_custom_call.1} parent=1 // pred_fallthru
      _
    %5799 = vsyncpa [#allocation3], 1
    %5800 = vsyncpa [#allocation6], 1
    %5801 = vsyncpa [#allocation9], 1
    %5802 = vsyncpa [#allocation4], 1

</llo_original>
